<compile_context>
chip_gen: v6e
topology: v6e:2x2x1
jax: 0.10.0
libtpu: 0.0.40
codegen_flags: <defaults>
</compile_context>

<pallas_src>
import functools

import jax
import jax.numpy as jnp
import numpy as np
from jax.experimental import pallas as pl
from jax.experimental.pallas import tpu as pltpu

LANE = 128          # channel dims are padded up to a multiple of this
PAD_L = 16          # left spatial halo in the VMEM scratch (sublane-aligned
                    # for both f32 (8) and bf16 (16) tilings)
_MAX_DIL = 5        # largest dilation in the DWR block
_GELU_C = 0.7978845608028654   # sqrt(2/pi)


def _pad_lane(c):
    return ((c + LANE - 1) // LANE) * LANE


# ----------------------------------------------------------------------------
# In-kernel activations
# ----------------------------------------------------------------------------
def _silu(y):
    return y * jax.nn.sigmoid(y)


def _gelu(y):
    # tanh-approx GELU (EUP tanh slot); |err| < 1e-3 vs the exact erf GELU.
    return 0.5 * y * (1.0 + jnp.tanh(_GELU_C * (y + 0.044715 * y * y * y)))


# ----------------------------------------------------------------------------
# Shared 3x3 tap accumulator: 9 flattened (H*W, Cin)x(Cin, Cout) MXU matmuls
# reading from a zero-bordered padded VMEM scratch.
# ----------------------------------------------------------------------------
def _conv3x3_acc(xpad_ref, w_ref, *, H, W, Cin, Cout, dil, pad_t):
    acc = jnp.zeros((H * W, Cout), jnp.float32)
    for dy in range(3):
        for dx in range(3):
            hs = pad_t - dil + dy * dil
            ws = PAD_L - dil + dx * dil
            patch = xpad_ref[hs:hs + H, ws:ws + W, :].reshape(H * W, Cin)
            acc = acc + jnp.dot(patch, w_ref[dy, dx, :, :],
                                preferred_element_type=jnp.float32)
    return acc


# ----------------------------------------------------------------------------
# Kernel 1: cv1 (3x3 conv + BN + SiLU) fused with DWRSeg_Conv.conv (1x1 + BN + SiLU)
# ----------------------------------------------------------------------------
def _cv1_dwrconv_kernel(x_ref, w1_ref, s1_ref, b1_ref, w2_ref, s2_ref, b2_ref,
                        o_ref, xpad_ref, *, H, W, C1p, Cmp, C2p):
    xpad_ref[...] = jnp.zeros_like(xpad_ref)
    xpad_ref[1:1 + H, PAD_L:PAD_L + W, :] = x_ref[0].astype(xpad_ref.dtype)

    acc = _conv3x3_acc(xpad_ref, w1_ref, H=H, W=W, Cin=C1p, Cout=Cmp,
                       dil=1, pad_t=1)
    a = _silu(acc * s1_ref[...] + b1_ref[...])                      # (H*W, Cmp)
    acc2 = jnp.dot(a.astype(jnp.bfloat16), w2_ref[...],
                   preferred_element_type=jnp.float32)
    bpre = _silu(acc2 * s2_ref[...] + b2_ref[...])                  # (H*W, C2p)
    o_ref[0] = bpre.reshape(H, W, C2p).astype(o_ref.dtype)


# ----------------------------------------------------------------------------
# Kernel 2: DWR.conv_3x3 (3x3 conv + BN + SiLU)
# ----------------------------------------------------------------------------
def _conv3x3_bn_silu_kernel(x_ref, w_ref, s_ref, b_ref, o_ref, xpad_ref,
                            *, H, W, Cin, Cout):
    xpad_ref[...] = jnp.zeros_like(xpad_ref)
    xpad_ref[1:1 + H, PAD_L:PAD_L + W, :] = x_ref[0].astype(xpad_ref.dtype)

    acc = _conv3x3_acc(xpad_ref, w_ref, H=H, W=W, Cin=Cin, Cout=Cout,
                       dil=1, pad_t=1)
    y = _silu(acc * s_ref[...] + b_ref[...])
    o_ref[0] = y.reshape(H, W, Cout).astype(o_ref.dtype)


# ----------------------------------------------------------------------------
# Kernel 3: DWR d1/d3/d5 dilated branches + split 1x1 combine + residual
#           + DWRSeg BN + GELU (+ bottleneck shortcut)
# ----------------------------------------------------------------------------
def _dwr_fused_kernel(*refs, H, W, Chp, C2p, add):
    if add:
        (y_ref, bpre_ref, xs_ref,
         wd1_ref, sd1_ref, bd1_ref,
         wd3_ref, sd3_ref, bd3_ref,
         wd5_ref, sd5_ref, bd5_ref,
         wca_ref, wcb_ref, wcc_ref, sc_ref, bc_ref,
         sbn_ref, bbn_ref, o_ref, ypad_ref) = refs
    else:
        (y_ref, bpre_ref,
         wd1_ref, sd1_ref, bd1_ref,
         wd3_ref, sd3_ref, bd3_ref,
         wd5_ref, sd5_ref, bd5_ref,
         wca_ref, wcb_ref, wcc_ref, sc_ref, bc_ref,
         sbn_ref, bbn_ref, o_ref, ypad_ref) = refs
        xs_ref = None

    ypad_ref[...] = jnp.zeros_like(ypad_ref)
    ypad_ref[_MAX_DIL:_MAX_DIL + H, PAD_L:PAD_L + W, :] = y_ref[0].astype(ypad_ref.dtype)

    def branch(dil, w_ref, s_ref, b_ref):
        acc = _conv3x3_acc(ypad_ref, w_ref, H=H, W=W, Cin=Chp,
                           Cout=w_ref.shape[-1], dil=dil, pad_t=_MAX_DIL)
        return _silu(acc * s_ref[...] + b_ref[...])

    x1 = branch(1, wd1_ref, sd1_ref, bd1_ref)      # (H*W, C2p)
    x2 = branch(3, wd3_ref, sd3_ref, bd3_ref)      # (H*W, Chp)
    x3 = branch(5, wd5_ref, sd5_ref, bd5_ref)      # (H*W, Chp)

    # DWR.conv_1x1 on the (never materialized) concat: weight split per branch.
    comb = jnp.dot(x1.astype(jnp.bfloat16), wca_ref[...],
                   preferred_element_type=jnp.float32)
    comb = comb + jnp.dot(x2.astype(jnp.bfloat16), wcb_ref[...],
                          preferred_element_type=jnp.float32)
    comb = comb + jnp.dot(x3.astype(jnp.bfloat16), wcc_ref[...],
                          preferred_element_type=jnp.float32)
    d = _silu(comb * sc_ref[...] + bc_ref[...]) \
        + bpre_ref[0].reshape(H * W, C2p).astype(jnp.float32)       # DWR residual
    z = _gelu(d * sbn_ref[...] + bbn_ref[...])                      # DWRSeg bn+gelu
    if add:
        z = z + xs_ref[0].reshape(H * W, C2p)                       # bottleneck add
    o_ref[0] = z.reshape(H, W, C2p).astype(o_ref.dtype)


# ----------------------------------------------------------------------------
# pallas_call wrappers (grid over batch; each program owns one image)
# ----------------------------------------------------------------------------
def _run_cv1_dwrconv(x_p, kp, *, H, W):
    N, _, _, C1p = x_p.shape
    w1, s1, b1 = kp["cv1"]
    w2, s2, b2 = kp["cv2_conv"]
    Cmp, C2p = w1.shape[-1], w2.shape[-1]
    kern = functools.partial(_cv1_dwrconv_kernel, H=H, W=W,
                             C1p=C1p, Cmp=Cmp, C2p=C2p)
    return pl.pallas_call(
        kern,
        out_shape=jax.ShapeDtypeStruct((N, H, W, C2p), jnp.bfloat16),
        grid=(N,),
        in_specs=[
            pl.BlockSpec((1, H, W, C1p), lambda n: (n, 0, 0, 0)),
            pl.BlockSpec((3, 3, C1p, Cmp), lambda n: (0, 0, 0, 0)),
            pl.BlockSpec((1, Cmp), lambda n: (0, 0)),
            pl.BlockSpec((1, Cmp), lambda n: (0, 0)),
            pl.BlockSpec((Cmp, C2p), lambda n: (0, 0)),
            pl.BlockSpec((1, C2p), lambda n: (0, 0)),
            pl.BlockSpec((1, C2p), lambda n: (0, 0)),
        ],
        out_specs=pl.BlockSpec((1, H, W, C2p), lambda n: (n, 0, 0, 0)),
        scratch_shapes=[pltpu.VMEM((H + 2, W + PAD_L + 1, C1p), jnp.bfloat16)],
        compiler_params=pltpu.CompilerParams(dimension_semantics=("parallel",)),
    )(x_p, w1, s1, b1, w2, s2, b2)


def _run_dwr3x3(bpre, kp, *, H, W):
    N, _, _, C2p = bpre.shape
    w, s, b = kp["dwr_3x3"]
    Chp = w.shape[-1]
    kern = functools.partial(_conv3x3_bn_silu_kernel, H=H, W=W, Cin=C2p, Cout=Chp)
    return pl.pallas_call(
        kern,
        out_shape=jax.ShapeDtypeStruct((N, H, W, Chp), jnp.bfloat16),
        grid=(N,),
        in_specs=[
            pl.BlockSpec((1, H, W, C2p), lambda n: (n, 0, 0, 0)),
            pl.BlockSpec((3, 3, C2p, Chp), lambda n: (0, 0, 0, 0)),
            pl.BlockSpec((1, Chp), lambda n: (0, 0)),
            pl.BlockSpec((1, Chp), lambda n: (0, 0)),
        ],
        out_specs=pl.BlockSpec((1, H, W, Chp), lambda n: (n, 0, 0, 0)),
        scratch_shapes=[pltpu.VMEM((H + 2, W + PAD_L + 1, C2p), jnp.bfloat16)],
        compiler_params=pltpu.CompilerParams(dimension_semantics=("parallel",)),
    )(bpre, w, s, b)


def _run_dwr_fused(y, bpre, x_short, kp, *, add, H, W):
    N, _, _, Chp = y.shape
    C2p = bpre.shape[-1]
    wd1, sd1, bd1 = kp["dwr_d1"]
    wd3, sd3, bd3 = kp["dwr_d3"]
    wd5, sd5, bd5 = kp["dwr_d5"]
    wca, wcb, wcc, sc, bc = kp["dwr_1x1"]
    sbn, bbn = kp["cv2_bn"]

    img = lambda C: pl.BlockSpec((1, H, W, C), lambda n: (n, 0, 0, 0))
    vec = lambda C: pl.BlockSpec((1, C), lambda n: (0, 0))
    w3spec = lambda Ci, Co: pl.BlockSpec((3, 3, Ci, Co), lambda n: (0, 0, 0, 0))
    w1spec = lambda Ci, Co: pl.BlockSpec((Ci, Co), lambda n: (0, 0))

    in_specs = [img(Chp), img(C2p)]
    args = [y, bpre]
    if add:
        in_specs.append(img(C2p))
        args.append(x_short)
    in_specs += [w3spec(Chp, C2p), vec(C2p), vec(C2p),
                 w3spec(Chp, Chp), vec(Chp), vec(Chp),
                 w3spec(Chp, Chp), vec(Chp), vec(Chp),
                 w1spec(C2p, C2p), w1spec(Chp, C2p), w1spec(Chp, C2p),
                 vec(C2p), vec(C2p),
                 vec(C2p), vec(C2p)]
    args += [wd1, sd1, bd1, wd3, sd3, bd3, wd5, sd5, bd5,
             wca, wcb, wcc, sc, bc, sbn, bbn]

    kern = functools.partial(_dwr_fused_kernel, H=H, W=W, Chp=Chp, C2p=C2p, add=add)
    return pl.pallas_call(
        kern,
        out_shape=jax.ShapeDtypeStruct((N, H, W, C2p), jnp.float32),
        grid=(N,),
        in_specs=in_specs,
        out_specs=pl.BlockSpec((1, H, W, C2p), lambda n: (n, 0, 0, 0)),
        scratch_shapes=[pltpu.VMEM((H + 2 * _MAX_DIL, W + PAD_L + _MAX_DIL, Chp),
                                   jnp.bfloat16)],
        compiler_params=pltpu.CompilerParams(dimension_semantics=("parallel",)),
    )(*args)


# ----------------------------------------------------------------------------
# Deterministic parameter initialization (synthetic weights, inference-mode BN)
# ----------------------------------------------------------------------------
def _fold_bn(gamma, beta, mean, var, eps=1e-5):
    scale = gamma / jnp.sqrt(var + eps)
    shift = beta - mean * scale
    return (scale.reshape(1, -1).astype(jnp.float32),
            shift.reshape(1, -1).astype(jnp.float32))


def _make_bn(key, c):
    kg, kb, km, kv = jax.random.split(key, 4)
    gamma = 1.0 + 0.1 * jax.random.normal(kg, (c,))
    beta = 0.05 * jax.random.normal(kb, (c,))
    mean = 0.05 * jax.random.normal(km, (c,))
    var = 1.0 + 0.1 * jnp.abs(jax.random.normal(kv, (c,)))
    return _fold_bn(gamma, beta, mean, var)


def make_conv_params(key, kh, kw, cin, cout):
    kw_, kbn = jax.random.split(key)
    w = (0.1 * jax.random.normal(kw_, (kh, kw, cin, cout))).astype(jnp.float32)
    scale, shift = _make_bn(kbn, cout)
    return (w, scale, shift)


def init_bottleneck_params(key, c1, c2, e=0.5):
    c_ = int(c2 * e)
    keys = jax.random.split(key, 8)
    p = {}
    p["cv1"] = make_conv_params(keys[0], 3, 3, c1, c_)           # Conv(c1, c_, 3, 1)
    p["cv2_conv"] = make_conv_params(keys[1], 1, 1, c_, c2)      # DWRSeg.conv
    p["dwr_3x3"] = make_conv_params(keys[2], 3, 3, c2, c2 // 2)  # DWR.conv_3x3
    p["dwr_d1"] = make_conv_params(keys[3], 3, 3, c2 // 2, c2)
    p["dwr_d3"] = make_conv_params(keys[4], 3, 3, c2 // 2, c2 // 2)
    p["dwr_d5"] = make_conv_params(keys[5], 3, 3, c2 // 2, c2 // 2)
    p["dwr_1x1"] = make_conv_params(keys[6], 1, 1, 2 * c2, c2)   # DWR.conv_1x1
    p["cv2_bn"] = _make_bn(keys[7], c2)                          # DWRSeg.bn
    return p


def prepare_kernel_params(p, c1, c2, e=0.5):
    """Lane-pad channel dims to multiples of 128, cast weights to bf16, and
    split the DWR 1x1 combine weight per branch (so the concat is never
    materialized).  Done once, outside the forward pass."""
    c_ = int(c2 * e)
    ch = c2 // 2
    C1p, Cmp, C2p, Chp = (_pad_lane(c1), _pad_lane(c_), _pad_lane(c2), _pad_lane(ch))

    def pad_w(w, cinp, coutp):
        return jnp.pad(w, ((0, 0), (0, 0),
                           (0, cinp - w.shape[2]),
                           (0, coutp - w.shape[3]))).astype(jnp.bfloat16)

    def pad_v(v, cp):
        return jnp.pad(v, ((0, 0), (0, cp - v.shape[1])))

    def pad_conv(prm, cinp, coutp):
        w, s, b = prm
        return pad_w(w, cinp, coutp), pad_v(s, coutp), pad_v(b, coutp)

    kp = {"dims": (C1p, Cmp, C2p, Chp)}
    kp["cv1"] = pad_conv(p["cv1"], C1p, Cmp)
    w2, s2, b2 = p["cv2_conv"]
    kp["cv2_conv"] = (pad_w(w2, Cmp, C2p).reshape(Cmp, C2p),
                      pad_v(s2, C2p), pad_v(b2, C2p))
    kp["dwr_3x3"] = pad_conv(p["dwr_3x3"], C2p, Chp)
    kp["dwr_d1"] = pad_conv(p["dwr_d1"], Chp, C2p)
    kp["dwr_d3"] = pad_conv(p["dwr_d3"], Chp, Chp)
    kp["dwr_d5"] = pad_conv(p["dwr_d5"], Chp, Chp)

    wc, sc, bc = p["dwr_1x1"]
    wc2d = wc.reshape(2 * c2, c2)
    wa, wb, wcx = wc2d[:c2], wc2d[c2:c2 + ch], wc2d[c2 + ch:]
    pad2 = lambda wt, cinp: jnp.pad(
        wt, ((0, cinp - wt.shape[0]), (0, C2p - wt.shape[1]))).astype(jnp.bfloat16)
    kp["dwr_1x1"] = (pad2(wa, C2p), pad2(wb, Chp), pad2(wcx, Chp),
                     pad_v(sc, C2p), pad_v(bc, C2p))

    sbn, bbn = p["cv2_bn"]
    kp["cv2_bn"] = (pad_v(sbn, C2p), pad_v(bbn, C2p))
    return kp


# ----------------------------------------------------------------------------
# Bottleneck forward (Pallas) and pure-JAX reference
# ----------------------------------------------------------------------------
def bottleneck_forward(x, kp, c1, c2, shortcut=True):
    """x is NHWC float32 of shape (N, H, W, c1)."""
    add = shortcut and c1 == c2
    N, H, W, _ = x.shape
    C1p = kp["dims"][0]
    x_p = jnp.pad(x, ((0, 0), (0, 0), (0, 0), (0, C1p - c1)))   # lane-pad channels once
    bpre = _run_cv1_dwrconv(x_p, kp, H=H, W=W)                  # cv1 + DWRSeg.conv
    y = _run_dwr3x3(bpre, kp, H=H, W=W)                         # DWR.conv_3x3
    out_p = _run_dwr_fused(y, bpre, x_p if add else None, kp, add=add, H=H, W=W)
    return out_p[..., :c2]


def _ref_act(y, act):
    if act == "silu":
        return y * jax.nn.sigmoid(y)
    if act == "gelu":
        return jax.nn.gelu(y, approximate=False)
    return y


def _ref_conv(x, w, scale, shift, dil=1, act="silu"):
    k = w.shape[0]
    pad = dil * (k // 2)
    y = jax.lax.conv_general_dilated(
        x, w, window_strides=(1, 1), padding=((pad, pad), (pad, pad)),
        rhs_dilation=(dil, dil), dimension_numbers=("NHWC", "HWIO", "NHWC"),
        precision=jax.lax.Precision.HIGHEST)
    return _ref_act(y * scale.reshape(1, 1, 1, -1) + shift.reshape(1, 1, 1, -1), act)


def bottleneck_reference(x, p, c1, c2, shortcut=True):
    add = shortcut and c1 == c2
    a = _ref_conv(x, *p["cv1"])
    b = _ref_conv(a, *p["cv2_conv"])
    y = _ref_conv(b, *p["dwr_3x3"])
    x1 = _ref_conv(y, *p["dwr_d1"], dil=1)
    x2 = _ref_conv(y, *p["dwr_d3"], dil=3)
    x3 = _ref_conv(y, *p["dwr_d5"], dil=5)
    cat = jnp.concatenate([x1, x2, x3], axis=-1)
    d = _ref_conv(cat, *p["dwr_1x1"]) + b
    s2, b2 = p["cv2_bn"]
    z = _ref_act(d * s2.reshape(1, 1, 1, -1) + b2.reshape(1, 1, 1, -1), "gelu")
    return x + z if add else z


if __name__ == "__main__":
    key = jax.random.PRNGKey(0)
    kx, kp_key = jax.random.split(key)
    N, C, H, W = 2, 4, 16, 16          # PyTorch-style NCHW intent
    c1 = c2 = C                        # shortcut active (c1 == c2)
    x_nchw = jax.random.normal(kx, (N, C, H, W), jnp.float32)
    x = jnp.transpose(x_nchw, (0, 2, 3, 1))        # -> NHWC for the kernels

    params = init_bottleneck_params(kp_key, c1, c2)
    kparams = prepare_kernel_params(params, c1, c2)

    out = bottleneck_forward(x, kparams, c1, c2, shortcut=True)
    out = jax.block_until_ready(out)
    assert out.shape == (N, H, W, c2)
    ref = bottleneck_reference(x, params, c1, c2, shortcut=True)
    np.testing.assert_allclose(np.asarray(out), np.asarray(ref), rtol=2e-2, atol=2e-2)

    # Also exercise the no-shortcut kernel variant (no zeros tensor is created).
    out_ns = bottleneck_forward(x, kparams, c1, c2, shortcut=False)
    out_ns = jax.block_until_ready(out_ns)
    ref_ns = bottleneck_reference(x, params, c1, c2, shortcut=False)
    np.testing.assert_allclose(np.asarray(out_ns), np.asarray(ref_ns),
                               rtol=2e-2, atol=2e-2)

    print("KERNEL_OK")
</pallas_src>

<mosaic_0001>
module attributes {stable_mosaic.version = 11 : i64} {
  func.func @_cv1_dwrconv_kernel(%arg0: i32, %arg1: memref<1x16x16x128xf32, #tpu.memory_space<vmem>>, %arg2: memref<3x3x128x128xbf16, #tpu.memory_space<vmem>>, %arg3: memref<1x128xf32, #tpu.memory_space<vmem>>, %arg4: memref<1x128xf32, #tpu.memory_space<vmem>>, %arg5: memref<128x128xbf16, #tpu.memory_space<vmem>>, %arg6: memref<1x128xf32, #tpu.memory_space<vmem>>, %arg7: memref<1x128xf32, #tpu.memory_space<vmem>>, %arg8: memref<1x16x16x128xbf16, #tpu.memory_space<vmem>>, %arg9: memref<18x33x128xbf16, #tpu.memory_space<vmem>>) attributes {dimension_semantics = [#tpu.dimension_semantics<parallel>], iteration_bounds = array<i64: 2>, scalar_prefetch = 0 : i64, scratch_operands = 1 : i64, tpu.core_type = #tpu.core_type<tc>, window_params = [{transform_indices = @transform_0, window_bounds = array<i64: 1, 16, 16, 128>}, {pipeline_mode = #tpu.pipeline_mode<synchronous>, transform_indices = @transform_1, window_bounds = array<i64: 3, 3, 128, 128>}, {pipeline_mode = #tpu.pipeline_mode<synchronous>, transform_indices = @transform_2, window_bounds = array<i64: 1, 128>}, {pipeline_mode = #tpu.pipeline_mode<synchronous>, transform_indices = @transform_3, window_bounds = array<i64: 1, 128>}, {pipeline_mode = #tpu.pipeline_mode<synchronous>, transform_indices = @transform_4, window_bounds = array<i64: 128, 128>}, {pipeline_mode = #tpu.pipeline_mode<synchronous>, transform_indices = @transform_5, window_bounds = array<i64: 1, 128>}, {pipeline_mode = #tpu.pipeline_mode<synchronous>, transform_indices = @transform_6, window_bounds = array<i64: 1, 128>}, {transform_indices = @transform_7, window_bounds = array<i64: 1, 16, 16, 128>}]} {
    %cst = arith.constant 0.000000e+00 : bf16
    %0 = vector.broadcast %cst : bf16 to vector<18x33x128xbf16>
    %c0 = arith.constant 0 : index
    %c0_0 = arith.constant 0 : index
    %c0_1 = arith.constant 0 : index
    %1 = vector.load %arg9[%c0, %c0_0, %c0_1] : memref<18x33x128xbf16, #tpu.memory_space<vmem>>, vector<18x33x128xbf16>
    tpu.vector_store %arg9[%c0, %c0_0, %c0_1], %0 {strides = array<i32>} : memref<18x33x128xbf16, #tpu.memory_space<vmem>>, vector<18x33x128xbf16>,
    %c0_2 = arith.constant 0 : index
    %c0_3 = arith.constant 0 : index
    %c0_4 = arith.constant 0 : index
    %c0_5 = arith.constant 0 : index
    %2 = vector.load %arg1[%c0_2, %c0_3, %c0_4, %c0_5] : memref<1x16x16x128xf32, #tpu.memory_space<vmem>>, vector<1x16x16x128xf32>
    %3 = vector.shape_cast %2 : vector<1x16x16x128xf32> to vector<16x16x128xf32>
    %4 = arith.truncf %3 : vector<16x16x128xf32> to vector<16x16x128xbf16>
    %c1 = arith.constant 1 : index
    %c16 = arith.constant 16 : index
    %c0_6 = arith.constant 0 : index
    %5 = vector.load %arg9[%c1, %c16, %c0_6] : memref<18x33x128xbf16, #tpu.memory_space<vmem>>, vector<16x16x128xbf16>
    tpu.vector_store %arg9[%c1, %c16, %c0_6], %4 {strides = array<i32>} : memref<18x33x128xbf16, #tpu.memory_space<vmem>>, vector<16x16x128xbf16>,
    %cst_7 = arith.constant 0.000000e+00 : f32
    %6 = vector.broadcast %cst_7 : f32 to vector<256x128xf32>
    %c0_8 = arith.constant 0 : index
    %c15 = arith.constant 15 : index
    %c0_9 = arith.constant 0 : index
    %7 = vector.load %arg9[%c0_8, %c15, %c0_9] : memref<18x33x128xbf16, #tpu.memory_space<vmem>>, vector<16x16x128xbf16>
    %8 = vector.shape_cast %7 : vector<16x16x128xbf16> to vector<256x128xbf16>
    %c0_10 = arith.constant 0 : index
    %c0_11 = arith.constant 0 : index
    %c0_12 = arith.constant 0 : index
    %c0_13 = arith.constant 0 : index
    %9 = vector.load %arg2[%c0_10, %c0_11, %c0_12, %c0_13] : memref<3x3x128x128xbf16, #tpu.memory_space<vmem>>, vector<1x1x128x128xbf16>
    %10 = vector.shape_cast %9 : vector<1x1x128x128xbf16> to vector<128x128xbf16>
    %cst_14 = arith.constant dense<0.000000e+00> : vector<256x128xf32>
    %11 = tpu.matmul %8, %10, %cst_14 {dimension_numbers = #tpu.dot_dimension_numbers<[1], [0], [0], [1], [0, 0, 1, 1], [], []>} : vector<256x128xbf16>, vector<128x128xbf16>, vector<256x128xf32> -> vector<256x128xf32>
    %12 = arith.addf %6, %11 : vector<256x128xf32>
    %c0_15 = arith.constant 0 : index
    %c16_16 = arith.constant 16 : index
    %c0_17 = arith.constant 0 : index
    %13 = vector.load %arg9[%c0_15, %c16_16, %c0_17] : memref<18x33x128xbf16, #tpu.memory_space<vmem>>, vector<16x16x128xbf16>
    %14 = vector.shape_cast %13 : vector<16x16x128xbf16> to vector<256x128xbf16>
    %c0_18 = arith.constant 0 : index
    %c1_19 = arith.constant 1 : index
    %c0_20 = arith.constant 0 : index
    %c0_21 = arith.constant 0 : index
    %15 = vector.load %arg2[%c0_18, %c1_19, %c0_20, %c0_21] : memref<3x3x128x128xbf16, #tpu.memory_space<vmem>>, vector<1x1x128x128xbf16>
    %16 = vector.shape_cast %15 : vector<1x1x128x128xbf16> to vector<128x128xbf16>
    %cst_22 = arith.constant dense<0.000000e+00> : vector<256x128xf32>
    %17 = tpu.matmul %14, %16, %cst_22 {dimension_numbers = #tpu.dot_dimension_numbers<[1], [0], [0], [1], [0, 0, 1, 1], [], []>} : vector<256x128xbf16>, vector<128x128xbf16>, vector<256x128xf32> -> vector<256x128xf32>
    %18 = arith.addf %12, %17 : vector<256x128xf32>
    %c0_23 = arith.constant 0 : index
    %c17 = arith.constant 17 : index
    %c0_24 = arith.constant 0 : index
    %19 = vector.load %arg9[%c0_23, %c17, %c0_24] : memref<18x33x128xbf16, #tpu.memory_space<vmem>>, vector<16x16x128xbf16>
    %20 = vector.shape_cast %19 : vector<16x16x128xbf16> to vector<256x128xbf16>
    %c0_25 = arith.constant 0 : index
    %c2 = arith.constant 2 : index
    %c0_26 = arith.constant 0 : index
    %c0_27 = arith.constant 0 : index
    %21 = vector.load %arg2[%c0_25, %c2, %c0_26, %c0_27] : memref<3x3x128x128xbf16, #tpu.memory_space<vmem>>, vector<1x1x128x128xbf16>
    %22 = vector.shape_cast %21 : vector<1x1x128x128xbf16> to vector<128x128xbf16>
    %cst_28 = arith.constant dense<0.000000e+00> : vector<256x128xf32>
    %23 = tpu.matmul %20, %22, %cst_28 {dimension_numbers = #tpu.dot_dimension_numbers<[1], [0], [0], [1], [0, 0, 1, 1], [], []>} : vector<256x128xbf16>, vector<128x128xbf16>, vector<256x128xf32> -> vector<256x128xf32>
    %24 = arith.addf %18, %23 : vector<256x128xf32>
    %c1_29 = arith.constant 1 : index
    %c15_30 = arith.constant 15 : index
    %c0_31 = arith.constant 0 : index
    %25 = vector.load %arg9[%c1_29, %c15_30, %c0_31] : memref<18x33x128xbf16, #tpu.memory_space<vmem>>, vector<16x16x128xbf16>
    %26 = vector.shape_cast %25 : vector<16x16x128xbf16> to vector<256x128xbf16>
    %c1_32 = arith.constant 1 : index
    %c0_33 = arith.constant 0 : index
    %c0_34 = arith.constant 0 : index
    %c0_35 = arith.constant 0 : index
    %27 = vector.load %arg2[%c1_32, %c0_33, %c0_34, %c0_35] : memref<3x3x128x128xbf16, #tpu.memory_space<vmem>>, vector<1x1x128x128xbf16>
    %28 = vector.shape_cast %27 : vector<1x1x128x128xbf16> to vector<128x128xbf16>
    %cst_36 = arith.constant dense<0.000000e+00> : vector<256x128xf32>
    %29 = tpu.matmul %26, %28, %cst_36 {dimension_numbers = #tpu.dot_dimension_numbers<[1], [0], [0], [1], [0, 0, 1, 1], [], []>} : vector<256x128xbf16>, vector<128x128xbf16>, vector<256x128xf32> -> vector<256x128xf32>
    %30 = arith.addf %24, %29 : vector<256x128xf32>
    %c1_37 = arith.constant 1 : index
    %c16_38 = arith.constant 16 : index
    %c0_39 = arith.constant 0 : index
    %31 = vector.load %arg9[%c1_37, %c16_38, %c0_39] : memref<18x33x128xbf16, #tpu.memory_space<vmem>>, vector<16x16x128xbf16>
    %32 = vector.shape_cast %31 : vector<16x16x128xbf16> to vector<256x128xbf16>
    %c1_40 = arith.constant 1 : index
    %c1_41 = arith.constant 1 : index
    %c0_42 = arith.constant 0 : index
    %c0_43 = arith.constant 0 : index
    %33 = vector.load %arg2[%c1_40, %c1_41, %c0_42, %c0_43] : memref<3x3x128x128xbf16, #tpu.memory_space<vmem>>, vector<1x1x128x128xbf16>
    %34 = vector.shape_cast %33 : vector<1x1x128x128xbf16> to vector<128x128xbf16>
    %cst_44 = arith.constant dense<0.000000e+00> : vector<256x128xf32>
    %35 = tpu.matmul %32, %34, %cst_44 {dimension_numbers = #tpu.dot_dimension_numbers<[1], [0], [0], [1], [0, 0, 1, 1], [], []>} : vector<256x128xbf16>, vector<128x128xbf16>, vector<256x128xf32> -> vector<256x128xf32>
    %36 = arith.addf %30, %35 : vector<256x128xf32>
    %c1_45 = arith.constant 1 : index
    %c17_46 = arith.constant 17 : index
    %c0_47 = arith.constant 0 : index
    %37 = vector.load %arg9[%c1_45, %c17_46, %c0_47] : memref<18x33x128xbf16, #tpu.memory_space<vmem>>, vector<16x16x128xbf16>
    %38 = vector.shape_cast %37 : vector<16x16x128xbf16> to vector<256x128xbf16>
    %c1_48 = arith.constant 1 : index
    %c2_49 = arith.constant 2 : index
    %c0_50 = arith.constant 0 : index
    %c0_51 = arith.constant 0 : index
    %39 = vector.load %arg2[%c1_48, %c2_49, %c0_50, %c0_51] : memref<3x3x128x128xbf16, #tpu.memory_space<vmem>>, vector<1x1x128x128xbf16>
    %40 = vector.shape_cast %39 : vector<1x1x128x128xbf16> to vector<128x128xbf16>
    %cst_52 = arith.constant dense<0.000000e+00> : vector<256x128xf32>
    %41 = tpu.matmul %38, %40, %cst_52 {dimension_numbers = #tpu.dot_dimension_numbers<[1], [0], [0], [1], [0, 0, 1, 1], [], []>} : vector<256x128xbf16>, vector<128x128xbf16>, vector<256x128xf32> -> vector<256x128xf32>
    %42 = arith.addf %36, %41 : vector<256x128xf32>
    %c2_53 = arith.constant 2 : index
    %c15_54 = arith.constant 15 : index
    %c0_55 = arith.constant 0 : index
    %43 = vector.load %arg9[%c2_53, %c15_54, %c0_55] : memref<18x33x128xbf16, #tpu.memory_space<vmem>>, vector<16x16x128xbf16>
    %44 = vector.shape_cast %43 : vector<16x16x128xbf16> to vector<256x128xbf16>
    %c2_56 = arith.constant 2 : index
    %c0_57 = arith.constant 0 : index
    %c0_58 = arith.constant 0 : index
    %c0_59 = arith.constant 0 : index
    %45 = vector.load %arg2[%c2_56, %c0_57, %c0_58, %c0_59] : memref<3x3x128x128xbf16, #tpu.memory_space<vmem>>, vector<1x1x128x128xbf16>
    %46 = vector.shape_cast %45 : vector<1x1x128x128xbf16> to vector<128x128xbf16>
    %cst_60 = arith.constant dense<0.000000e+00> : vector<256x128xf32>
    %47 = tpu.matmul %44, %46, %cst_60 {dimension_numbers = #tpu.dot_dimension_numbers<[1], [0], [0], [1], [0, 0, 1, 1], [], []>} : vector<256x128xbf16>, vector<128x128xbf16>, vector<256x128xf32> -> vector<256x128xf32>
    %48 = arith.addf %42, %47 : vector<256x128xf32>
    %c2_61 = arith.constant 2 : index
    %c16_62 = arith.constant 16 : index
    %c0_63 = arith.constant 0 : index
    %49 = vector.load %arg9[%c2_61, %c16_62, %c0_63] : memref<18x33x128xbf16, #tpu.memory_space<vmem>>, vector<16x16x128xbf16>
    %50 = vector.shape_cast %49 : vector<16x16x128xbf16> to vector<256x128xbf16>
    %c2_64 = arith.constant 2 : index
    %c1_65 = arith.constant 1 : index
    %c0_66 = arith.constant 0 : index
    %c0_67 = arith.constant 0 : index
    %51 = vector.load %arg2[%c2_64, %c1_65, %c0_66, %c0_67] : memref<3x3x128x128xbf16, #tpu.memory_space<vmem>>, vector<1x1x128x128xbf16>
    %52 = vector.shape_cast %51 : vector<1x1x128x128xbf16> to vector<128x128xbf16>
    %cst_68 = arith.constant dense<0.000000e+00> : vector<256x128xf32>
    %53 = tpu.matmul %50, %52, %cst_68 {dimension_numbers = #tpu.dot_dimension_numbers<[1], [0], [0], [1], [0, 0, 1, 1], [], []>} : vector<256x128xbf16>, vector<128x128xbf16>, vector<256x128xf32> -> vector<256x128xf32>
    %54 = arith.addf %48, %53 : vector<256x128xf32>
    %c2_69 = arith.constant 2 : index
    %c17_70 = arith.constant 17 : index
    %c0_71 = arith.constant 0 : index
    %55 = vector.load %arg9[%c2_69, %c17_70, %c0_71] : memref<18x33x128xbf16, #tpu.memory_space<vmem>>, vector<16x16x128xbf16>
    %56 = vector.shape_cast %55 : vector<16x16x128xbf16> to vector<256x128xbf16>
    %c2_72 = arith.constant 2 : index
    %c2_73 = arith.constant 2 : index
    %c0_74 = arith.constant 0 : index
    %c0_75 = arith.constant 0 : index
    %57 = vector.load %arg2[%c2_72, %c2_73, %c0_74, %c0_75] : memref<3x3x128x128xbf16, #tpu.memory_space<vmem>>, vector<1x1x128x128xbf16>
    %58 = vector.shape_cast %57 : vector<1x1x128x128xbf16> to vector<128x128xbf16>
    %cst_76 = arith.constant dense<0.000000e+00> : vector<256x128xf32>
    %59 = tpu.matmul %56, %58, %cst_76 {dimension_numbers = #tpu.dot_dimension_numbers<[1], [0], [0], [1], [0, 0, 1, 1], [], []>} : vector<256x128xbf16>, vector<128x128xbf16>, vector<256x128xf32> -> vector<256x128xf32>
    %60 = arith.addf %54, %59 : vector<256x128xf32>
    %c0_77 = arith.constant 0 : index
    %c0_78 = arith.constant 0 : index
    %61 = vector.load %arg3[%c0_77, %c0_78] : memref<1x128xf32, #tpu.memory_space<vmem>>, vector<1x128xf32>
    %62 = vector.broadcast %61 : vector<1x128xf32> to vector<256x128xf32>
    %63 = arith.mulf %60, %62 : vector<256x128xf32>
    %c0_79 = arith.constant 0 : index
    %c0_80 = arith.constant 0 : index
    %64 = vector.load %arg4[%c0_79, %c0_80] : memref<1x128xf32, #tpu.memory_space<vmem>>, vector<1x128xf32>
    %65 = vector.broadcast %64 : vector<1x128xf32> to vector<256x128xf32>
    %66 = arith.addf %63, %65 : vector<256x128xf32>
    %67 = arith.negf %66 : vector<256x128xf32>
    %68 = math.exp %67 : vector<256x128xf32>
    %cst_81 = arith.constant 1.000000e+00 : f32
    %69 = vector.broadcast %cst_81 : f32 to vector<256x128xf32>
    %70 = arith.addf %69, %68 : vector<256x128xf32>
    %71 = arith.divf %69, %70 : vector<256x128xf32>
    %72 = arith.mulf %66, %71 : vector<256x128xf32>
    %73 = arith.truncf %72 : vector<256x128xf32> to vector<256x128xbf16>
    %c0_82 = arith.constant 0 : index
    %c0_83 = arith.constant 0 : index
    %74 = vector.load %arg5[%c0_82, %c0_83] : memref<128x128xbf16, #tpu.memory_space<vmem>>, vector<128x128xbf16>
    %cst_84 = arith.constant dense<0.000000e+00> : vector<256x128xf32>
    %75 = tpu.matmul %73, %74, %cst_84 {dimension_numbers = #tpu.dot_dimension_numbers<[1], [0], [0], [1], [0, 0, 1, 1], [], []>} : vector<256x128xbf16>, vector<128x128xbf16>, vector<256x128xf32> -> vector<256x128xf32>
    %c0_85 = arith.constant 0 : index
    %c0_86 = arith.constant 0 : index
    %76 = vector.load %arg6[%c0_85, %c0_86] : memref<1x128xf32, #tpu.memory_space<vmem>>, vector<1x128xf32>
    %77 = vector.broadcast %76 : vector<1x128xf32> to vector<256x128xf32>
    %78 = arith.mulf %75, %77 : vector<256x128xf32>
    %c0_87 = arith.constant 0 : index
    %c0_88 = arith.constant 0 : index
    %79 = vector.load %arg7[%c0_87, %c0_88] : memref<1x128xf32, #tpu.memory_space<vmem>>, vector<1x128xf32>
    %80 = vector.broadcast %79 : vector<1x128xf32> to vector<256x128xf32>
    %81 = arith.addf %78, %80 : vector<256x128xf32>
    %82 = arith.negf %81 : vector<256x128xf32>
    %83 = math.exp %82 : vector<256x128xf32>
    %cst_89 = arith.constant 1.000000e+00 : f32
    %84 = vector.broadcast %cst_89 : f32 to vector<256x128xf32>
    %85 = arith.addf %84, %83 : vector<256x128xf32>
    %86 = arith.divf %84, %85 : vector<256x128xf32>
    %87 = arith.mulf %81, %86 : vector<256x128xf32>
    %88 = vector.shape_cast %87 : vector<256x128xf32> to vector<16x16x128xf32>
    %89 = arith.truncf %88 : vector<16x16x128xf32> to vector<16x16x128xbf16>
    %c0_90 = arith.constant 0 : index
    %c0_91 = arith.constant 0 : index
    %c0_92 = arith.constant 0 : index
    %c0_93 = arith.constant 0 : index
    %90 = vector.load %arg8[%c0_90, %c0_91, %c0_92, %c0_93] : memref<1x16x16x128xbf16, #tpu.memory_space<vmem>>, vector<1x16x16x128xbf16>
    %91 = vector.shape_cast %90 : vector<1x16x16x128xbf16> to vector<16x16x128xbf16>
    %92 = vector.shape_cast %89 : vector<16x16x128xbf16> to vector<1x16x16x128xbf16>
    tpu.vector_store %arg8[%c0_90, %c0_91, %c0_92, %c0_93], %92 {strides = array<i32>} : memref<1x16x16x128xbf16, #tpu.memory_space<vmem>>, vector<1x16x16x128xbf16>,
    return
  }
  func.func @transform_0(%arg0: i32) -> (i32, i32, i32, i32) {
    %c0_i32 = arith.constant 0 : i32
    %c0_i32_0 = arith.constant 0 : i32
    %c0_i32_1 = arith.constant 0 : i32
    %c0_i32_2 = arith.constant 0 : i32
    return %arg0, %c0_i32, %c0_i32_0, %c0_i32_1 : i32, i32, i32, i32
  }
  func.func @transform_1(%arg0: i32) -> (i32, i32, i32, i32) {
    %c0_i32 = arith.constant 0 : i32
    %c0_i32_0 = arith.constant 0 : i32
    %c0_i32_1 = arith.constant 0 : i32
    %c0_i32_2 = arith.constant 0 : i32
    %c0_i32_3 = arith.constant 0 : i32
    return %c0_i32, %c0_i32_0, %c0_i32_1, %c0_i32_2 : i32, i32, i32, i32
  }
  func.func @transform_2(%arg0: i32) -> (i32, i32) {
    %c0_i32 = arith.constant 0 : i32
    %c0_i32_0 = arith.constant 0 : i32
    %c0_i32_1 = arith.constant 0 : i32
    return %c0_i32, %c0_i32_0 : i32, i32
  }
  func.func @transform_3(%arg0: i32) -> (i32, i32) {
    %c0_i32 = arith.constant 0 : i32
    %c0_i32_0 = arith.constant 0 : i32
    %c0_i32_1 = arith.constant 0 : i32
    return %c0_i32, %c0_i32_0 : i32, i32
  }
  func.func @transform_4(%arg0: i32) -> (i32, i32) {
    %c0_i32 = arith.constant 0 : i32
    %c0_i32_0 = arith.constant 0 : i32
    %c0_i32_1 = arith.constant 0 : i32
    return %c0_i32, %c0_i32_0 : i32, i32
  }
  func.func @transform_5(%arg0: i32) -> (i32, i32) {
    %c0_i32 = arith.constant 0 : i32
    %c0_i32_0 = arith.constant 0 : i32
    %c0_i32_1 = arith.constant 0 : i32
    return %c0_i32, %c0_i32_0 : i32, i32
  }
  func.func @transform_6(%arg0: i32) -> (i32, i32) {
    %c0_i32 = arith.constant 0 : i32
    %c0_i32_0 = arith.constant 0 : i32
    %c0_i32_1 = arith.constant 0 : i32
    return %c0_i32, %c0_i32_0 : i32, i32
  }
  func.func @transform_7(%arg0: i32) -> (i32, i32, i32, i32) {
    %c0_i32 = arith.constant 0 : i32
    %c0_i32_0 = arith.constant 0 : i32
    %c0_i32_1 = arith.constant 0 : i32
    %c0_i32_2 = arith.constant 0 : i32
    return %arg0, %c0_i32, %c0_i32_0, %c0_i32_1 : i32, i32, i32, i32
  }
}

</mosaic_0001>

<llo_original>
// kernel: tpu_custom_call.1
$region0: #{tpu_custom_call.1}
  #allocation0 [shape = 'u32[]', space=smem, size = 0x4, offset = 0x4, fixed_abs, tag = 'smem constant byte address 0x4 - core index']
  #allocation1 [shape = 'u32[144,128]{1,0:T(1,128)}', space=vmem, size = 0x12000, scoped, tag = 'internal scratch']
  #allocation2 [shape = 'bf16[18,33,128]{2,1,0:T(8,128)(2,1)}', space=vmem, size = 0x2d000, scoped, tag = 'scratch operand']
  %s0 = inlined_call_operand.hbm [shape: f32[2,16,16,128], index: 0, kind: input, shape index: {}]
  %s1 = inlined_call_operand.hbm [shape: bf16[3,3,128,128], index: 1, kind: input, shape index: {}]
  %s2 = inlined_call_operand.vmem [shape: f32[1,128], index: 2, kind: input, shape index: {}]
  %s3 = inlined_call_operand.vmem [shape: f32[1,128], index: 3, kind: input, shape index: {}]
  %s4 = inlined_call_operand.hbm [shape: bf16[128,128], index: 4, kind: input, shape index: {}]
  %s5 = inlined_call_operand.vmem [shape: f32[1,128], index: 5, kind: input, shape index: {}]
  %s6 = inlined_call_operand.vmem [shape: f32[1,128], index: 6, kind: input, shape index: {}]
  %s7 = inlined_call_operand.hbm [shape: bf16[2,16,16,128], index: 7, kind: output, shape index: {}]
  %s8 = sld [smem:[#allocation0]]
  $region73: #{tpu_custom_call.1} parent=0
    _
  %s10 = ssub.s32 1, %s8
  %s11 = scalar_select 0, %s10, %s8
  $region1: #{tpu_custom_call.1} parent=0
    #allocation3 [shape = 'u8[262144]{0}', space=vmem, size = 0x40000, scoped, tag = 'input window, operand 0']
    #allocation4 [shape = 's32[2]{0}', space=sflag, size = 0x8, scoped, tag = 'scoped memory for tpu_custom_call.1']
    #allocation5 [shape = 's32[2]{0}', space=sflag, size = 0x8, scoped, tag = 'scoped memory for tpu_custom_call.1']
    #allocation6 [shape = 'u8[294912]{0}', space=vmem, size = 0x48000, scoped, tag = 'input window, operand 1, single buffered']
    #allocation7 [shape = 's32[1]{0}', space=sflag, size = 0x4, scoped, tag = 'scoped memory for tpu_custom_call.1']
    #allocation8 [shape = 'u8[32768]{0}', space=vmem, size = 0x8000, scoped, tag = 'input window, operand 4, single buffered']
    #allocation9 [shape = 'u8[131072]{0}', space=vmem, size = 0x20000, scoped, tag = 'output window, operand 0']
    %12 = vsyncpa [#allocation4], 0
    %s13 = scalar_lea.sflag [#allocation4], 1
    %14 = vsyncpa %s13, 0
    %15 = vsyncpa [#allocation7], 0
    %16 = vsyncpa [#allocation5], 0
    %s17 = scalar_lea.sflag [#allocation5], 1
    %18 = vsyncpa %s17, 0
    loop: start=0, step=1, limit=4
    $region2: #{tpu_custom_call.1} parent=1 // loop_pre_header
      _
    $region3: #{tpu_custom_call.1} parent=1 // loop_header
      %s20 = sphi 0, %s24
      %p21 = scmp.ge.s32.totalorder %s20, 4
      %s30 = sphi 0, %s32
      %s33 = sphi 0, %s30
      %s34 = sphi 0, %s33
      %s50 = sphi 0, %s34
      %s54 = sphi 0, %s54
      %s56 = sphi 0, %s54
      %s57 = sphi 0, %s56
      %s71 = sphi 0, %s57
      %s75 = sphi 0, %s75
      %s77 = sphi 0, %s75
      %s78 = sphi 0, %s77
      %s92 = sphi 0, %s78
      %s96 = sphi 0, %s96
      %s98 = sphi 0, %s96
      %s99 = sphi 0, %s98
      %s113 = sphi 0, %s99
      %s117 = sphi 0, %s117
      %s119 = sphi 0, %s117
      %s120 = sphi 0, %s119
      %s134 = sphi 0, %s120
      %s138 = sphi 0, %s138
      %s140 = sphi 0, %s138
      %s141 = sphi 0, %s140
      %s155 = sphi 0, %s141
      %s159 = sphi 0, %s159
      %s161 = sphi 0, %s159
      %s162 = sphi 0, %s161
      %s176 = sphi 0, %s162
      %s182 = sphi 0, %s184
      %s185 = sphi 0, %s182
      %s186 = sphi 0, %s185
      %s202 = sphi 0, %s186
    $region4: #{tpu_custom_call.1} parent=1 // loop_header_branch
      %23 = sbr.rel (%p21) target = $region8
    $region5: #{tpu_custom_call.1} parent=1 // loop_body
      %s25 = ssub.s32 %s20, 1
      %s26 = ssub.s32 %s20, 2
      %s27 = sadd.s32 %s20, 1
      %s28 = ssub.s32 %s20, %s27
      %p29 = scmp.eq.s32.totalorder %s28, 0
      %s31 = sadd.s32 %s30, 1
      %s32 = scalar_select %p29, %s30, %s31
      %p35 = pneg %p29
      %p36 = scmp.eq.s32.totalorder %s20, 1
      %p37 = por %p35, %p36
      %p38 = scmp.ne.s32.totalorder %s30, %s33
      %p39 = scmp.eq.s32.totalorder %s20, 0
      %p40 = por %p38, %p39
      %p41 = scmp.ne.s32.totalorder %s30, %s33
      %p42 = scmp.eq.s32.totalorder %s25, 1
      %p43 = por %p41, %p42
      %p44 = scmp.ne.s32.totalorder %s33, %s34
      %p45 = scmp.eq.s32.totalorder %s25, 0
      %p46 = por %p44, %p45
      %p47 = scmp.ne.s32.totalorder %s33, %s34
      %p48 = scmp.eq.s32.totalorder %s26, 1
      %p49 = por %p47, %p48
      %p51 = scmp.ne.s32.totalorder %s34, %s50
      %p52 = scmp.eq.s32.totalorder %s26, 0
      %p53 = por %p51, %p52
      %s55 = sadd.s32 %s54, 1
      %p58 = scmp.eq.s32.totalorder %s20, 1
      %p59 = scmp.ne.s32.totalorder %s54, %s56
      %p60 = scmp.eq.s32.totalorder %s20, 0
      %p61 = por %p59, %p60
      %p62 = scmp.ne.s32.totalorder %s54, %s56
      %p63 = scmp.eq.s32.totalorder %s25, 1
      %p64 = por %p62, %p63
      %p65 = scmp.ne.s32.totalorder %s56, %s57
      %p66 = scmp.eq.s32.totalorder %s25, 0
      %p67 = por %p65, %p66
      %p68 = scmp.ne.s32.totalorder %s56, %s57
      %p69 = scmp.eq.s32.totalorder %s26, 1
      %p70 = por %p68, %p69
      %p72 = scmp.ne.s32.totalorder %s57, %s71
      %p73 = scmp.eq.s32.totalorder %s26, 0
      %p74 = por %p72, %p73
      %s76 = sadd.s32 %s75, 1
      %p79 = scmp.eq.s32.totalorder %s20, 1
      %p80 = scmp.ne.s32.totalorder %s75, %s77
      %p81 = scmp.eq.s32.totalorder %s20, 0
      %p82 = por %p80, %p81
      %p83 = scmp.ne.s32.totalorder %s75, %s77
      %p84 = scmp.eq.s32.totalorder %s25, 1
      %p85 = por %p83, %p84
      %p86 = scmp.ne.s32.totalorder %s77, %s78
      %p87 = scmp.eq.s32.totalorder %s25, 0
      %p88 = por %p86, %p87
      %p89 = scmp.ne.s32.totalorder %s77, %s78
      %p90 = scmp.eq.s32.totalorder %s26, 1
      %p91 = por %p89, %p90
      %p93 = scmp.ne.s32.totalorder %s78, %s92
      %p94 = scmp.eq.s32.totalorder %s26, 0
      %p95 = por %p93, %p94
      %s97 = sadd.s32 %s96, 1
      %p100 = scmp.eq.s32.totalorder %s20, 1
      %p101 = scmp.ne.s32.totalorder %s96, %s98
      %p102 = scmp.eq.s32.totalorder %s20, 0
      %p103 = por %p101, %p102
      %p104 = scmp.ne.s32.totalorder %s96, %s98
      %p105 = scmp.eq.s32.totalorder %s25, 1
      %p106 = por %p104, %p105
      %p107 = scmp.ne.s32.totalorder %s98, %s99
      %p108 = scmp.eq.s32.totalorder %s25, 0
      %p109 = por %p107, %p108
      %p110 = scmp.ne.s32.totalorder %s98, %s99
      %p111 = scmp.eq.s32.totalorder %s26, 1
      %p112 = por %p110, %p111
      %p114 = scmp.ne.s32.totalorder %s99, %s113
      %p115 = scmp.eq.s32.totalorder %s26, 0
      %p116 = por %p114, %p115
      %s118 = sadd.s32 %s117, 1
      %p121 = scmp.eq.s32.totalorder %s20, 1
      %p122 = scmp.ne.s32.totalorder %s117, %s119
      %p123 = scmp.eq.s32.totalorder %s20, 0
      %p124 = por %p122, %p123
      %p125 = scmp.ne.s32.totalorder %s117, %s119
      %p126 = scmp.eq.s32.totalorder %s25, 1
      %p127 = por %p125, %p126
      %p128 = scmp.ne.s32.totalorder %s119, %s120
      %p129 = scmp.eq.s32.totalorder %s25, 0
      %p130 = por %p128, %p129
      %p131 = scmp.ne.s32.totalorder %s119, %s120
      %p132 = scmp.eq.s32.totalorder %s26, 1
      %p133 = por %p131, %p132
      %p135 = scmp.ne.s32.totalorder %s120, %s134
      %p136 = scmp.eq.s32.totalorder %s26, 0
      %p137 = por %p135, %p136
      %s139 = sadd.s32 %s138, 1
      %p142 = scmp.eq.s32.totalorder %s20, 1
      %p143 = scmp.ne.s32.totalorder %s138, %s140
      %p144 = scmp.eq.s32.totalorder %s20, 0
      %p145 = por %p143, %p144
      %p146 = scmp.ne.s32.totalorder %s138, %s140
      %p147 = scmp.eq.s32.totalorder %s25, 1
      %p148 = por %p146, %p147
      %p149 = scmp.ne.s32.totalorder %s140, %s141
      %p150 = scmp.eq.s32.totalorder %s25, 0
      %p151 = por %p149, %p150
      %p152 = scmp.ne.s32.totalorder %s140, %s141
      %p153 = scmp.eq.s32.totalorder %s26, 1
      %p154 = por %p152, %p153
      %p156 = scmp.ne.s32.totalorder %s141, %s155
      %p157 = scmp.eq.s32.totalorder %s26, 0
      %p158 = por %p156, %p157
      %s160 = sadd.s32 %s159, 1
      %p163 = scmp.eq.s32.totalorder %s20, 1
      %p164 = scmp.ne.s32.totalorder %s159, %s161
      %p165 = scmp.eq.s32.totalorder %s20, 0
      %p166 = por %p164, %p165
      %p167 = scmp.ne.s32.totalorder %s159, %s161
      %p168 = scmp.eq.s32.totalorder %s25, 1
      %p169 = por %p167, %p168
      %p170 = scmp.ne.s32.totalorder %s161, %s162
      %p171 = scmp.eq.s32.totalorder %s25, 0
      %p172 = por %p170, %p171
      %p173 = scmp.ne.s32.totalorder %s161, %s162
      %p174 = scmp.eq.s32.totalorder %s26, 1
      %p175 = por %p173, %p174
      %p177 = scmp.ne.s32.totalorder %s162, %s176
      %p178 = scmp.eq.s32.totalorder %s26, 0
      %p179 = por %p177, %p178
      %s180 = ssub.s32 %s20, %s27
      %p181 = scmp.eq.s32.totalorder %s180, 0
      %s183 = sadd.s32 %s182, 1
      %s184 = scalar_select %p181, %s182, %s183
      %p187 = pneg %p181
      %p188 = scmp.eq.s32.totalorder %s20, 1
      %p189 = por %p187, %p188
      %p190 = scmp.ne.s32.totalorder %s182, %s185
      %p191 = scmp.eq.s32.totalorder %s20, 0
      %p192 = por %p190, %p191
      %p193 = scmp.ne.s32.totalorder %s182, %s185
      %p194 = scmp.eq.s32.totalorder %s25, 1
      %p195 = por %p193, %p194
      %p196 = scmp.ne.s32.totalorder %s185, %s186
      %p197 = scmp.eq.s32.totalorder %s25, 0
      %p198 = por %p196, %p197
      %p199 = scmp.ne.s32.totalorder %s185, %s186
      %p200 = scmp.eq.s32.totalorder %s26, 1
      %p201 = por %p199, %p200
      %p203 = scmp.ne.s32.totalorder %s186, %s202
      %p204 = scmp.eq.s32.totalorder %s26, 0
      %p205 = por %p203, %p204
      %p206 = scmp.le.s32.totalorder 1, %s20
      %p207 = scmp.lt.s32.totalorder %s20, 3
      %p208 = pnand %p206, %p207
      %p209 = pneg %p208
      // Predicated region
      $region9: #{tpu_custom_call.1} parent=5 // pred_check
        _
      $region10: #{tpu_custom_call.1} parent=5 // pred_check_branch
        %211 = sbr.rel (%p208) target = $region12
      $region11: #{tpu_custom_call.1} parent=5 // pred_region
        %s212 = ssub.s32 %s20, 1
        // Predicated region
        $region13: #{tpu_custom_call.1} parent=11 // pred_check
          %p213 = pneg %p67
        $region14: #{tpu_custom_call.1} parent=11 // pred_check_branch
          %215 = sbr.rel (%p213) target = $region16
        $region15: #{tpu_custom_call.1} parent=11 // pred_region
          %s217 = ssub.s32 9216, 9216
          %218 = vsyncadd [#allocation7], %s217
          %s219 = sshll.u32 [#allocation6], 4
          %s220 = int_to_ptr.vmem [resolvable:$true] %s219
          %225 = dma.hbm_to_vmem [thread:$0]  %s1, 9216, %s220, [#allocation7], 64, 64, 4
        $region16: #{tpu_custom_call.1} parent=11 // pred_fallthru
          _
        // Predicated region
        $region17: #{tpu_custom_call.1} parent=11 // pred_check
          %p226 = pneg %p88
        $region18: #{tpu_custom_call.1} parent=11 // pred_check_branch
          %228 = sbr.rel (%p226) target = $region20
        $region19: #{tpu_custom_call.1} parent=11 // pred_region
          _
        $region20: #{tpu_custom_call.1} parent=11 // pred_fallthru
          _
        // Predicated region
        $region21: #{tpu_custom_call.1} parent=11 // pred_check
          %p229 = pneg %p109
        $region22: #{tpu_custom_call.1} parent=11 // pred_check_branch
          %231 = sbr.rel (%p229) target = $region24
        $region23: #{tpu_custom_call.1} parent=11 // pred_region
          _
        $region24: #{tpu_custom_call.1} parent=11 // pred_fallthru
          _
        // Predicated region
        $region25: #{tpu_custom_call.1} parent=11 // pred_check
          %p232 = pneg %p130
        $region26: #{tpu_custom_call.1} parent=11 // pred_check_branch
          %234 = sbr.rel (%p232) target = $region28
        $region27: #{tpu_custom_call.1} parent=11 // pred_region
          %s236 = ssub.s32 1024, 1024
          %237 = vsyncadd [#allocation7], %s236
          %s238 = sshll.u32 [#allocation8], 4
          %s239 = int_to_ptr.vmem [resolvable:$true] %s238
          %244 = dma.hbm_to_vmem [thread:$0]  %s4, 1024, %s239, [#allocation7], 64, 64, 4
        $region28: #{tpu_custom_call.1} parent=11 // pred_fallthru
          _
        // Predicated region
        $region29: #{tpu_custom_call.1} parent=11 // pred_check
          %p245 = pneg %p151
        $region30: #{tpu_custom_call.1} parent=11 // pred_check_branch
          %247 = sbr.rel (%p245) target = $region32
        $region31: #{tpu_custom_call.1} parent=11 // pred_region
          _
        $region32: #{tpu_custom_call.1} parent=11 // pred_fallthru
          _
        // Predicated region
        $region33: #{tpu_custom_call.1} parent=11 // pred_check
          %p248 = pneg %p172
        $region34: #{tpu_custom_call.1} parent=11 // pred_check_branch
          %250 = sbr.rel (%p248) target = $region36
        $region35: #{tpu_custom_call.1} parent=11 // pred_region
          _
        $region36: #{tpu_custom_call.1} parent=11 // pred_fallthru
          _
      $region12: #{tpu_custom_call.1} parent=5 // pred_fallthru
        _
      %p251 = scmp.lt.s32.totalorder %s20, 2
      // Predicated region
      $region37: #{tpu_custom_call.1} parent=5 // pred_check
        %p252 = pneg %p251
      $region38: #{tpu_custom_call.1} parent=5 // pred_check_branch
        %254 = sbr.rel (%p252) target = $region40
      $region39: #{tpu_custom_call.1} parent=5 // pred_region
        // Predicated region
        $region41: #{tpu_custom_call.1} parent=39 // pred_check
          %p255 = pneg %p40
        $region42: #{tpu_custom_call.1} parent=39 // pred_check_branch
          %257 = sbr.rel (%p255) target = $region44
        $region43: #{tpu_custom_call.1} parent=39 // pred_region
          %s258 = sand.u32 %s30, 1
          %s259 = scalar_lea.sflag [#allocation4], %s258
          %s260 = sand.u32 %s30, 1
          %s261 = smul.addr %s260, 256
          %s262 = scalar_lea.vmem [#allocation3], %s261
          %s264 = ssub.s32 4096, 4096
          %265 = vsyncadd %s259, %s264
          %s266 = smul.addr %s20, 32
          %s267 = smul.addr %s266, 128
          %s268 = scalar_lea.hbm %s0, %s267
          %s269 = sshll.u32 %s262, 4
          %s270 = int_to_ptr.vmem [resolvable:$true] %s269
          %275 = dma.hbm_to_vmem [thread:$0]  %s268, 4096, %s270, %s259, 128, 128, 8
        $region44: #{tpu_custom_call.1} parent=39 // pred_fallthru
          _
      $region40: #{tpu_custom_call.1} parent=5 // pred_fallthru
        _
      %p276 = scmp.le.s32.totalorder 1, %s20
      %p277 = scmp.lt.s32.totalorder %s20, 3
      %p278 = pnand %p276, %p277
      %p279 = pneg %p278
      // Predicated region
      $region45: #{tpu_custom_call.1} parent=5 // pred_check
        _
      $region46: #{tpu_custom_call.1} parent=5 // pred_check_branch
        %281 = sbr.rel (%p278) target = $region48
      $region47: #{tpu_custom_call.1} parent=5 // pred_region
        %s282 = ssub.s32 %s20, 1
        %s283 = sand.u32 %s33, 1
        %s284 = scalar_lea.sflag [#allocation4], %s283
        %s285 = sand.u32 %s33, 1
        %s286 = smul.addr %s285, 256
        %s287 = scalar_lea.vmem [#allocation3], %s286
        // Predicated region
        $region49: #{tpu_custom_call.1} parent=47 // pred_check
          %p288 = pneg %p46
        $region50: #{tpu_custom_call.1} parent=47 // pred_check_branch
          %290 = sbr.rel (%p288) target = $region52
        $region51: #{tpu_custom_call.1} parent=47 // pred_region
          %291 = dma.done %s284, 4096
        $region52: #{tpu_custom_call.1} parent=47 // pred_fallthru
          _
        // Predicated region
        $region53: #{tpu_custom_call.1} parent=47 // pred_check
          %p292 = pneg %p67
        $region54: #{tpu_custom_call.1} parent=47 // pred_check_branch
          %294 = sbr.rel (%p292) target = $region56
        $region55: #{tpu_custom_call.1} parent=47 // pred_region
          %295 = dma.done [#allocation7], 9216
        $region56: #{tpu_custom_call.1} parent=47 // pred_fallthru
          _
        // Predicated region
        $region57: #{tpu_custom_call.1} parent=47 // pred_check
          %p296 = pneg %p130
        $region58: #{tpu_custom_call.1} parent=47 // pred_check_branch
          %298 = sbr.rel (%p296) target = $region60
        $region59: #{tpu_custom_call.1} parent=47 // pred_region
          %299 = dma.done [#allocation7], 1024
        $region60: #{tpu_custom_call.1} parent=47 // pred_fallthru
          _
        %s300 = sand.u32 %s33, 1
        %s301 = scalar_lea.sflag [#allocation4], %s300
        %s302 = sand.u32 %s33, 1
        %s303 = smul.addr %s302, 256
        %s304 = scalar_lea.vmem [#allocation3], %s303
        %p305 = pneg %p46
        %p306 = pneg %p43
        %p307 = pneg %p67
        %p308 = pneg %p64
        %p309 = pneg %p88
        %p310 = pneg %p85
        %p311 = pneg %p109
        %p312 = pneg %p106
        %p313 = pneg %p130
        %p314 = pneg %p127
        %p315 = pneg %p151
        %p316 = pneg %p148
        %p317 = pneg %p172
        %p318 = pneg %p169
        %p319 = pneg %p198
        %p320 = pneg %p195
        %s321 = sand.u32 %s185, 1
        %s322 = scalar_lea.sflag [#allocation5], %s321
        %s323 = sand.u32 %s185, 1
        %s324 = smul.addr %s323, 128
        %s325 = scalar_lea.vmem [#allocation9], %s324
        %327 = vst [vmem:[#allocation2] sm:$0xf] 0
        %328 = vst [vmem:[#allocation2 + $0x4] sm:$0xf] 0
        %329 = vst [vmem:[#allocation2 + $0x8] sm:$0xf] 0
        %330 = vst [vmem:[#allocation2 + $0xc] sm:$0xf] 0
        %vm331 = vcmask 1040384
        %vm332 = vsmask.f32 256
        %vm333 = vmand %vm331, %vm332
        %v334 = vld [vmem:[#allocation2 + $0x10] sm:$0x1]
        %v335 = vsel %vm333, 0, %v334
        %336 = vst [vmem:[#allocation2 + $0x10] sm:$0x1] %v335
        %337 = vst [vmem:[#allocation2 + $0x14] sm:$0xf] 0
        %338 = vst [vmem:[#allocation2 + $0x18] sm:$0xf] 0
        %339 = vst [vmem:[#allocation2 + $0x1c] sm:$0xf] 0
        %340 = vst [vmem:[#allocation2 + $0x20] sm:$0xf] 0
        %v341 = vld [vmem:[#allocation2 + $0x24] sm:$0x1]
        %v342 = vsel %vm333, 0, %v341
        %343 = vst [vmem:[#allocation2 + $0x24] sm:$0x1] %v342
        %344 = vst [vmem:[#allocation2 + $0x28] sm:$0xf] 0
        %345 = vst [vmem:[#allocation2 + $0x2c] sm:$0xf] 0
        %346 = vst [vmem:[#allocation2 + $0x30] sm:$0xf] 0
        %347 = vst [vmem:[#allocation2 + $0x34] sm:$0xf] 0
        %v348 = vld [vmem:[#allocation2 + $0x38] sm:$0x1]
        %v349 = vsel %vm333, 0, %v348
        %350 = vst [vmem:[#allocation2 + $0x38] sm:$0x1] %v349
        %351 = vst [vmem:[#allocation2 + $0x3c] sm:$0xf] 0
        %352 = vst [vmem:[#allocation2 + $0x40] sm:$0xf] 0
        %353 = vst [vmem:[#allocation2 + $0x44] sm:$0xf] 0
        %354 = vst [vmem:[#allocation2 + $0x48] sm:$0xf] 0
        %v355 = vld [vmem:[#allocation2 + $0x4c] sm:$0x1]
        %v356 = vsel %vm333, 0, %v355
        %357 = vst [vmem:[#allocation2 + $0x4c] sm:$0x1] %v356
        %358 = vst [vmem:[#allocation2 + $0x50] sm:$0xf] 0
        %359 = vst [vmem:[#allocation2 + $0x54] sm:$0xf] 0
        %360 = vst [vmem:[#allocation2 + $0x58] sm:$0xf] 0
        %361 = vst [vmem:[#allocation2 + $0x5c] sm:$0xf] 0
        %v362 = vld [vmem:[#allocation2 + $0x60] sm:$0x1]
        %v363 = vsel %vm333, 0, %v362
        %364 = vst [vmem:[#allocation2 + $0x60] sm:$0x1] %v363
        %365 = vst [vmem:[#allocation2 + $0x64] sm:$0xf] 0
        %366 = vst [vmem:[#allocation2 + $0x68] sm:$0xf] 0
        %367 = vst [vmem:[#allocation2 + $0x6c] sm:$0xf] 0
        %368 = vst [vmem:[#allocation2 + $0x70] sm:$0xf] 0
        %v369 = vld [vmem:[#allocation2 + $0x74] sm:$0x1]
        %v370 = vsel %vm333, 0, %v369
        %371 = vst [vmem:[#allocation2 + $0x74] sm:$0x1] %v370
        %372 = vst [vmem:[#allocation2 + $0x78] sm:$0xf] 0
        %373 = vst [vmem:[#allocation2 + $0x7c] sm:$0xf] 0
        %374 = vst [vmem:[#allocation2 + $0x80] sm:$0xf] 0
        %375 = vst [vmem:[#allocation2 + $0x84] sm:$0xf] 0
        %v376 = vld [vmem:[#allocation2 + $0x88] sm:$0x1]
        %v377 = vsel %vm333, 0, %v376
        %378 = vst [vmem:[#allocation2 + $0x88] sm:$0x1] %v377
        %379 = vst [vmem:[#allocation2 + $0x8c] sm:$0xf] 0
        %380 = vst [vmem:[#allocation2 + $0x90] sm:$0xf] 0
        %381 = vst [vmem:[#allocation2 + $0x94] sm:$0xf] 0
        %382 = vst [vmem:[#allocation2 + $0x98] sm:$0xf] 0
        %v383 = vld [vmem:[#allocation2 + $0x9c] sm:$0x1]
        %v384 = vsel %vm333, 0, %v383
        %385 = vst [vmem:[#allocation2 + $0x9c] sm:$0x1] %v384
        %386 = vst [vmem:[#allocation2 + $0xa0] sm:$0xf] 0
        %387 = vst [vmem:[#allocation2 + $0xa4] sm:$0xf] 0
        %388 = vst [vmem:[#allocation2 + $0xa8] sm:$0xf] 0
        %389 = vst [vmem:[#allocation2 + $0xac] sm:$0xf] 0
        %v390 = vld [vmem:[#allocation2 + $0xb0] sm:$0x1]
        %v391 = vsel %vm333, 0, %v390
        %392 = vst [vmem:[#allocation2 + $0xb0] sm:$0x1] %v391
        %393 = vst [vmem:[#allocation2 + $0xb4] sm:$0xf] 0
        %394 = vst [vmem:[#allocation2 + $0xb8] sm:$0xf] 0
        %395 = vst [vmem:[#allocation2 + $0xbc] sm:$0xf] 0
        %396 = vst [vmem:[#allocation2 + $0xc0] sm:$0xf] 0
        %v397 = vld [vmem:[#allocation2 + $0xc4] sm:$0x1]
        %v398 = vsel %vm333, 0, %v397
        %399 = vst [vmem:[#allocation2 + $0xc4] sm:$0x1] %v398
        %400 = vst [vmem:[#allocation2 + $0xc8] sm:$0xf] 0
        %401 = vst [vmem:[#allocation2 + $0xcc] sm:$0xf] 0
        %402 = vst [vmem:[#allocation2 + $0xd0] sm:$0xf] 0
        %403 = vst [vmem:[#allocation2 + $0xd4] sm:$0xf] 0
        %v404 = vld [vmem:[#allocation2 + $0xd8] sm:$0x1]
        %v405 = vsel %vm333, 0, %v404
        %406 = vst [vmem:[#allocation2 + $0xd8] sm:$0x1] %v405
        %407 = vst [vmem:[#allocation2 + $0xdc] sm:$0xf] 0
        %408 = vst [vmem:[#allocation2 + $0xe0] sm:$0xf] 0
        %409 = vst [vmem:[#allocation2 + $0xe4] sm:$0xf] 0
        %410 = vst [vmem:[#allocation2 + $0xe8] sm:$0xf] 0
        %v411 = vld [vmem:[#allocation2 + $0xec] sm:$0x1]
        %v412 = vsel %vm333, 0, %v411
        %413 = vst [vmem:[#allocation2 + $0xec] sm:$0x1] %v412
        %414 = vst [vmem:[#allocation2 + $0xf0] sm:$0xf] 0
        %415 = vst [vmem:[#allocation2 + $0xf4] sm:$0xf] 0
        %416 = vst [vmem:[#allocation2 + $0xf8] sm:$0xf] 0
        %417 = vst [vmem:[#allocation2 + $0xfc] sm:$0xf] 0
        %v418 = vld [vmem:[#allocation2 + $0x100] sm:$0x1]
        %v419 = vsel %vm333, 0, %v418
        %420 = vst [vmem:[#allocation2 + $0x100] sm:$0x1] %v419
        %421 = vst [vmem:[#allocation2 + $0x104] sm:$0xf] 0
        %422 = vst [vmem:[#allocation2 + $0x108] sm:$0xf] 0
        %423 = vst [vmem:[#allocation2 + $0x10c] sm:$0xf] 0
        %424 = vst [vmem:[#allocation2 + $0x110] sm:$0xf] 0
        %v425 = vld [vmem:[#allocation2 + $0x114] sm:$0x1]
        %v426 = vsel %vm333, 0, %v425
        %427 = vst [vmem:[#allocation2 + $0x114] sm:$0x1] %v426
        %428 = vst [vmem:[#allocation2 + $0x118] sm:$0xf] 0
        %429 = vst [vmem:[#allocation2 + $0x11c] sm:$0xf] 0
        %430 = vst [vmem:[#allocation2 + $0x120] sm:$0xf] 0
        %431 = vst [vmem:[#allocation2 + $0x124] sm:$0xf] 0
        %v432 = vld [vmem:[#allocation2 + $0x128] sm:$0x1]
        %v433 = vsel %vm333, 0, %v432
        %434 = vst [vmem:[#allocation2 + $0x128] sm:$0x1] %v433
        %435 = vst [vmem:[#allocation2 + $0x12c] sm:$0xf] 0
        %436 = vst [vmem:[#allocation2 + $0x130] sm:$0xf] 0
        %437 = vst [vmem:[#allocation2 + $0x134] sm:$0xf] 0
        %438 = vst [vmem:[#allocation2 + $0x138] sm:$0xf] 0
        %v439 = vld [vmem:[#allocation2 + $0x13c] sm:$0x1]
        %v440 = vsel %vm333, 0, %v439
        %441 = vst [vmem:[#allocation2 + $0x13c] sm:$0x1] %v440
        %442 = vst [vmem:[#allocation2 + $0x140] sm:$0xf] 0
        %443 = vst [vmem:[#allocation2 + $0x144] sm:$0xf] 0
        %444 = vst [vmem:[#allocation2 + $0x148] sm:$0xf] 0
        %445 = vst [vmem:[#allocation2 + $0x14c] sm:$0xf] 0
        %v446 = vld [vmem:[#allocation2 + $0x150] sm:$0x1]
        %v447 = vsel %vm333, 0, %v446
        %448 = vst [vmem:[#allocation2 + $0x150] sm:$0x1] %v447
        %449 = vst [vmem:[#allocation2 + $0x154] sm:$0xf] 0
        %450 = vst [vmem:[#allocation2 + $0x158] sm:$0xf] 0
        %451 = vst [vmem:[#allocation2 + $0x15c] sm:$0xf] 0
        %452 = vst [vmem:[#allocation2 + $0x160] sm:$0xf] 0
        %v453 = vld [vmem:[#allocation2 + $0x164] sm:$0x1]
        %v454 = vsel %vm333, 0, %v453
        %455 = vst [vmem:[#allocation2 + $0x164] sm:$0x1] %v454
        %v456 = vld [vmem:[%s287] sm:$0xff]
        %v457 = vld [vmem:[%s287 + $0x8] sm:$0xff]
        %v458 = vld [vmem:[%s287 + $0x10] sm:$0xff]
        %v459 = vld [vmem:[%s287 + $0x18] sm:$0xff]
        %v460 = vld [vmem:[%s287 + $0x20] sm:$0xff]
        %v461 = vld [vmem:[%s287 + $0x28] sm:$0xff]
        %v462 = vld [vmem:[%s287 + $0x30] sm:$0xff]
        %v463 = vld [vmem:[%s287 + $0x38] sm:$0xff]
        %v464 = vld [vmem:[%s287 + $0x40] sm:$0xff]
        %v465 = vld [vmem:[%s287 + $0x48] sm:$0xff]
        %v466 = vld [vmem:[%s287 + $0x50] sm:$0xff]
        %v467 = vld [vmem:[%s287 + $0x58] sm:$0xff]
        %v468 = vld [vmem:[%s287 + $0x60] sm:$0xff]
        %v469 = vld [vmem:[%s287 + $0x68] sm:$0xff]
        %v470 = vld [vmem:[%s287 + $0x70] sm:$0xff]
        %v471 = vld [vmem:[%s287 + $0x78] sm:$0xff]
        %v472 = vld [vmem:[%s287 + $0x80] sm:$0xff]
        %v473 = vld [vmem:[%s287 + $0x88] sm:$0xff]
        %v474 = vld [vmem:[%s287 + $0x90] sm:$0xff]
        %v475 = vld [vmem:[%s287 + $0x98] sm:$0xff]
        %v476 = vld [vmem:[%s287 + $0xa0] sm:$0xff]
        %v477 = vld [vmem:[%s287 + $0xa8] sm:$0xff]
        %v478 = vld [vmem:[%s287 + $0xb0] sm:$0xff]
        %v479 = vld [vmem:[%s287 + $0xb8] sm:$0xff]
        %v480 = vld [vmem:[%s287 + $0xc0] sm:$0xff]
        %v481 = vld [vmem:[%s287 + $0xc8] sm:$0xff]
        %v482 = vld [vmem:[%s287 + $0xd0] sm:$0xff]
        %v483 = vld [vmem:[%s287 + $0xd8] sm:$0xff]
        %v484 = vld [vmem:[%s287 + $0xe0] sm:$0xff]
        %v485 = vld [vmem:[%s287 + $0xe8] sm:$0xff]
        %v486 = vld [vmem:[%s287 + $0xf0] sm:$0xff]
        %v487 = vld [vmem:[%s287 + $0xf8] sm:$0xff]
        %v488 = vpack.c.bf16 %v457, %v456
        %v489 = vpack.c.bf16 %v459, %v458
        %v490 = vpack.c.bf16 %v461, %v460
        %v491 = vpack.c.bf16 %v463, %v462
        %v492 = vpack.c.bf16 %v465, %v464
        %v493 = vpack.c.bf16 %v467, %v466
        %v494 = vpack.c.bf16 %v469, %v468
        %v495 = vpack.c.bf16 %v471, %v470
        %v496 = vpack.c.bf16 %v473, %v472
        %v497 = vpack.c.bf16 %v475, %v474
        %v498 = vpack.c.bf16 %v477, %v476
        %v499 = vpack.c.bf16 %v479, %v478
        %v500 = vpack.c.bf16 %v481, %v480
        %v501 = vpack.c.bf16 %v483, %v482
        %v502 = vpack.c.bf16 %v485, %v484
        %v503 = vpack.c.bf16 %v487, %v486
        %v520 = vunpack.c.l.b16 %v488
        %v521 = vunpack.c.h.b16 %v488
        %v522 = vunpack.c.l.b16 %v489
        %v523 = vunpack.c.h.b16 %v489
        %v524 = vunpack.c.l.b16 %v490
        %v525 = vunpack.c.h.b16 %v490
        %v526 = vunpack.c.l.b16 %v491
        %v527 = vunpack.c.h.b16 %v491
        %v528 = vunpack.c.l.b16 %v492
        %v529 = vunpack.c.h.b16 %v492
        %v530 = vunpack.c.l.b16 %v493
        %v531 = vunpack.c.h.b16 %v493
        %v532 = vunpack.c.l.b16 %v494
        %v533 = vunpack.c.h.b16 %v494
        %v534 = vunpack.c.l.b16 %v495
        %v535 = vunpack.c.h.b16 %v495
        %v536 = vunpack.c.l.b16 %v496
        %v537 = vunpack.c.h.b16 %v496
        %v538 = vunpack.c.l.b16 %v497
        %v539 = vunpack.c.h.b16 %v497
        %v540 = vunpack.c.l.b16 %v498
        %v541 = vunpack.c.h.b16 %v498
        %v542 = vunpack.c.l.b16 %v499
        %v543 = vunpack.c.h.b16 %v499
        %v544 = vunpack.c.l.b16 %v500
        %v545 = vunpack.c.h.b16 %v500
        %v546 = vunpack.c.l.b16 %v501
        %v547 = vunpack.c.h.b16 %v501
        %v548 = vunpack.c.l.b16 %v502
        %v549 = vunpack.c.h.b16 %v502
        %v550 = vunpack.c.l.b16 %v503
        %v551 = vunpack.c.h.b16 %v503
        %v552 = vpack.c.b16 %v520, %v520
        %v553 = vpack.c.b16 %v521, %v521
        %v554 = vpack.c.b16 %v522, %v522
        %v555 = vpack.c.b16 %v523, %v523
        %v556 = vpack.c.b16 %v524, %v524
        %v557 = vpack.c.b16 %v525, %v525
        %v558 = vpack.c.b16 %v526, %v526
        %v559 = vpack.c.b16 %v527, %v527
        %v560 = vpack.c.b16 %v528, %v528
        %v561 = vpack.c.b16 %v529, %v529
        %v562 = vpack.c.b16 %v530, %v530
        %v563 = vpack.c.b16 %v531, %v531
        %v564 = vpack.c.b16 %v532, %v532
        %v565 = vpack.c.b16 %v533, %v533
        %v566 = vpack.c.b16 %v534, %v534
        %v567 = vpack.c.b16 %v535, %v535
        %v568 = vpack.c.b16 %v536, %v536
        %v569 = vpack.c.b16 %v537, %v537
        %v570 = vpack.c.b16 %v538, %v538
        %v571 = vpack.c.b16 %v539, %v539
        %v572 = vpack.c.b16 %v540, %v540
        %v573 = vpack.c.b16 %v541, %v541
        %v574 = vpack.c.b16 %v542, %v542
        %v575 = vpack.c.b16 %v543, %v543
        %v576 = vpack.c.b16 %v544, %v544
        %v577 = vpack.c.b16 %v545, %v545
        %v578 = vpack.c.b16 %v546, %v546
        %v579 = vpack.c.b16 %v547, %v547
        %v580 = vpack.c.b16 %v548, %v548
        %v581 = vpack.c.b16 %v549, %v549
        %v582 = vpack.c.b16 %v550, %v550
        %v583 = vpack.c.b16 %v551, %v551
        %s616 = scalar_lea.vmem [#allocation2], 20
        %617 = vst [vmem:[%s616 + $0x8] sm:$0xf] %v552
        %618 = vst [vmem:[%s616 + $0xc] sm:$0xf] %v553
        %619 = vst [vmem:[%s616 + $0x1c] sm:$0xf] %v554
        %620 = vst [vmem:[%s616 + $0x20] sm:$0xf] %v555
        %621 = vst [vmem:[%s616 + $0x30] sm:$0xf] %v556
        %622 = vst [vmem:[%s616 + $0x34] sm:$0xf] %v557
        %623 = vst [vmem:[%s616 + $0x44] sm:$0xf] %v558
        %624 = vst [vmem:[%s616 + $0x48] sm:$0xf] %v559
        %625 = vst [vmem:[%s616 + $0x58] sm:$0xf] %v560
        %626 = vst [vmem:[%s616 + $0x5c] sm:$0xf] %v561
        %627 = vst [vmem:[%s616 + $0x6c] sm:$0xf] %v562
        %628 = vst [vmem:[%s616 + $0x70] sm:$0xf] %v563
        %629 = vst [vmem:[%s616 + $0x80] sm:$0xf] %v564
        %630 = vst [vmem:[%s616 + $0x84] sm:$0xf] %v565
        %631 = vst [vmem:[%s616 + $0x94] sm:$0xf] %v566
        %632 = vst [vmem:[%s616 + $0x98] sm:$0xf] %v567
        %633 = vst [vmem:[%s616 + $0xa8] sm:$0xf] %v568
        %634 = vst [vmem:[%s616 + $0xac] sm:$0xf] %v569
        %635 = vst [vmem:[%s616 + $0xbc] sm:$0xf] %v570
        %636 = vst [vmem:[%s616 + $0xc0] sm:$0xf] %v571
        %637 = vst [vmem:[%s616 + $0xd0] sm:$0xf] %v572
        %638 = vst [vmem:[%s616 + $0xd4] sm:$0xf] %v573
        %639 = vst [vmem:[%s616 + $0xe4] sm:$0xf] %v574
        %640 = vst [vmem:[%s616 + $0xe8] sm:$0xf] %v575
        %641 = vst [vmem:[%s616 + $0xf8] sm:$0xf] %v576
        %642 = vst [vmem:[%s616 + $0xfc] sm:$0xf] %v577
        %643 = vst [vmem:[%s616 + $0x10c] sm:$0xf] %v578
        %644 = vst [vmem:[%s616 + $0x110] sm:$0xf] %v579
        %645 = vst [vmem:[%s616 + $0x120] sm:$0xf] %v580
        %646 = vst [vmem:[%s616 + $0x124] sm:$0xf] %v581
        %647 = vst [vmem:[%s616 + $0x134] sm:$0xf] %v582
        %648 = vst [vmem:[%s616 + $0x138] sm:$0xf] %v583
        %v649 = vld [vmem:[#allocation2 + $0x4] sm:$0x8]
        %v650 = vld [vmem:[#allocation2 + $0x8] sm:$0xf]
        %v651 = vld [vmem:[#allocation2 + $0xc] sm:$0xf]
        %v652 = vld [vmem:[#allocation2 + $0x18] sm:$0x8]
        %v653 = vld [vmem:[#allocation2 + $0x1c] sm:$0xf]
        %v654 = vld [vmem:[#allocation2 + $0x20] sm:$0xf]
        %v655 = vld [vmem:[#allocation2 + $0x2c] sm:$0x8]
        %v656 = vld [vmem:[#allocation2 + $0x30] sm:$0xf]
        %v657 = vld [vmem:[#allocation2 + $0x34] sm:$0xf]
        %v658 = vld [vmem:[#allocation2 + $0x40] sm:$0x8]
        %v659 = vld [vmem:[#allocation2 + $0x44] sm:$0xf]
        %v660 = vld [vmem:[#allocation2 + $0x48] sm:$0xf]
        %v661 = vld [vmem:[#allocation2 + $0x54] sm:$0x8]
        %v662 = vld [vmem:[#allocation2 + $0x58] sm:$0xf]
        %v663 = vld [vmem:[#allocation2 + $0x5c] sm:$0xf]
        %v664 = vld [vmem:[#allocation2 + $0x68] sm:$0x8]
        %v665 = vld [vmem:[#allocation2 + $0x6c] sm:$0xf]
        %v666 = vld [vmem:[#allocation2 + $0x70] sm:$0xf]
        %v667 = vld [vmem:[#allocation2 + $0x7c] sm:$0x8]
        %v668 = vld [vmem:[#allocation2 + $0x80] sm:$0xf]
        %v669 = vld [vmem:[#allocation2 + $0x84] sm:$0xf]
        %v670 = vld [vmem:[#allocation2 + $0x90] sm:$0x8]
        %v671 = vld [vmem:[#allocation2 + $0x94] sm:$0xf]
        %v672 = vld [vmem:[#allocation2 + $0x98] sm:$0xf]
        %v673 = vld [vmem:[#allocation2 + $0xa4] sm:$0x8]
        %v674 = vld [vmem:[#allocation2 + $0xa8] sm:$0xf]
        %v675 = vld [vmem:[#allocation2 + $0xac] sm:$0xf]
        %v676 = vld [vmem:[#allocation2 + $0xb8] sm:$0x8]
        %v677 = vld [vmem:[#allocation2 + $0xbc] sm:$0xf]
        %v678 = vld [vmem:[#allocation2 + $0xc0] sm:$0xf]
        %v679 = vld [vmem:[#allocation2 + $0xcc] sm:$0x8]
        %v680 = vld [vmem:[#allocation2 + $0xd0] sm:$0xf]
        %v681 = vld [vmem:[#allocation2 + $0xd4] sm:$0xf]
        %v682 = vld [vmem:[#allocation2 + $0xe0] sm:$0x8]
        %v683 = vld [vmem:[#allocation2 + $0xe4] sm:$0xf]
        %v684 = vld [vmem:[#allocation2 + $0xe8] sm:$0xf]
        %v685 = vld [vmem:[#allocation2 + $0xf4] sm:$0x8]
        %v686 = vld [vmem:[#allocation2 + $0xf8] sm:$0xf]
        %v687 = vld [vmem:[#allocation2 + $0xfc] sm:$0xf]
        %v688 = vld [vmem:[#allocation2 + $0x108] sm:$0x8]
        %v689 = vld [vmem:[#allocation2 + $0x10c] sm:$0xf]
        %v690 = vld [vmem:[#allocation2 + $0x110] sm:$0xf]
        %v691 = vld [vmem:[#allocation2 + $0x11c] sm:$0x8]
        %v692 = vld [vmem:[#allocation2 + $0x120] sm:$0xf]
        %v693 = vld [vmem:[#allocation2 + $0x124] sm:$0xf]
        %v694 = vld [vmem:[#allocation2 + $0x130] sm:$0x8]
        %v695 = vld [vmem:[#allocation2 + $0x134] sm:$0xf]
        %v696 = vld [vmem:[#allocation2 + $0x138] sm:$0xf]
        %vm697 = vsmask.f32 4368
        %vm698 = vmor %vm332, %vm697
        %v700 = vshrl.u32 %v649, 16
        %v702 = vrot.slane %v700, 7
        %v703 = vrot.slane %v702, 4
        %v705 = vshrl.u32 %v650, 16
        %v707 = vrot.slane %v705, 7
        %v708 = vshll.u32 %v650, 16
        %v710 = vor.u32 %v707, %v708
        %v711 = vsel %vm698, %v703, %v710
        %v712 = vrot.slane %v707, 4
        %v714 = vshrl.u32 %v651, 16
        %v716 = vrot.slane %v714, 7
        %v717 = vshll.u32 %v651, 16
        %v719 = vor.u32 %v716, %v717
        %v720 = vsel %vm698, %v712, %v719
        %v722 = vshrl.u32 %v652, 16
        %v724 = vrot.slane %v722, 7
        %v725 = vrot.slane %v724, 4
        %v727 = vshrl.u32 %v653, 16
        %v729 = vrot.slane %v727, 7
        %v730 = vshll.u32 %v653, 16
        %v732 = vor.u32 %v729, %v730
        %v733 = vsel %vm698, %v725, %v732
        %v734 = vrot.slane %v729, 4
        %v736 = vshrl.u32 %v654, 16
        %v738 = vrot.slane %v736, 7
        %v739 = vshll.u32 %v654, 16
        %v741 = vor.u32 %v738, %v739
        %v742 = vsel %vm698, %v734, %v741
        %v744 = vshrl.u32 %v655, 16
        %v746 = vrot.slane %v744, 7
        %v747 = vrot.slane %v746, 4
        %v749 = vshrl.u32 %v656, 16
        %v751 = vrot.slane %v749, 7
        %v752 = vshll.u32 %v656, 16
        %v754 = vor.u32 %v751, %v752
        %v755 = vsel %vm698, %v747, %v754
        %v756 = vrot.slane %v751, 4
        %v758 = vshrl.u32 %v657, 16
        %v760 = vrot.slane %v758, 7
        %v761 = vshll.u32 %v657, 16
        %v763 = vor.u32 %v760, %v761
        %v764 = vsel %vm698, %v756, %v763
        %v766 = vshrl.u32 %v658, 16
        %v768 = vrot.slane %v766, 7
        %v769 = vrot.slane %v768, 4
        %v771 = vshrl.u32 %v659, 16
        %v773 = vrot.slane %v771, 7
        %v774 = vshll.u32 %v659, 16
        %v776 = vor.u32 %v773, %v774
        %v777 = vsel %vm698, %v769, %v776
        %v778 = vrot.slane %v773, 4
        %v780 = vshrl.u32 %v660, 16
        %v782 = vrot.slane %v780, 7
        %v783 = vshll.u32 %v660, 16
        %v785 = vor.u32 %v782, %v783
        %v786 = vsel %vm698, %v778, %v785
        %v788 = vshrl.u32 %v661, 16
        %v790 = vrot.slane %v788, 7
        %v791 = vrot.slane %v790, 4
        %v793 = vshrl.u32 %v662, 16
        %v795 = vrot.slane %v793, 7
        %v796 = vshll.u32 %v662, 16
        %v798 = vor.u32 %v795, %v796
        %v799 = vsel %vm698, %v791, %v798
        %v800 = vrot.slane %v795, 4
        %v802 = vshrl.u32 %v663, 16
        %v804 = vrot.slane %v802, 7
        %v805 = vshll.u32 %v663, 16
        %v807 = vor.u32 %v804, %v805
        %v808 = vsel %vm698, %v800, %v807
        %v810 = vshrl.u32 %v664, 16
        %v812 = vrot.slane %v810, 7
        %v813 = vrot.slane %v812, 4
        %v815 = vshrl.u32 %v665, 16
        %v817 = vrot.slane %v815, 7
        %v818 = vshll.u32 %v665, 16
        %v820 = vor.u32 %v817, %v818
        %v821 = vsel %vm698, %v813, %v820
        %v822 = vrot.slane %v817, 4
        %v824 = vshrl.u32 %v666, 16
        %v826 = vrot.slane %v824, 7
        %v827 = vshll.u32 %v666, 16
        %v829 = vor.u32 %v826, %v827
        %v830 = vsel %vm698, %v822, %v829
        %v832 = vshrl.u32 %v667, 16
        %v834 = vrot.slane %v832, 7
        %v835 = vrot.slane %v834, 4
        %v837 = vshrl.u32 %v668, 16
        %v839 = vrot.slane %v837, 7
        %v840 = vshll.u32 %v668, 16
        %v842 = vor.u32 %v839, %v840
        %v843 = vsel %vm698, %v835, %v842
        %v844 = vrot.slane %v839, 4
        %v846 = vshrl.u32 %v669, 16
        %v848 = vrot.slane %v846, 7
        %v849 = vshll.u32 %v669, 16
        %v851 = vor.u32 %v848, %v849
        %v852 = vsel %vm698, %v844, %v851
        %v854 = vshrl.u32 %v670, 16
        %v856 = vrot.slane %v854, 7
        %v857 = vrot.slane %v856, 4
        %v859 = vshrl.u32 %v671, 16
        %v861 = vrot.slane %v859, 7
        %v862 = vshll.u32 %v671, 16
        %v864 = vor.u32 %v861, %v862
        %v865 = vsel %vm698, %v857, %v864
        %v866 = vrot.slane %v861, 4
        %v868 = vshrl.u32 %v672, 16
        %v870 = vrot.slane %v868, 7
        %v871 = vshll.u32 %v672, 16
        %v873 = vor.u32 %v870, %v871
        %v874 = vsel %vm698, %v866, %v873
        %v876 = vshrl.u32 %v673, 16
        %v878 = vrot.slane %v876, 7
        %v879 = vrot.slane %v878, 4
        %v881 = vshrl.u32 %v674, 16
        %v883 = vrot.slane %v881, 7
        %v884 = vshll.u32 %v674, 16
        %v886 = vor.u32 %v883, %v884
        %v887 = vsel %vm698, %v879, %v886
        %v888 = vrot.slane %v883, 4
        %v890 = vshrl.u32 %v675, 16
        %v892 = vrot.slane %v890, 7
        %v893 = vshll.u32 %v675, 16
        %v895 = vor.u32 %v892, %v893
        %v896 = vsel %vm698, %v888, %v895
        %v898 = vshrl.u32 %v676, 16
        %v900 = vrot.slane %v898, 7
        %v901 = vrot.slane %v900, 4
        %v903 = vshrl.u32 %v677, 16
        %v905 = vrot.slane %v903, 7
        %v906 = vshll.u32 %v677, 16
        %v908 = vor.u32 %v905, %v906
        %v909 = vsel %vm698, %v901, %v908
        %v910 = vrot.slane %v905, 4
        %v912 = vshrl.u32 %v678, 16
        %v914 = vrot.slane %v912, 7
        %v915 = vshll.u32 %v678, 16
        %v917 = vor.u32 %v914, %v915
        %v918 = vsel %vm698, %v910, %v917
        %v920 = vshrl.u32 %v679, 16
        %v922 = vrot.slane %v920, 7
        %v923 = vrot.slane %v922, 4
        %v925 = vshrl.u32 %v680, 16
        %v927 = vrot.slane %v925, 7
        %v928 = vshll.u32 %v680, 16
        %v930 = vor.u32 %v927, %v928
        %v931 = vsel %vm698, %v923, %v930
        %v932 = vrot.slane %v927, 4
        %v934 = vshrl.u32 %v681, 16
        %v936 = vrot.slane %v934, 7
        %v937 = vshll.u32 %v681, 16
        %v939 = vor.u32 %v936, %v937
        %v940 = vsel %vm698, %v932, %v939
        %v942 = vshrl.u32 %v682, 16
        %v944 = vrot.slane %v942, 7
        %v945 = vrot.slane %v944, 4
        %v947 = vshrl.u32 %v683, 16
        %v949 = vrot.slane %v947, 7
        %v950 = vshll.u32 %v683, 16
        %v952 = vor.u32 %v949, %v950
        %v953 = vsel %vm698, %v945, %v952
        %v954 = vrot.slane %v949, 4
        %v956 = vshrl.u32 %v684, 16
        %v958 = vrot.slane %v956, 7
        %v959 = vshll.u32 %v684, 16
        %v961 = vor.u32 %v958, %v959
        %v962 = vsel %vm698, %v954, %v961
        %v964 = vshrl.u32 %v685, 16
        %v966 = vrot.slane %v964, 7
        %v967 = vrot.slane %v966, 4
        %v969 = vshrl.u32 %v686, 16
        %v971 = vrot.slane %v969, 7
        %v972 = vshll.u32 %v686, 16
        %v974 = vor.u32 %v971, %v972
        %v975 = vsel %vm698, %v967, %v974
        %v976 = vrot.slane %v971, 4
        %v978 = vshrl.u32 %v687, 16
        %v980 = vrot.slane %v978, 7
        %v981 = vshll.u32 %v687, 16
        %v983 = vor.u32 %v980, %v981
        %v984 = vsel %vm698, %v976, %v983
        %v986 = vshrl.u32 %v688, 16
        %v988 = vrot.slane %v986, 7
        %v989 = vrot.slane %v988, 4
        %v991 = vshrl.u32 %v689, 16
        %v993 = vrot.slane %v991, 7
        %v994 = vshll.u32 %v689, 16
        %v996 = vor.u32 %v993, %v994
        %v997 = vsel %vm698, %v989, %v996
        %v998 = vrot.slane %v993, 4
        %v1000 = vshrl.u32 %v690, 16
        %v1002 = vrot.slane %v1000, 7
        %v1003 = vshll.u32 %v690, 16
        %v1005 = vor.u32 %v1002, %v1003
        %v1006 = vsel %vm698, %v998, %v1005
        %v1008 = vshrl.u32 %v691, 16
        %v1010 = vrot.slane %v1008, 7
        %v1011 = vrot.slane %v1010, 4
        %v1013 = vshrl.u32 %v692, 16
        %v1015 = vrot.slane %v1013, 7
        %v1016 = vshll.u32 %v692, 16
        %v1018 = vor.u32 %v1015, %v1016
        %v1019 = vsel %vm698, %v1011, %v1018
        %v1020 = vrot.slane %v1015, 4
        %v1022 = vshrl.u32 %v693, 16
        %v1024 = vrot.slane %v1022, 7
        %v1025 = vshll.u32 %v693, 16
        %v1027 = vor.u32 %v1024, %v1025
        %v1028 = vsel %vm698, %v1020, %v1027
        %v1030 = vshrl.u32 %v694, 16
        %v1032 = vrot.slane %v1030, 7
        %v1033 = vrot.slane %v1032, 4
        %v1035 = vshrl.u32 %v695, 16
        %v1037 = vrot.slane %v1035, 7
        %v1038 = vshll.u32 %v695, 16
        %v1040 = vor.u32 %v1037, %v1038
        %v1041 = vsel %vm698, %v1033, %v1040
        %v1042 = vrot.slane %v1037, 4
        %v1044 = vshrl.u32 %v696, 16
        %v1046 = vrot.slane %v1044, 7
        %v1047 = vshll.u32 %v696, 16
        %v1049 = vor.u32 %v1046, %v1047
        %v1050 = vsel %vm698, %v1042, %v1049
        %v1051 = vld [vmem:[#allocation6] sm:$0xf]
        %v1052 = vld [vmem:[#allocation6 + $0x4] sm:$0xf]
        %v1053 = vld [vmem:[#allocation6 + $0x8] sm:$0xf]
        %v1054 = vld [vmem:[#allocation6 + $0xc] sm:$0xf]
        %v1055 = vld [vmem:[#allocation6 + $0x10] sm:$0xf]
        %v1056 = vld [vmem:[#allocation6 + $0x14] sm:$0xf]
        %v1057 = vld [vmem:[#allocation6 + $0x18] sm:$0xf]
        %v1058 = vld [vmem:[#allocation6 + $0x1c] sm:$0xf]
        %v1059 = vld [vmem:[#allocation6 + $0x20] sm:$0xf]
        %v1060 = vld [vmem:[#allocation6 + $0x24] sm:$0xf]
        %v1061 = vld [vmem:[#allocation6 + $0x28] sm:$0xf]
        %v1062 = vld [vmem:[#allocation6 + $0x2c] sm:$0xf]
        %v1063 = vld [vmem:[#allocation6 + $0x30] sm:$0xf]
        %v1064 = vld [vmem:[#allocation6 + $0x34] sm:$0xf]
        %v1065 = vld [vmem:[#allocation6 + $0x38] sm:$0xf]
        %v1066 = vld [vmem:[#allocation6 + $0x3c] sm:$0xf]
        %s1067 = scalar_lea.vmem [#allocation6], 64
        %v1068 = vld [vmem:[%s1067] sm:$0xf]
        %v1069 = vld [vmem:[%s1067 + $0x4] sm:$0xf]
        %v1070 = vld [vmem:[%s1067 + $0x8] sm:$0xf]
        %v1071 = vld [vmem:[%s1067 + $0xc] sm:$0xf]
        %v1072 = vld [vmem:[%s1067 + $0x10] sm:$0xf]
        %v1073 = vld [vmem:[%s1067 + $0x14] sm:$0xf]
        %v1074 = vld [vmem:[%s1067 + $0x18] sm:$0xf]
        %v1075 = vld [vmem:[%s1067 + $0x1c] sm:$0xf]
        %v1076 = vld [vmem:[%s1067 + $0x20] sm:$0xf]
        %v1077 = vld [vmem:[%s1067 + $0x24] sm:$0xf]
        %v1078 = vld [vmem:[%s1067 + $0x28] sm:$0xf]
        %v1079 = vld [vmem:[%s1067 + $0x2c] sm:$0xf]
        %v1080 = vld [vmem:[%s1067 + $0x30] sm:$0xf]
        %v1081 = vld [vmem:[%s1067 + $0x34] sm:$0xf]
        %v1082 = vld [vmem:[%s1067 + $0x38] sm:$0xf]
        %v1083 = vld [vmem:[%s1067 + $0x3c] sm:$0xf]
        %v1116 = vunpack.c.l.b16 %v650
        %v1117 = vunpack.c.l.b16 %v651
        %v1118 = vunpack.c.l.b16 %v653
        %v1119 = vunpack.c.l.b16 %v654
        %v1120 = vunpack.c.l.b16 %v656
        %v1121 = vunpack.c.l.b16 %v657
        %v1122 = vunpack.c.l.b16 %v659
        %v1123 = vunpack.c.l.b16 %v660
        %v1124 = vunpack.c.l.b16 %v662
        %v1125 = vunpack.c.l.b16 %v663
        %v1126 = vunpack.c.l.b16 %v665
        %v1127 = vunpack.c.l.b16 %v666
        %v1128 = vunpack.c.l.b16 %v668
        %v1129 = vunpack.c.l.b16 %v669
        %v1130 = vunpack.c.l.b16 %v671
        %v1131 = vunpack.c.l.b16 %v672
        %v1132 = vunpack.c.l.b16 %v674
        %v1133 = vunpack.c.l.b16 %v675
        %v1134 = vunpack.c.l.b16 %v677
        %v1135 = vunpack.c.l.b16 %v678
        %v1136 = vunpack.c.l.b16 %v680
        %v1137 = vunpack.c.l.b16 %v681
        %v1138 = vunpack.c.l.b16 %v683
        %v1139 = vunpack.c.l.b16 %v684
        %v1140 = vunpack.c.l.b16 %v686
        %v1141 = vunpack.c.l.b16 %v687
        %v1142 = vunpack.c.l.b16 %v689
        %v1143 = vunpack.c.l.b16 %v690
        %v1144 = vunpack.c.l.b16 %v692
        %v1145 = vunpack.c.l.b16 %v693
        %v1146 = vunpack.c.l.b16 %v695
        %v1147 = vunpack.c.l.b16 %v696
        %v1148 = vpack.c.b16 %v1117, %v1116
        %v1149 = vpack.c.b16 %v1119, %v1118
        %v1150 = vpack.c.b16 %v1121, %v1120
        %v1151 = vpack.c.b16 %v1123, %v1122
        %v1152 = vpack.c.b16 %v1125, %v1124
        %v1153 = vpack.c.b16 %v1127, %v1126
        %v1154 = vpack.c.b16 %v1129, %v1128
        %v1155 = vpack.c.b16 %v1131, %v1130
        %v1156 = vpack.c.b16 %v1133, %v1132
        %v1157 = vpack.c.b16 %v1135, %v1134
        %v1158 = vpack.c.b16 %v1137, %v1136
        %v1159 = vpack.c.b16 %v1139, %v1138
        %v1160 = vpack.c.b16 %v1141, %v1140
        %v1161 = vpack.c.b16 %v1143, %v1142
        %v1162 = vpack.c.b16 %v1145, %v1144
        %v1163 = vpack.c.b16 %v1147, %v1146
        %v1196 = vunpack.c.l.b16 %v1068
        %v1197 = vunpack.c.l.b16 %v1069
        %v1198 = vunpack.c.l.b16 %v1070
        %v1199 = vunpack.c.l.b16 %v1071
        %v1200 = vunpack.c.l.b16 %v1072
        %v1201 = vunpack.c.l.b16 %v1073
        %v1202 = vunpack.c.l.b16 %v1074
        %v1203 = vunpack.c.l.b16 %v1075
        %v1204 = vunpack.c.l.b16 %v1076
        %v1205 = vunpack.c.l.b16 %v1077
        %v1206 = vunpack.c.l.b16 %v1078
        %v1207 = vunpack.c.l.b16 %v1079
        %v1208 = vunpack.c.l.b16 %v1080
        %v1209 = vunpack.c.l.b16 %v1081
        %v1210 = vunpack.c.l.b16 %v1082
        %v1211 = vunpack.c.l.b16 %v1083
        %v1212 = vpack.c.b16 %v1197, %v1196
        %v1213 = vpack.c.b16 %v1199, %v1198
        %v1214 = vpack.c.b16 %v1201, %v1200
        %v1215 = vpack.c.b16 %v1203, %v1202
        %v1216 = vpack.c.b16 %v1205, %v1204
        %v1217 = vpack.c.b16 %v1207, %v1206
        %v1218 = vpack.c.b16 %v1209, %v1208
        %v1219 = vpack.c.b16 %v1211, %v1210
        %1228 = vmatprep.subr.bf16.mxu0 0
        %1229 = vmatpush1.bf16.msra.mxu0 %v1219
        %1230 = vmatprep.subr.bf16.mxu0 0
        %1231 = vmatpush1.bf16.msra.mxu0 %v1218
        %1232 = vmatprep.subr.bf16.mxu0 0
        %1233 = vmatpush1.bf16.msra.mxu0 %v1217
        %1234 = vmatprep.subr.bf16.mxu0 0
        %1235 = vmatpush1.bf16.msra.mxu0 %v1216
        %1236 = vmatprep.subr.bf16.mxu0 0
        %1237 = vmatpush1.bf16.msra.mxu0 %v1215
        %1238 = vmatprep.subr.bf16.mxu0 0
        %1239 = vmatpush1.bf16.msra.mxu0 %v1214
        %1240 = vmatprep.subr.bf16.mxu0 0
        %1241 = vmatpush1.bf16.msra.mxu0 %v1213
        %1242 = vmatprep.subr.bf16.mxu0 0
        %1243 = vmatpush1.bf16.msra.mxu0 %v1212
        %1244 = vmatprep.subr.bf16.mxu0 0
        %1245 = vmatpush2.bf16.msra.mxu0 0
        %1246 = vmatprep.subr.bf16.mxu0 0
        %1247 = vmatpush2.bf16.msra.mxu0 0
        %1248 = vmatprep.subr.bf16.mxu0 0
        %1249 = vmatpush2.bf16.msra.mxu0 0
        %1250 = vmatprep.subr.bf16.mxu0 0
        %1251 = vmatpush2.bf16.msra.mxu0 0
        %1252 = vmatprep.subr.bf16.mxu0 0
        %1253 = vmatpush2.bf16.msra.mxu0 0
        %1254 = vmatprep.subr.bf16.mxu0 0
        %1255 = vmatpush2.bf16.msra.mxu0 0
        %1256 = vmatprep.subr.bf16.mxu0 0
        %1257 = vmatpush2.bf16.msra.mxu0 0
        %1258 = vmatprep.subr.bf16.mxu0 0
        %1259 = vmatpush2.bf16.msra.mxu0 0
        %1260 = vmatprep.mubr.bf16.mxu0 0
        %1261 = vmatmul.mubr.bf16.gmra.mxu0 %v1148
        %v1262 = vpop.f32.mrf.mxu0
        %v1263 = vadd.f32 0.0, %v1262
        %v1264 = vpop.f32.mrf.mxu0
        %v1265 = vpop.f32.mrf.mxu0
        %v1266 = vadd.f32 0.0, %v1265
        %v1267 = vpop.f32.mrf.mxu0
        %1268 = vmatprep.mubr.bf16.mxu0 0
        %1269 = vmatmul.mubr.bf16.gmra.mxu0 %v1149
        %v1270 = vpop.f32.mrf.mxu0
        %v1271 = vadd.f32 0.0, %v1270
        %v1272 = vpop.f32.mrf.mxu0
        %v1273 = vpop.f32.mrf.mxu0
        %v1274 = vadd.f32 0.0, %v1273
        %v1275 = vpop.f32.mrf.mxu0
        %1276 = vmatprep.mubr.bf16.mxu0 0
        %1277 = vmatmul.mubr.bf16.gmra.mxu0 %v1150
        %v1278 = vpop.f32.mrf.mxu0
        %v1279 = vadd.f32 0.0, %v1278
        %v1280 = vpop.f32.mrf.mxu0
        %v1281 = vpop.f32.mrf.mxu0
        %v1282 = vadd.f32 0.0, %v1281
        %v1283 = vpop.f32.mrf.mxu0
        %1284 = vmatprep.mubr.bf16.mxu0 0
        %1285 = vmatmul.mubr.bf16.gmra.mxu0 %v1151
        %v1286 = vpop.f32.mrf.mxu0
        %v1287 = vadd.f32 0.0, %v1286
        %v1288 = vpop.f32.mrf.mxu0
        %v1289 = vpop.f32.mrf.mxu0
        %v1290 = vadd.f32 0.0, %v1289
        %v1291 = vpop.f32.mrf.mxu0
        %1292 = vmatprep.mubr.bf16.mxu0 0
        %1293 = vmatmul.mubr.bf16.gmra.mxu0 %v1152
        %v1294 = vpop.f32.mrf.mxu0
        %v1295 = vadd.f32 0.0, %v1294
        %v1296 = vpop.f32.mrf.mxu0
        %v1297 = vpop.f32.mrf.mxu0
        %v1298 = vadd.f32 0.0, %v1297
        %v1299 = vpop.f32.mrf.mxu0
        %1300 = vmatprep.mubr.bf16.mxu0 0
        %1301 = vmatmul.mubr.bf16.gmra.mxu0 %v1153
        %v1302 = vpop.f32.mrf.mxu0
        %v1303 = vadd.f32 0.0, %v1302
        %v1304 = vpop.f32.mrf.mxu0
        %v1305 = vpop.f32.mrf.mxu0
        %v1306 = vadd.f32 0.0, %v1305
        %v1307 = vpop.f32.mrf.mxu0
        %1308 = vmatprep.mubr.bf16.mxu0 0
        %1309 = vmatmul.mubr.bf16.gmra.mxu0 %v1154
        %v1310 = vpop.f32.mrf.mxu0
        %v1311 = vadd.f32 0.0, %v1310
        %v1312 = vpop.f32.mrf.mxu0
        %v1313 = vpop.f32.mrf.mxu0
        %v1314 = vadd.f32 0.0, %v1313
        %v1315 = vpop.f32.mrf.mxu0
        %1316 = vmatprep.mubr.bf16.mxu0 0
        %1317 = vmatmul.mubr.bf16.gmra.mxu0 %v1155
        %v1318 = vpop.f32.mrf.mxu0
        %v1319 = vadd.f32 0.0, %v1318
        %v1320 = vpop.f32.mrf.mxu0
        %v1321 = vpop.f32.mrf.mxu0
        %v1322 = vadd.f32 0.0, %v1321
        %v1323 = vpop.f32.mrf.mxu0
        %1324 = vmatprep.mubr.bf16.mxu0 0
        %1325 = vmatmul.mubr.bf16.gmra.mxu0 %v1156
        %v1326 = vpop.f32.mrf.mxu0
        %v1327 = vadd.f32 0.0, %v1326
        %v1328 = vpop.f32.mrf.mxu0
        %v1329 = vpop.f32.mrf.mxu0
        %v1330 = vadd.f32 0.0, %v1329
        %v1331 = vpop.f32.mrf.mxu0
        %1332 = vmatprep.mubr.bf16.mxu0 0
        %1333 = vmatmul.mubr.bf16.gmra.mxu0 %v1157
        %v1334 = vpop.f32.mrf.mxu0
        %v1335 = vadd.f32 0.0, %v1334
        %v1336 = vpop.f32.mrf.mxu0
        %v1337 = vpop.f32.mrf.mxu0
        %v1338 = vadd.f32 0.0, %v1337
        %v1339 = vpop.f32.mrf.mxu0
        %1340 = vmatprep.mubr.bf16.mxu0 0
        %1341 = vmatmul.mubr.bf16.gmra.mxu0 %v1158
        %v1342 = vpop.f32.mrf.mxu0
        %v1343 = vadd.f32 0.0, %v1342
        %v1344 = vpop.f32.mrf.mxu0
        %v1345 = vpop.f32.mrf.mxu0
        %v1346 = vadd.f32 0.0, %v1345
        %v1347 = vpop.f32.mrf.mxu0
        %1348 = vmatprep.mubr.bf16.mxu0 0
        %1349 = vmatmul.mubr.bf16.gmra.mxu0 %v1159
        %v1350 = vpop.f32.mrf.mxu0
        %v1351 = vadd.f32 0.0, %v1350
        %v1352 = vpop.f32.mrf.mxu0
        %v1353 = vpop.f32.mrf.mxu0
        %v1354 = vadd.f32 0.0, %v1353
        %v1355 = vpop.f32.mrf.mxu0
        %1356 = vmatprep.mubr.bf16.mxu0 0
        %1357 = vmatmul.mubr.bf16.gmra.mxu0 %v1160
        %v1358 = vpop.f32.mrf.mxu0
        %v1359 = vadd.f32 0.0, %v1358
        %v1360 = vpop.f32.mrf.mxu0
        %v1361 = vpop.f32.mrf.mxu0
        %v1362 = vadd.f32 0.0, %v1361
        %v1363 = vpop.f32.mrf.mxu0
        %1364 = vmatprep.mubr.bf16.mxu0 0
        %1365 = vmatmul.mubr.bf16.gmra.mxu0 %v1161
        %v1366 = vpop.f32.mrf.mxu0
        %v1367 = vadd.f32 0.0, %v1366
        %v1368 = vpop.f32.mrf.mxu0
        %v1369 = vpop.f32.mrf.mxu0
        %v1370 = vadd.f32 0.0, %v1369
        %v1371 = vpop.f32.mrf.mxu0
        %1372 = vmatprep.mubr.bf16.mxu0 0
        %1373 = vmatmul.mubr.bf16.gmra.mxu0 %v1162
        %v1374 = vpop.f32.mrf.mxu0
        %v1375 = vadd.f32 0.0, %v1374
        %v1376 = vpop.f32.mrf.mxu0
        %v1377 = vpop.f32.mrf.mxu0
        %v1378 = vadd.f32 0.0, %v1377
        %v1379 = vpop.f32.mrf.mxu0
        %1380 = vmatprep.mubr.bf16.mxu0 0
        %1381 = vmatmul.mubr.bf16.gmra.mxu0 %v1163
        %v1382 = vpop.f32.mrf.mxu0
        %v1383 = vadd.f32 0.0, %v1382
        %v1384 = vpop.f32.mrf.mxu0
        %v1385 = vpop.f32.mrf.mxu0
        %v1386 = vadd.f32 0.0, %v1385
        %v1387 = vpop.f32.mrf.mxu0
        %1388 = vdwg.mxu0
        %v1389 = vunpack.c.l.b16 %v711
        %v1390 = vunpack.c.l.b16 %v720
        %v1391 = vunpack.c.l.b16 %v733
        %v1392 = vunpack.c.l.b16 %v742
        %v1393 = vunpack.c.l.b16 %v755
        %v1394 = vunpack.c.l.b16 %v764
        %v1395 = vunpack.c.l.b16 %v777
        %v1396 = vunpack.c.l.b16 %v786
        %v1397 = vunpack.c.l.b16 %v799
        %v1398 = vunpack.c.l.b16 %v808
        %v1399 = vunpack.c.l.b16 %v821
        %v1400 = vunpack.c.l.b16 %v830
        %v1401 = vunpack.c.l.b16 %v843
        %v1402 = vunpack.c.l.b16 %v852
        %v1403 = vunpack.c.l.b16 %v865
        %v1404 = vunpack.c.l.b16 %v874
        %v1405 = vunpack.c.l.b16 %v887
        %v1406 = vunpack.c.l.b16 %v896
        %v1407 = vunpack.c.l.b16 %v909
        %v1408 = vunpack.c.l.b16 %v918
        %v1409 = vunpack.c.l.b16 %v931
        %v1410 = vunpack.c.l.b16 %v940
        %v1411 = vunpack.c.l.b16 %v953
        %v1412 = vunpack.c.l.b16 %v962
        %v1413 = vunpack.c.l.b16 %v975
        %v1414 = vunpack.c.l.b16 %v984
        %v1415 = vunpack.c.l.b16 %v997
        %v1416 = vunpack.c.l.b16 %v1006
        %v1417 = vunpack.c.l.b16 %v1019
        %v1418 = vunpack.c.l.b16 %v1028
        %v1419 = vunpack.c.l.b16 %v1041
        %v1420 = vunpack.c.l.b16 %v1050
        %v1421 = vpack.c.b16 %v1390, %v1389
        %v1422 = vpack.c.b16 %v1392, %v1391
        %v1423 = vpack.c.b16 %v1394, %v1393
        %v1424 = vpack.c.b16 %v1396, %v1395
        %v1425 = vpack.c.b16 %v1398, %v1397
        %v1426 = vpack.c.b16 %v1400, %v1399
        %v1427 = vpack.c.b16 %v1402, %v1401
        %v1428 = vpack.c.b16 %v1404, %v1403
        %v1429 = vpack.c.b16 %v1406, %v1405
        %v1430 = vpack.c.b16 %v1408, %v1407
        %v1431 = vpack.c.b16 %v1410, %v1409
        %v1432 = vpack.c.b16 %v1412, %v1411
        %v1433 = vpack.c.b16 %v1414, %v1413
        %v1434 = vpack.c.b16 %v1416, %v1415
        %v1435 = vpack.c.b16 %v1418, %v1417
        %v1436 = vpack.c.b16 %v1420, %v1419
        %v1469 = vunpack.c.l.b16 %v1051
        %v1470 = vunpack.c.l.b16 %v1052
        %v1471 = vunpack.c.l.b16 %v1053
        %v1472 = vunpack.c.l.b16 %v1054
        %v1473 = vunpack.c.l.b16 %v1055
        %v1474 = vunpack.c.l.b16 %v1056
        %v1475 = vunpack.c.l.b16 %v1057
        %v1476 = vunpack.c.l.b16 %v1058
        %v1477 = vunpack.c.l.b16 %v1059
        %v1478 = vunpack.c.l.b16 %v1060
        %v1479 = vunpack.c.l.b16 %v1061
        %v1480 = vunpack.c.l.b16 %v1062
        %v1481 = vunpack.c.l.b16 %v1063
        %v1482 = vunpack.c.l.b16 %v1064
        %v1483 = vunpack.c.l.b16 %v1065
        %v1484 = vunpack.c.l.b16 %v1066
        %v1485 = vpack.c.b16 %v1470, %v1469
        %v1486 = vpack.c.b16 %v1472, %v1471
        %v1487 = vpack.c.b16 %v1474, %v1473
        %v1488 = vpack.c.b16 %v1476, %v1475
        %v1489 = vpack.c.b16 %v1478, %v1477
        %v1490 = vpack.c.b16 %v1480, %v1479
        %v1491 = vpack.c.b16 %v1482, %v1481
        %v1492 = vpack.c.b16 %v1484, %v1483
        %1501 = vmatprep.subr.bf16.mxu0 0
        %1502 = vmatpush1.bf16.msra.mxu0 %v1492
        %1503 = vmatprep.subr.bf16.mxu0 0
        %1504 = vmatpush1.bf16.msra.mxu0 %v1491
        %1505 = vmatprep.subr.bf16.mxu0 0
        %1506 = vmatpush1.bf16.msra.mxu0 %v1490
        %1507 = vmatprep.subr.bf16.mxu0 0
        %1508 = vmatpush1.bf16.msra.mxu0 %v1489
        %1509 = vmatprep.subr.bf16.mxu0 0
        %1510 = vmatpush1.bf16.msra.mxu0 %v1488
        %1511 = vmatprep.subr.bf16.mxu0 0
        %1512 = vmatpush1.bf16.msra.mxu0 %v1487
        %1513 = vmatprep.subr.bf16.mxu0 0
        %1514 = vmatpush1.bf16.msra.mxu0 %v1486
        %1515 = vmatprep.subr.bf16.mxu0 0
        %1516 = vmatpush1.bf16.msra.mxu0 %v1485
        %1517 = vmatprep.subr.bf16.mxu0 0
        %1518 = vmatpush2.bf16.msra.mxu0 0
        %1519 = vmatprep.subr.bf16.mxu0 0
        %1520 = vmatpush2.bf16.msra.mxu0 0
        %1521 = vmatprep.subr.bf16.mxu0 0
        %1522 = vmatpush2.bf16.msra.mxu0 0
        %1523 = vmatprep.subr.bf16.mxu0 0
        %1524 = vmatpush2.bf16.msra.mxu0 0
        %1525 = vmatprep.subr.bf16.mxu0 0
        %1526 = vmatpush2.bf16.msra.mxu0 0
        %1527 = vmatprep.subr.bf16.mxu0 0
        %1528 = vmatpush2.bf16.msra.mxu0 0
        %1529 = vmatprep.subr.bf16.mxu0 0
        %1530 = vmatpush2.bf16.msra.mxu0 0
        %1531 = vmatprep.subr.bf16.mxu0 0
        %1532 = vmatpush2.bf16.msra.mxu0 0
        %1533 = vmatprep.mubr.bf16.mxu0 0
        %1534 = vmatmul.mubr.bf16.gmra.mxu0 %v1421
        %v1535 = vpop.f32.mrf.mxu0
        %v1536 = vadd.f32 %v1263, %v1535
        %v1537 = vpop.f32.mrf.mxu0
        %v1538 = vpop.f32.mrf.mxu0
        %v1539 = vadd.f32 %v1266, %v1538
        %v1540 = vpop.f32.mrf.mxu0
        %1541 = vmatprep.mubr.bf16.mxu0 0
        %1542 = vmatmul.mubr.bf16.gmra.mxu0 %v1422
        %v1543 = vpop.f32.mrf.mxu0
        %v1544 = vadd.f32 %v1271, %v1543
        %v1545 = vpop.f32.mrf.mxu0
        %v1546 = vpop.f32.mrf.mxu0
        %v1547 = vadd.f32 %v1274, %v1546
        %v1548 = vpop.f32.mrf.mxu0
        %1549 = vmatprep.mubr.bf16.mxu0 0
        %1550 = vmatmul.mubr.bf16.gmra.mxu0 %v1423
        %v1551 = vpop.f32.mrf.mxu0
        %v1552 = vadd.f32 %v1279, %v1551
        %v1553 = vpop.f32.mrf.mxu0
        %v1554 = vpop.f32.mrf.mxu0
        %v1555 = vadd.f32 %v1282, %v1554
        %v1556 = vpop.f32.mrf.mxu0
        %1557 = vmatprep.mubr.bf16.mxu0 0
        %1558 = vmatmul.mubr.bf16.gmra.mxu0 %v1424
        %v1559 = vpop.f32.mrf.mxu0
        %v1560 = vadd.f32 %v1287, %v1559
        %v1561 = vpop.f32.mrf.mxu0
        %v1562 = vpop.f32.mrf.mxu0
        %v1563 = vadd.f32 %v1290, %v1562
        %v1564 = vpop.f32.mrf.mxu0
        %1565 = vmatprep.mubr.bf16.mxu0 0
        %1566 = vmatmul.mubr.bf16.gmra.mxu0 %v1425
        %v1567 = vpop.f32.mrf.mxu0
        %v1568 = vadd.f32 %v1295, %v1567
        %v1569 = vpop.f32.mrf.mxu0
        %v1570 = vpop.f32.mrf.mxu0
        %v1571 = vadd.f32 %v1298, %v1570
        %v1572 = vpop.f32.mrf.mxu0
        %1573 = vmatprep.mubr.bf16.mxu0 0
        %1574 = vmatmul.mubr.bf16.gmra.mxu0 %v1426
        %v1575 = vpop.f32.mrf.mxu0
        %v1576 = vadd.f32 %v1303, %v1575
        %v1577 = vpop.f32.mrf.mxu0
        %v1578 = vpop.f32.mrf.mxu0
        %v1579 = vadd.f32 %v1306, %v1578
        %v1580 = vpop.f32.mrf.mxu0
        %1581 = vmatprep.mubr.bf16.mxu0 0
        %1582 = vmatmul.mubr.bf16.gmra.mxu0 %v1427
        %v1583 = vpop.f32.mrf.mxu0
        %v1584 = vadd.f32 %v1311, %v1583
        %v1585 = vpop.f32.mrf.mxu0
        %v1586 = vpop.f32.mrf.mxu0
        %v1587 = vadd.f32 %v1314, %v1586
        %v1588 = vpop.f32.mrf.mxu0
        %1589 = vmatprep.mubr.bf16.mxu0 0
        %1590 = vmatmul.mubr.bf16.gmra.mxu0 %v1428
        %v1591 = vpop.f32.mrf.mxu0
        %v1592 = vadd.f32 %v1319, %v1591
        %v1593 = vpop.f32.mrf.mxu0
        %v1594 = vpop.f32.mrf.mxu0
        %v1595 = vadd.f32 %v1322, %v1594
        %v1596 = vpop.f32.mrf.mxu0
        %1597 = vmatprep.mubr.bf16.mxu0 0
        %1598 = vmatmul.mubr.bf16.gmra.mxu0 %v1429
        %v1599 = vpop.f32.mrf.mxu0
        %v1600 = vadd.f32 %v1327, %v1599
        %v1601 = vpop.f32.mrf.mxu0
        %v1602 = vpop.f32.mrf.mxu0
        %v1603 = vadd.f32 %v1330, %v1602
        %v1604 = vpop.f32.mrf.mxu0
        %1605 = vmatprep.mubr.bf16.mxu0 0
        %1606 = vmatmul.mubr.bf16.gmra.mxu0 %v1430
        %v1607 = vpop.f32.mrf.mxu0
        %v1608 = vadd.f32 %v1335, %v1607
        %v1609 = vpop.f32.mrf.mxu0
        %v1610 = vpop.f32.mrf.mxu0
        %v1611 = vadd.f32 %v1338, %v1610
        %v1612 = vpop.f32.mrf.mxu0
        %1613 = vmatprep.mubr.bf16.mxu0 0
        %1614 = vmatmul.mubr.bf16.gmra.mxu0 %v1431
        %v1615 = vpop.f32.mrf.mxu0
        %v1616 = vadd.f32 %v1343, %v1615
        %v1617 = vpop.f32.mrf.mxu0
        %v1618 = vpop.f32.mrf.mxu0
        %v1619 = vadd.f32 %v1346, %v1618
        %v1620 = vpop.f32.mrf.mxu0
        %1621 = vmatprep.mubr.bf16.mxu0 0
        %1622 = vmatmul.mubr.bf16.gmra.mxu0 %v1432
        %v1623 = vpop.f32.mrf.mxu0
        %v1624 = vadd.f32 %v1351, %v1623
        %v1625 = vpop.f32.mrf.mxu0
        %v1626 = vpop.f32.mrf.mxu0
        %v1627 = vadd.f32 %v1354, %v1626
        %v1628 = vpop.f32.mrf.mxu0
        %1629 = vmatprep.mubr.bf16.mxu0 0
        %1630 = vmatmul.mubr.bf16.gmra.mxu0 %v1433
        %v1631 = vpop.f32.mrf.mxu0
        %v1632 = vadd.f32 %v1359, %v1631
        %v1633 = vpop.f32.mrf.mxu0
        %v1634 = vpop.f32.mrf.mxu0
        %v1635 = vadd.f32 %v1362, %v1634
        %v1636 = vpop.f32.mrf.mxu0
        %1637 = vmatprep.mubr.bf16.mxu0 0
        %1638 = vmatmul.mubr.bf16.gmra.mxu0 %v1434
        %v1639 = vpop.f32.mrf.mxu0
        %v1640 = vadd.f32 %v1367, %v1639
        %v1641 = vpop.f32.mrf.mxu0
        %v1642 = vpop.f32.mrf.mxu0
        %v1643 = vadd.f32 %v1370, %v1642
        %v1644 = vpop.f32.mrf.mxu0
        %1645 = vmatprep.mubr.bf16.mxu0 0
        %1646 = vmatmul.mubr.bf16.gmra.mxu0 %v1435
        %v1647 = vpop.f32.mrf.mxu0
        %v1648 = vadd.f32 %v1375, %v1647
        %v1649 = vpop.f32.mrf.mxu0
        %v1650 = vpop.f32.mrf.mxu0
        %v1651 = vadd.f32 %v1378, %v1650
        %v1652 = vpop.f32.mrf.mxu0
        %1653 = vmatprep.mubr.bf16.mxu0 0
        %1654 = vmatmul.mubr.bf16.gmra.mxu0 %v1436
        %v1655 = vpop.f32.mrf.mxu0
        %v1656 = vadd.f32 %v1383, %v1655
        %v1657 = vpop.f32.mrf.mxu0
        %v1658 = vpop.f32.mrf.mxu0
        %v1659 = vadd.f32 %v1386, %v1658
        %v1660 = vpop.f32.mrf.mxu0
        %1661 = vdwg.mxu0
        %v1662 = vld [vmem:[#allocation2 + $0x8] sm:$0xf]
        %v1663 = vld [vmem:[#allocation2 + $0xc] sm:$0xf]
        %v1664 = vld [vmem:[#allocation2 + $0x10] sm:$0x1]
        %v1665 = vld [vmem:[#allocation2 + $0x1c] sm:$0xf]
        %v1666 = vld [vmem:[#allocation2 + $0x20] sm:$0xf]
        %v1667 = vld [vmem:[#allocation2 + $0x24] sm:$0x1]
        %v1668 = vld [vmem:[#allocation2 + $0x30] sm:$0xf]
        %v1669 = vld [vmem:[#allocation2 + $0x34] sm:$0xf]
        %v1670 = vld [vmem:[#allocation2 + $0x38] sm:$0x1]
        %v1671 = vld [vmem:[#allocation2 + $0x44] sm:$0xf]
        %v1672 = vld [vmem:[#allocation2 + $0x48] sm:$0xf]
        %v1673 = vld [vmem:[#allocation2 + $0x4c] sm:$0x1]
        %v1674 = vld [vmem:[#allocation2 + $0x58] sm:$0xf]
        %v1675 = vld [vmem:[#allocation2 + $0x5c] sm:$0xf]
        %v1676 = vld [vmem:[#allocation2 + $0x60] sm:$0x1]
        %v1677 = vld [vmem:[#allocation2 + $0x6c] sm:$0xf]
        %v1678 = vld [vmem:[#allocation2 + $0x70] sm:$0xf]
        %v1679 = vld [vmem:[#allocation2 + $0x74] sm:$0x1]
        %v1680 = vld [vmem:[#allocation2 + $0x80] sm:$0xf]
        %v1681 = vld [vmem:[#allocation2 + $0x84] sm:$0xf]
        %v1682 = vld [vmem:[#allocation2 + $0x88] sm:$0x1]
        %v1683 = vld [vmem:[#allocation2 + $0x94] sm:$0xf]
        %v1684 = vld [vmem:[#allocation2 + $0x98] sm:$0xf]
        %v1685 = vld [vmem:[#allocation2 + $0x9c] sm:$0x1]
        %v1686 = vld [vmem:[#allocation2 + $0xa8] sm:$0xf]
        %v1687 = vld [vmem:[#allocation2 + $0xac] sm:$0xf]
        %v1688 = vld [vmem:[#allocation2 + $0xb0] sm:$0x1]
        %v1689 = vld [vmem:[#allocation2 + $0xbc] sm:$0xf]
        %v1690 = vld [vmem:[#allocation2 + $0xc0] sm:$0xf]
        %v1691 = vld [vmem:[#allocation2 + $0xc4] sm:$0x1]
        %v1692 = vld [vmem:[#allocation2 + $0xd0] sm:$0xf]
        %v1693 = vld [vmem:[#allocation2 + $0xd4] sm:$0xf]
        %v1694 = vld [vmem:[#allocation2 + $0xd8] sm:$0x1]
        %v1695 = vld [vmem:[#allocation2 + $0xe4] sm:$0xf]
        %v1696 = vld [vmem:[#allocation2 + $0xe8] sm:$0xf]
        %v1697 = vld [vmem:[#allocation2 + $0xec] sm:$0x1]
        %v1698 = vld [vmem:[#allocation2 + $0xf8] sm:$0xf]
        %v1699 = vld [vmem:[#allocation2 + $0xfc] sm:$0xf]
        %v1700 = vld [vmem:[#allocation2 + $0x100] sm:$0x1]
        %v1701 = vld [vmem:[#allocation2 + $0x10c] sm:$0xf]
        %v1702 = vld [vmem:[#allocation2 + $0x110] sm:$0xf]
        %v1703 = vld [vmem:[#allocation2 + $0x114] sm:$0x1]
        %v1704 = vld [vmem:[#allocation2 + $0x120] sm:$0xf]
        %v1705 = vld [vmem:[#allocation2 + $0x124] sm:$0xf]
        %v1706 = vld [vmem:[#allocation2 + $0x128] sm:$0x1]
        %v1707 = vld [vmem:[#allocation2 + $0x134] sm:$0xf]
        %v1708 = vld [vmem:[#allocation2 + $0x138] sm:$0xf]
        %v1709 = vld [vmem:[#allocation2 + $0x13c] sm:$0x1]
        %vm1710 = vsmask.f32 3328
        %vm1711 = vsmask.f32 7440
        %vm1712 = vmor %vm1710, %vm1711
        %v1714 = vshrl.u32 %v1662, 16
        %v1716 = vrot.slane %v1714, 4
        %v1717 = vshll.u32 %v1662, 16
        %v1719 = vrot.slane %v1717, 5
        %v1720 = vor.u32 %v1716, %v1719
        %v1721 = vrot.slane %v1720, 4
        %v1723 = vshll.u32 %v1663, 16
        %v1725 = vrot.slane %v1723, 5
        %v1726 = vsel %vm1712, %v1721, %v1725
        %v1727 = vshrl.u32 %v1663, 16
        %v1729 = vrot.slane %v1727, 4
        %v1730 = vor.u32 %v1729, %v1725
        %v1731 = vrot.slane %v1730, 4
        %v1733 = vshll.u32 %v1664, 16
        %v1735 = vrot.slane %v1733, 5
        %v1736 = vsel %vm1712, %v1731, %v1735
        %v1738 = vshrl.u32 %v1665, 16
        %v1740 = vrot.slane %v1738, 4
        %v1741 = vshll.u32 %v1665, 16
        %v1743 = vrot.slane %v1741, 5
        %v1744 = vor.u32 %v1740, %v1743
        %v1745 = vrot.slane %v1744, 4
        %v1747 = vshll.u32 %v1666, 16
        %v1749 = vrot.slane %v1747, 5
        %v1750 = vsel %vm1712, %v1745, %v1749
        %v1751 = vshrl.u32 %v1666, 16
        %v1753 = vrot.slane %v1751, 4
        %v1754 = vor.u32 %v1753, %v1749
        %v1755 = vrot.slane %v1754, 4
        %v1757 = vshll.u32 %v1667, 16
        %v1759 = vrot.slane %v1757, 5
        %v1760 = vsel %vm1712, %v1755, %v1759
        %v1762 = vshrl.u32 %v1668, 16
        %v1764 = vrot.slane %v1762, 4
        %v1765 = vshll.u32 %v1668, 16
        %v1767 = vrot.slane %v1765, 5
        %v1768 = vor.u32 %v1764, %v1767
        %v1769 = vrot.slane %v1768, 4
        %v1771 = vshll.u32 %v1669, 16
        %v1773 = vrot.slane %v1771, 5
        %v1774 = vsel %vm1712, %v1769, %v1773
        %v1775 = vshrl.u32 %v1669, 16
        %v1777 = vrot.slane %v1775, 4
        %v1778 = vor.u32 %v1777, %v1773
        %v1779 = vrot.slane %v1778, 4
        %v1781 = vshll.u32 %v1670, 16
        %v1783 = vrot.slane %v1781, 5
        %v1784 = vsel %vm1712, %v1779, %v1783
        %v1786 = vshrl.u32 %v1671, 16
        %v1788 = vrot.slane %v1786, 4
        %v1789 = vshll.u32 %v1671, 16
        %v1791 = vrot.slane %v1789, 5
        %v1792 = vor.u32 %v1788, %v1791
        %v1793 = vrot.slane %v1792, 4
        %v1795 = vshll.u32 %v1672, 16
        %v1797 = vrot.slane %v1795, 5
        %v1798 = vsel %vm1712, %v1793, %v1797
        %v1799 = vshrl.u32 %v1672, 16
        %v1801 = vrot.slane %v1799, 4
        %v1802 = vor.u32 %v1801, %v1797
        %v1803 = vrot.slane %v1802, 4
        %v1805 = vshll.u32 %v1673, 16
        %v1807 = vrot.slane %v1805, 5
        %v1808 = vsel %vm1712, %v1803, %v1807
        %v1810 = vshrl.u32 %v1674, 16
        %v1812 = vrot.slane %v1810, 4
        %v1813 = vshll.u32 %v1674, 16
        %v1815 = vrot.slane %v1813, 5
        %v1816 = vor.u32 %v1812, %v1815
        %v1817 = vrot.slane %v1816, 4
        %v1819 = vshll.u32 %v1675, 16
        %v1821 = vrot.slane %v1819, 5
        %v1822 = vsel %vm1712, %v1817, %v1821
        %v1823 = vshrl.u32 %v1675, 16
        %v1825 = vrot.slane %v1823, 4
        %v1826 = vor.u32 %v1825, %v1821
        %v1827 = vrot.slane %v1826, 4
        %v1829 = vshll.u32 %v1676, 16
        %v1831 = vrot.slane %v1829, 5
        %v1832 = vsel %vm1712, %v1827, %v1831
        %v1834 = vshrl.u32 %v1677, 16
        %v1836 = vrot.slane %v1834, 4
        %v1837 = vshll.u32 %v1677, 16
        %v1839 = vrot.slane %v1837, 5
        %v1840 = vor.u32 %v1836, %v1839
        %v1841 = vrot.slane %v1840, 4
        %v1843 = vshll.u32 %v1678, 16
        %v1845 = vrot.slane %v1843, 5
        %v1846 = vsel %vm1712, %v1841, %v1845
        %v1847 = vshrl.u32 %v1678, 16
        %v1849 = vrot.slane %v1847, 4
        %v1850 = vor.u32 %v1849, %v1845
        %v1851 = vrot.slane %v1850, 4
        %v1853 = vshll.u32 %v1679, 16
        %v1855 = vrot.slane %v1853, 5
        %v1856 = vsel %vm1712, %v1851, %v1855
        %v1858 = vshrl.u32 %v1680, 16
        %v1860 = vrot.slane %v1858, 4
        %v1861 = vshll.u32 %v1680, 16
        %v1863 = vrot.slane %v1861, 5
        %v1864 = vor.u32 %v1860, %v1863
        %v1865 = vrot.slane %v1864, 4
        %v1867 = vshll.u32 %v1681, 16
        %v1869 = vrot.slane %v1867, 5
        %v1870 = vsel %vm1712, %v1865, %v1869
        %v1871 = vshrl.u32 %v1681, 16
        %v1873 = vrot.slane %v1871, 4
        %v1874 = vor.u32 %v1873, %v1869
        %v1875 = vrot.slane %v1874, 4
        %v1877 = vshll.u32 %v1682, 16
        %v1879 = vrot.slane %v1877, 5
        %v1880 = vsel %vm1712, %v1875, %v1879
        %v1882 = vshrl.u32 %v1683, 16
        %v1884 = vrot.slane %v1882, 4
        %v1885 = vshll.u32 %v1683, 16
        %v1887 = vrot.slane %v1885, 5
        %v1888 = vor.u32 %v1884, %v1887
        %v1889 = vrot.slane %v1888, 4
        %v1891 = vshll.u32 %v1684, 16
        %v1893 = vrot.slane %v1891, 5
        %v1894 = vsel %vm1712, %v1889, %v1893
        %v1895 = vshrl.u32 %v1684, 16
        %v1897 = vrot.slane %v1895, 4
        %v1898 = vor.u32 %v1897, %v1893
        %v1899 = vrot.slane %v1898, 4
        %v1901 = vshll.u32 %v1685, 16
        %v1903 = vrot.slane %v1901, 5
        %v1904 = vsel %vm1712, %v1899, %v1903
        %v1906 = vshrl.u32 %v1686, 16
        %v1908 = vrot.slane %v1906, 4
        %v1909 = vshll.u32 %v1686, 16
        %v1911 = vrot.slane %v1909, 5
        %v1912 = vor.u32 %v1908, %v1911
        %v1913 = vrot.slane %v1912, 4
        %v1915 = vshll.u32 %v1687, 16
        %v1917 = vrot.slane %v1915, 5
        %v1918 = vsel %vm1712, %v1913, %v1917
        %v1919 = vshrl.u32 %v1687, 16
        %v1921 = vrot.slane %v1919, 4
        %v1922 = vor.u32 %v1921, %v1917
        %v1923 = vrot.slane %v1922, 4
        %v1925 = vshll.u32 %v1688, 16
        %v1927 = vrot.slane %v1925, 5
        %v1928 = vsel %vm1712, %v1923, %v1927
        %v1930 = vshrl.u32 %v1689, 16
        %v1932 = vrot.slane %v1930, 4
        %v1933 = vshll.u32 %v1689, 16
        %v1935 = vrot.slane %v1933, 5
        %v1936 = vor.u32 %v1932, %v1935
        %v1937 = vrot.slane %v1936, 4
        %v1939 = vshll.u32 %v1690, 16
        %v1941 = vrot.slane %v1939, 5
        %v1942 = vsel %vm1712, %v1937, %v1941
        %v1943 = vshrl.u32 %v1690, 16
        %v1945 = vrot.slane %v1943, 4
        %v1946 = vor.u32 %v1945, %v1941
        %v1947 = vrot.slane %v1946, 4
        %v1949 = vshll.u32 %v1691, 16
        %v1951 = vrot.slane %v1949, 5
        %v1952 = vsel %vm1712, %v1947, %v1951
        %v1954 = vshrl.u32 %v1692, 16
        %v1956 = vrot.slane %v1954, 4
        %v1957 = vshll.u32 %v1692, 16
        %v1959 = vrot.slane %v1957, 5
        %v1960 = vor.u32 %v1956, %v1959
        %v1961 = vrot.slane %v1960, 4
        %v1963 = vshll.u32 %v1693, 16
        %v1965 = vrot.slane %v1963, 5
        %v1966 = vsel %vm1712, %v1961, %v1965
        %v1967 = vshrl.u32 %v1693, 16
        %v1969 = vrot.slane %v1967, 4
        %v1970 = vor.u32 %v1969, %v1965
        %v1971 = vrot.slane %v1970, 4
        %v1973 = vshll.u32 %v1694, 16
        %v1975 = vrot.slane %v1973, 5
        %v1976 = vsel %vm1712, %v1971, %v1975
        %v1978 = vshrl.u32 %v1695, 16
        %v1980 = vrot.slane %v1978, 4
        %v1981 = vshll.u32 %v1695, 16
        %v1983 = vrot.slane %v1981, 5
        %v1984 = vor.u32 %v1980, %v1983
        %v1985 = vrot.slane %v1984, 4
        %v1987 = vshll.u32 %v1696, 16
        %v1989 = vrot.slane %v1987, 5
        %v1990 = vsel %vm1712, %v1985, %v1989
        %v1991 = vshrl.u32 %v1696, 16
        %v1993 = vrot.slane %v1991, 4
        %v1994 = vor.u32 %v1993, %v1989
        %v1995 = vrot.slane %v1994, 4
        %v1997 = vshll.u32 %v1697, 16
        %v1999 = vrot.slane %v1997, 5
        %v2000 = vsel %vm1712, %v1995, %v1999
        %v2002 = vshrl.u32 %v1698, 16
        %v2004 = vrot.slane %v2002, 4
        %v2005 = vshll.u32 %v1698, 16
        %v2007 = vrot.slane %v2005, 5
        %v2008 = vor.u32 %v2004, %v2007
        %v2009 = vrot.slane %v2008, 4
        %v2011 = vshll.u32 %v1699, 16
        %v2013 = vrot.slane %v2011, 5
        %v2014 = vsel %vm1712, %v2009, %v2013
        %v2015 = vshrl.u32 %v1699, 16
        %v2017 = vrot.slane %v2015, 4
        %v2018 = vor.u32 %v2017, %v2013
        %v2019 = vrot.slane %v2018, 4
        %v2021 = vshll.u32 %v1700, 16
        %v2023 = vrot.slane %v2021, 5
        %v2024 = vsel %vm1712, %v2019, %v2023
        %v2026 = vshrl.u32 %v1701, 16
        %v2028 = vrot.slane %v2026, 4
        %v2029 = vshll.u32 %v1701, 16
        %v2031 = vrot.slane %v2029, 5
        %v2032 = vor.u32 %v2028, %v2031
        %v2033 = vrot.slane %v2032, 4
        %v2035 = vshll.u32 %v1702, 16
        %v2037 = vrot.slane %v2035, 5
        %v2038 = vsel %vm1712, %v2033, %v2037
        %v2039 = vshrl.u32 %v1702, 16
        %v2041 = vrot.slane %v2039, 4
        %v2042 = vor.u32 %v2041, %v2037
        %v2043 = vrot.slane %v2042, 4
        %v2045 = vshll.u32 %v1703, 16
        %v2047 = vrot.slane %v2045, 5
        %v2048 = vsel %vm1712, %v2043, %v2047
        %v2050 = vshrl.u32 %v1704, 16
        %v2052 = vrot.slane %v2050, 4
        %v2053 = vshll.u32 %v1704, 16
        %v2055 = vrot.slane %v2053, 5
        %v2056 = vor.u32 %v2052, %v2055
        %v2057 = vrot.slane %v2056, 4
        %v2059 = vshll.u32 %v1705, 16
        %v2061 = vrot.slane %v2059, 5
        %v2062 = vsel %vm1712, %v2057, %v2061
        %v2063 = vshrl.u32 %v1705, 16
        %v2065 = vrot.slane %v2063, 4
        %v2066 = vor.u32 %v2065, %v2061
        %v2067 = vrot.slane %v2066, 4
        %v2069 = vshll.u32 %v1706, 16
        %v2071 = vrot.slane %v2069, 5
        %v2072 = vsel %vm1712, %v2067, %v2071
        %v2074 = vshrl.u32 %v1707, 16
        %v2076 = vrot.slane %v2074, 4
        %v2077 = vshll.u32 %v1707, 16
        %v2079 = vrot.slane %v2077, 5
        %v2080 = vor.u32 %v2076, %v2079
        %v2081 = vrot.slane %v2080, 4
        %v2083 = vshll.u32 %v1708, 16
        %v2085 = vrot.slane %v2083, 5
        %v2086 = vsel %vm1712, %v2081, %v2085
        %v2087 = vshrl.u32 %v1708, 16
        %v2089 = vrot.slane %v2087, 4
        %v2090 = vor.u32 %v2089, %v2085
        %v2091 = vrot.slane %v2090, 4
        %v2093 = vshll.u32 %v1709, 16
        %v2095 = vrot.slane %v2093, 5
        %v2096 = vsel %vm1712, %v2091, %v2095
        %s2097 = scalar_lea.vmem [#allocation6], 128
        %v2098 = vld [vmem:[%s2097] sm:$0xf]
        %v2099 = vld [vmem:[%s2097 + $0x4] sm:$0xf]
        %v2100 = vld [vmem:[%s2097 + $0x8] sm:$0xf]
        %v2101 = vld [vmem:[%s2097 + $0xc] sm:$0xf]
        %v2102 = vld [vmem:[%s2097 + $0x10] sm:$0xf]
        %v2103 = vld [vmem:[%s2097 + $0x14] sm:$0xf]
        %v2104 = vld [vmem:[%s2097 + $0x18] sm:$0xf]
        %v2105 = vld [vmem:[%s2097 + $0x1c] sm:$0xf]
        %v2106 = vld [vmem:[%s2097 + $0x20] sm:$0xf]
        %v2107 = vld [vmem:[%s2097 + $0x24] sm:$0xf]
        %v2108 = vld [vmem:[%s2097 + $0x28] sm:$0xf]
        %v2109 = vld [vmem:[%s2097 + $0x2c] sm:$0xf]
        %v2110 = vld [vmem:[%s2097 + $0x30] sm:$0xf]
        %v2111 = vld [vmem:[%s2097 + $0x34] sm:$0xf]
        %v2112 = vld [vmem:[%s2097 + $0x38] sm:$0xf]
        %v2113 = vld [vmem:[%s2097 + $0x3c] sm:$0xf]
        %v2114 = vunpack.c.l.b16 %v1726
        %v2115 = vunpack.c.l.b16 %v1736
        %v2116 = vunpack.c.l.b16 %v1750
        %v2117 = vunpack.c.l.b16 %v1760
        %v2118 = vunpack.c.l.b16 %v1774
        %v2119 = vunpack.c.l.b16 %v1784
        %v2120 = vunpack.c.l.b16 %v1798
        %v2121 = vunpack.c.l.b16 %v1808
        %v2122 = vunpack.c.l.b16 %v1822
        %v2123 = vunpack.c.l.b16 %v1832
        %v2124 = vunpack.c.l.b16 %v1846
        %v2125 = vunpack.c.l.b16 %v1856
        %v2126 = vunpack.c.l.b16 %v1870
        %v2127 = vunpack.c.l.b16 %v1880
        %v2128 = vunpack.c.l.b16 %v1894
        %v2129 = vunpack.c.l.b16 %v1904
        %v2130 = vunpack.c.l.b16 %v1918
        %v2131 = vunpack.c.l.b16 %v1928
        %v2132 = vunpack.c.l.b16 %v1942
        %v2133 = vunpack.c.l.b16 %v1952
        %v2134 = vunpack.c.l.b16 %v1966
        %v2135 = vunpack.c.l.b16 %v1976
        %v2136 = vunpack.c.l.b16 %v1990
        %v2137 = vunpack.c.l.b16 %v2000
        %v2138 = vunpack.c.l.b16 %v2014
        %v2139 = vunpack.c.l.b16 %v2024
        %v2140 = vunpack.c.l.b16 %v2038
        %v2141 = vunpack.c.l.b16 %v2048
        %v2142 = vunpack.c.l.b16 %v2062
        %v2143 = vunpack.c.l.b16 %v2072
        %v2144 = vunpack.c.l.b16 %v2086
        %v2145 = vunpack.c.l.b16 %v2096
        %v2146 = vpack.c.b16 %v2115, %v2114
        %v2147 = vpack.c.b16 %v2117, %v2116
        %v2148 = vpack.c.b16 %v2119, %v2118
        %v2149 = vpack.c.b16 %v2121, %v2120
        %v2150 = vpack.c.b16 %v2123, %v2122
        %v2151 = vpack.c.b16 %v2125, %v2124
        %v2152 = vpack.c.b16 %v2127, %v2126
        %v2153 = vpack.c.b16 %v2129, %v2128
        %v2154 = vpack.c.b16 %v2131, %v2130
        %v2155 = vpack.c.b16 %v2133, %v2132
        %v2156 = vpack.c.b16 %v2135, %v2134
        %v2157 = vpack.c.b16 %v2137, %v2136
        %v2158 = vpack.c.b16 %v2139, %v2138
        %v2159 = vpack.c.b16 %v2141, %v2140
        %v2160 = vpack.c.b16 %v2143, %v2142
        %v2161 = vpack.c.b16 %v2145, %v2144
        %v2194 = vunpack.c.l.b16 %v2098
        %v2195 = vunpack.c.l.b16 %v2099
        %v2196 = vunpack.c.l.b16 %v2100
        %v2197 = vunpack.c.l.b16 %v2101
        %v2198 = vunpack.c.l.b16 %v2102
        %v2199 = vunpack.c.l.b16 %v2103
        %v2200 = vunpack.c.l.b16 %v2104
        %v2201 = vunpack.c.l.b16 %v2105
        %v2202 = vunpack.c.l.b16 %v2106
        %v2203 = vunpack.c.l.b16 %v2107
        %v2204 = vunpack.c.l.b16 %v2108
        %v2205 = vunpack.c.l.b16 %v2109
        %v2206 = vunpack.c.l.b16 %v2110
        %v2207 = vunpack.c.l.b16 %v2111
        %v2208 = vunpack.c.l.b16 %v2112
        %v2209 = vunpack.c.l.b16 %v2113
        %v2210 = vpack.c.b16 %v2195, %v2194
        %v2211 = vpack.c.b16 %v2197, %v2196
        %v2212 = vpack.c.b16 %v2199, %v2198
        %v2213 = vpack.c.b16 %v2201, %v2200
        %v2214 = vpack.c.b16 %v2203, %v2202
        %v2215 = vpack.c.b16 %v2205, %v2204
        %v2216 = vpack.c.b16 %v2207, %v2206
        %v2217 = vpack.c.b16 %v2209, %v2208
        %2226 = vmatprep.subr.bf16.mxu0 0
        %2227 = vmatpush1.bf16.msra.mxu0 %v2217
        %2228 = vmatprep.subr.bf16.mxu0 0
        %2229 = vmatpush1.bf16.msra.mxu0 %v2216
        %2230 = vmatprep.subr.bf16.mxu0 0
        %2231 = vmatpush1.bf16.msra.mxu0 %v2215
        %2232 = vmatprep.subr.bf16.mxu0 0
        %2233 = vmatpush1.bf16.msra.mxu0 %v2214
        %2234 = vmatprep.subr.bf16.mxu0 0
        %2235 = vmatpush1.bf16.msra.mxu0 %v2213
        %2236 = vmatprep.subr.bf16.mxu0 0
        %2237 = vmatpush1.bf16.msra.mxu0 %v2212
        %2238 = vmatprep.subr.bf16.mxu0 0
        %2239 = vmatpush1.bf16.msra.mxu0 %v2211
        %2240 = vmatprep.subr.bf16.mxu0 0
        %2241 = vmatpush1.bf16.msra.mxu0 %v2210
        %2242 = vmatprep.subr.bf16.mxu0 0
        %2243 = vmatpush2.bf16.msra.mxu0 0
        %2244 = vmatprep.subr.bf16.mxu0 0
        %2245 = vmatpush2.bf16.msra.mxu0 0
        %2246 = vmatprep.subr.bf16.mxu0 0
        %2247 = vmatpush2.bf16.msra.mxu0 0
        %2248 = vmatprep.subr.bf16.mxu0 0
        %2249 = vmatpush2.bf16.msra.mxu0 0
        %2250 = vmatprep.subr.bf16.mxu0 0
        %2251 = vmatpush2.bf16.msra.mxu0 0
        %2252 = vmatprep.subr.bf16.mxu0 0
        %2253 = vmatpush2.bf16.msra.mxu0 0
        %2254 = vmatprep.subr.bf16.mxu0 0
        %2255 = vmatpush2.bf16.msra.mxu0 0
        %2256 = vmatprep.subr.bf16.mxu0 0
        %2257 = vmatpush2.bf16.msra.mxu0 0
        %2258 = vmatprep.mubr.bf16.mxu0 0
        %2259 = vmatmul.mubr.bf16.gmra.mxu0 %v2146
        %v2260 = vpop.f32.mrf.mxu0
        %v2261 = vadd.f32 0.0, %v2260
        %v2262 = vpop.f32.mrf.mxu0
        %v2263 = vpop.f32.mrf.mxu0
        %v2264 = vadd.f32 0.0, %v2263
        %v2265 = vpop.f32.mrf.mxu0
        %2266 = vmatprep.mubr.bf16.mxu0 0
        %2267 = vmatmul.mubr.bf16.gmra.mxu0 %v2147
        %v2268 = vpop.f32.mrf.mxu0
        %v2269 = vadd.f32 0.0, %v2268
        %v2270 = vpop.f32.mrf.mxu0
        %v2271 = vpop.f32.mrf.mxu0
        %v2272 = vadd.f32 0.0, %v2271
        %v2273 = vpop.f32.mrf.mxu0
        %2274 = vmatprep.mubr.bf16.mxu0 0
        %2275 = vmatmul.mubr.bf16.gmra.mxu0 %v2148
        %v2276 = vpop.f32.mrf.mxu0
        %v2277 = vadd.f32 0.0, %v2276
        %v2278 = vpop.f32.mrf.mxu0
        %v2279 = vpop.f32.mrf.mxu0
        %v2280 = vadd.f32 0.0, %v2279
        %v2281 = vpop.f32.mrf.mxu0
        %2282 = vmatprep.mubr.bf16.mxu0 0
        %2283 = vmatmul.mubr.bf16.gmra.mxu0 %v2149
        %v2284 = vpop.f32.mrf.mxu0
        %v2285 = vadd.f32 0.0, %v2284
        %v2286 = vpop.f32.mrf.mxu0
        %v2287 = vpop.f32.mrf.mxu0
        %v2288 = vadd.f32 0.0, %v2287
        %v2289 = vpop.f32.mrf.mxu0
        %2290 = vmatprep.mubr.bf16.mxu0 0
        %2291 = vmatmul.mubr.bf16.gmra.mxu0 %v2150
        %v2292 = vpop.f32.mrf.mxu0
        %v2293 = vadd.f32 0.0, %v2292
        %v2294 = vpop.f32.mrf.mxu0
        %v2295 = vpop.f32.mrf.mxu0
        %v2296 = vadd.f32 0.0, %v2295
        %v2297 = vpop.f32.mrf.mxu0
        %2298 = vmatprep.mubr.bf16.mxu0 0
        %2299 = vmatmul.mubr.bf16.gmra.mxu0 %v2151
        %v2300 = vpop.f32.mrf.mxu0
        %v2301 = vadd.f32 0.0, %v2300
        %v2302 = vpop.f32.mrf.mxu0
        %v2303 = vpop.f32.mrf.mxu0
        %v2304 = vadd.f32 0.0, %v2303
        %v2305 = vpop.f32.mrf.mxu0
        %2306 = vmatprep.mubr.bf16.mxu0 0
        %2307 = vmatmul.mubr.bf16.gmra.mxu0 %v2152
        %v2308 = vpop.f32.mrf.mxu0
        %v2309 = vadd.f32 0.0, %v2308
        %v2310 = vpop.f32.mrf.mxu0
        %v2311 = vpop.f32.mrf.mxu0
        %v2312 = vadd.f32 0.0, %v2311
        %v2313 = vpop.f32.mrf.mxu0
        %2314 = vmatprep.mubr.bf16.mxu0 0
        %2315 = vmatmul.mubr.bf16.gmra.mxu0 %v2153
        %v2316 = vpop.f32.mrf.mxu0
        %v2317 = vadd.f32 0.0, %v2316
        %v2318 = vpop.f32.mrf.mxu0
        %v2319 = vpop.f32.mrf.mxu0
        %v2320 = vadd.f32 0.0, %v2319
        %v2321 = vpop.f32.mrf.mxu0
        %2322 = vmatprep.mubr.bf16.mxu0 0
        %2323 = vmatmul.mubr.bf16.gmra.mxu0 %v2154
        %v2324 = vpop.f32.mrf.mxu0
        %v2325 = vadd.f32 0.0, %v2324
        %v2326 = vpop.f32.mrf.mxu0
        %v2327 = vpop.f32.mrf.mxu0
        %v2328 = vadd.f32 0.0, %v2327
        %v2329 = vpop.f32.mrf.mxu0
        %2330 = vmatprep.mubr.bf16.mxu0 0
        %2331 = vmatmul.mubr.bf16.gmra.mxu0 %v2155
        %v2332 = vpop.f32.mrf.mxu0
        %v2333 = vadd.f32 0.0, %v2332
        %v2334 = vpop.f32.mrf.mxu0
        %v2335 = vpop.f32.mrf.mxu0
        %v2336 = vadd.f32 0.0, %v2335
        %v2337 = vpop.f32.mrf.mxu0
        %2338 = vmatprep.mubr.bf16.mxu0 0
        %2339 = vmatmul.mubr.bf16.gmra.mxu0 %v2156
        %v2340 = vpop.f32.mrf.mxu0
        %v2341 = vadd.f32 0.0, %v2340
        %v2342 = vpop.f32.mrf.mxu0
        %v2343 = vpop.f32.mrf.mxu0
        %v2344 = vadd.f32 0.0, %v2343
        %v2345 = vpop.f32.mrf.mxu0
        %2346 = vmatprep.mubr.bf16.mxu0 0
        %2347 = vmatmul.mubr.bf16.gmra.mxu0 %v2157
        %v2348 = vpop.f32.mrf.mxu0
        %v2349 = vadd.f32 0.0, %v2348
        %v2350 = vpop.f32.mrf.mxu0
        %v2351 = vpop.f32.mrf.mxu0
        %v2352 = vadd.f32 0.0, %v2351
        %v2353 = vpop.f32.mrf.mxu0
        %2354 = vmatprep.mubr.bf16.mxu0 0
        %2355 = vmatmul.mubr.bf16.gmra.mxu0 %v2158
        %v2356 = vpop.f32.mrf.mxu0
        %v2357 = vadd.f32 0.0, %v2356
        %v2358 = vpop.f32.mrf.mxu0
        %v2359 = vpop.f32.mrf.mxu0
        %v2360 = vadd.f32 0.0, %v2359
        %v2361 = vpop.f32.mrf.mxu0
        %2362 = vmatprep.mubr.bf16.mxu0 0
        %2363 = vmatmul.mubr.bf16.gmra.mxu0 %v2159
        %v2364 = vpop.f32.mrf.mxu0
        %v2365 = vadd.f32 0.0, %v2364
        %v2366 = vpop.f32.mrf.mxu0
        %v2367 = vpop.f32.mrf.mxu0
        %v2368 = vadd.f32 0.0, %v2367
        %v2369 = vpop.f32.mrf.mxu0
        %2370 = vmatprep.mubr.bf16.mxu0 0
        %2371 = vmatmul.mubr.bf16.gmra.mxu0 %v2160
        %v2372 = vpop.f32.mrf.mxu0
        %v2373 = vadd.f32 0.0, %v2372
        %v2374 = vpop.f32.mrf.mxu0
        %v2375 = vpop.f32.mrf.mxu0
        %v2376 = vadd.f32 0.0, %v2375
        %v2377 = vpop.f32.mrf.mxu0
        %2378 = vmatprep.mubr.bf16.mxu0 0
        %2379 = vmatmul.mubr.bf16.gmra.mxu0 %v2161
        %v2380 = vpop.f32.mrf.mxu0
        %v2381 = vadd.f32 0.0, %v2380
        %v2382 = vpop.f32.mrf.mxu0
        %v2383 = vpop.f32.mrf.mxu0
        %v2384 = vadd.f32 0.0, %v2383
        %v2385 = vpop.f32.mrf.mxu0
        %2386 = vdwg.mxu0
        %v2387 = vadd.f32 %v1536, %v2261
        %v2388 = vadd.f32 %v1539, %v2264
        %v2389 = vadd.f32 %v1544, %v2269
        %v2390 = vadd.f32 %v1547, %v2272
        %v2391 = vadd.f32 %v1552, %v2277
        %v2392 = vadd.f32 %v1555, %v2280
        %v2393 = vadd.f32 %v1560, %v2285
        %v2394 = vadd.f32 %v1563, %v2288
        %v2395 = vadd.f32 %v1568, %v2293
        %v2396 = vadd.f32 %v1571, %v2296
        %v2397 = vadd.f32 %v1576, %v2301
        %v2398 = vadd.f32 %v1579, %v2304
        %v2399 = vadd.f32 %v1584, %v2309
        %v2400 = vadd.f32 %v1587, %v2312
        %v2401 = vadd.f32 %v1592, %v2317
        %v2402 = vadd.f32 %v1595, %v2320
        %v2403 = vadd.f32 %v1600, %v2325
        %v2404 = vadd.f32 %v1603, %v2328
        %v2405 = vadd.f32 %v1608, %v2333
        %v2406 = vadd.f32 %v1611, %v2336
        %v2407 = vadd.f32 %v1616, %v2341
        %v2408 = vadd.f32 %v1619, %v2344
        %v2409 = vadd.f32 %v1624, %v2349
        %v2410 = vadd.f32 %v1627, %v2352
        %v2411 = vadd.f32 %v1632, %v2357
        %v2412 = vadd.f32 %v1635, %v2360
        %v2413 = vadd.f32 %v1640, %v2365
        %v2414 = vadd.f32 %v1643, %v2368
        %v2415 = vadd.f32 %v1648, %v2373
        %v2416 = vadd.f32 %v1651, %v2376
        %v2417 = vadd.f32 %v1656, %v2381
        %v2418 = vadd.f32 %v1659, %v2384
        %v2419 = vld [vmem:[%s616 + $0x4] sm:$0x8]
        %v2420 = vld [vmem:[%s616 + $0x8] sm:$0xf]
        %v2421 = vld [vmem:[%s616 + $0xc] sm:$0xf]
        %v2422 = vld [vmem:[%s616 + $0x18] sm:$0x8]
        %v2423 = vld [vmem:[%s616 + $0x1c] sm:$0xf]
        %v2424 = vld [vmem:[%s616 + $0x20] sm:$0xf]
        %v2425 = vld [vmem:[%s616 + $0x2c] sm:$0x8]
        %v2426 = vld [vmem:[%s616 + $0x30] sm:$0xf]
        %v2427 = vld [vmem:[%s616 + $0x34] sm:$0xf]
        %v2428 = vld [vmem:[%s616 + $0x40] sm:$0x8]
        %v2429 = vld [vmem:[%s616 + $0x44] sm:$0xf]
        %v2430 = vld [vmem:[%s616 + $0x48] sm:$0xf]
        %v2431 = vld [vmem:[%s616 + $0x54] sm:$0x8]
        %v2432 = vld [vmem:[%s616 + $0x58] sm:$0xf]
        %v2433 = vld [vmem:[%s616 + $0x5c] sm:$0xf]
        %v2434 = vld [vmem:[%s616 + $0x68] sm:$0x8]
        %v2435 = vld [vmem:[%s616 + $0x6c] sm:$0xf]
        %v2436 = vld [vmem:[%s616 + $0x70] sm:$0xf]
        %v2437 = vld [vmem:[%s616 + $0x7c] sm:$0x8]
        %v2438 = vld [vmem:[%s616 + $0x80] sm:$0xf]
        %v2439 = vld [vmem:[%s616 + $0x84] sm:$0xf]
        %v2440 = vld [vmem:[%s616 + $0x90] sm:$0x8]
        %v2441 = vld [vmem:[%s616 + $0x94] sm:$0xf]
        %v2442 = vld [vmem:[%s616 + $0x98] sm:$0xf]
        %v2443 = vld [vmem:[%s616 + $0xa4] sm:$0x8]
        %v2444 = vld [vmem:[%s616 + $0xa8] sm:$0xf]
        %v2445 = vld [vmem:[%s616 + $0xac] sm:$0xf]
        %v2446 = vld [vmem:[%s616 + $0xb8] sm:$0x8]
        %v2447 = vld [vmem:[%s616 + $0xbc] sm:$0xf]
        %v2448 = vld [vmem:[%s616 + $0xc0] sm:$0xf]
        %v2449 = vld [vmem:[%s616 + $0xcc] sm:$0x8]
        %v2450 = vld [vmem:[%s616 + $0xd0] sm:$0xf]
        %v2451 = vld [vmem:[%s616 + $0xd4] sm:$0xf]
        %v2452 = vld [vmem:[%s616 + $0xe0] sm:$0x8]
        %v2453 = vld [vmem:[%s616 + $0xe4] sm:$0xf]
        %v2454 = vld [vmem:[%s616 + $0xe8] sm:$0xf]
        %v2455 = vld [vmem:[%s616 + $0xf4] sm:$0x8]
        %v2456 = vld [vmem:[%s616 + $0xf8] sm:$0xf]
        %v2457 = vld [vmem:[%s616 + $0xfc] sm:$0xf]
        %v2458 = vld [vmem:[%s616 + $0x108] sm:$0x8]
        %v2459 = vld [vmem:[%s616 + $0x10c] sm:$0xf]
        %v2460 = vld [vmem:[%s616 + $0x110] sm:$0xf]
        %v2461 = vld [vmem:[%s616 + $0x11c] sm:$0x8]
        %v2462 = vld [vmem:[%s616 + $0x120] sm:$0xf]
        %v2463 = vld [vmem:[%s616 + $0x124] sm:$0xf]
        %v2464 = vld [vmem:[%s616 + $0x130] sm:$0x8]
        %v2465 = vld [vmem:[%s616 + $0x134] sm:$0xf]
        %v2466 = vld [vmem:[%s616 + $0x138] sm:$0xf]
        %v2468 = vshrl.u32 %v2419, 16
        %v2470 = vrot.slane %v2468, 7
        %v2471 = vrot.slane %v2470, 4
        %v2473 = vshrl.u32 %v2420, 16
        %v2475 = vrot.slane %v2473, 7
        %v2476 = vshll.u32 %v2420, 16
        %v2478 = vor.u32 %v2475, %v2476
        %v2479 = vsel %vm698, %v2471, %v2478
        %v2480 = vrot.slane %v2475, 4
        %v2482 = vshrl.u32 %v2421, 16
        %v2484 = vrot.slane %v2482, 7
        %v2485 = vshll.u32 %v2421, 16
        %v2487 = vor.u32 %v2484, %v2485
        %v2488 = vsel %vm698, %v2480, %v2487
        %v2490 = vshrl.u32 %v2422, 16
        %v2492 = vrot.slane %v2490, 7
        %v2493 = vrot.slane %v2492, 4
        %v2495 = vshrl.u32 %v2423, 16
        %v2497 = vrot.slane %v2495, 7
        %v2498 = vshll.u32 %v2423, 16
        %v2500 = vor.u32 %v2497, %v2498
        %v2501 = vsel %vm698, %v2493, %v2500
        %v2502 = vrot.slane %v2497, 4
        %v2504 = vshrl.u32 %v2424, 16
        %v2506 = vrot.slane %v2504, 7
        %v2507 = vshll.u32 %v2424, 16
        %v2509 = vor.u32 %v2506, %v2507
        %v2510 = vsel %vm698, %v2502, %v2509
        %v2512 = vshrl.u32 %v2425, 16
        %v2514 = vrot.slane %v2512, 7
        %v2515 = vrot.slane %v2514, 4
        %v2517 = vshrl.u32 %v2426, 16
        %v2519 = vrot.slane %v2517, 7
        %v2520 = vshll.u32 %v2426, 16
        %v2522 = vor.u32 %v2519, %v2520
        %v2523 = vsel %vm698, %v2515, %v2522
        %v2524 = vrot.slane %v2519, 4
        %v2526 = vshrl.u32 %v2427, 16
        %v2528 = vrot.slane %v2526, 7
        %v2529 = vshll.u32 %v2427, 16
        %v2531 = vor.u32 %v2528, %v2529
        %v2532 = vsel %vm698, %v2524, %v2531
        %v2534 = vshrl.u32 %v2428, 16
        %v2536 = vrot.slane %v2534, 7
        %v2537 = vrot.slane %v2536, 4
        %v2539 = vshrl.u32 %v2429, 16
        %v2541 = vrot.slane %v2539, 7
        %v2542 = vshll.u32 %v2429, 16
        %v2544 = vor.u32 %v2541, %v2542
        %v2545 = vsel %vm698, %v2537, %v2544
        %v2546 = vrot.slane %v2541, 4
        %v2548 = vshrl.u32 %v2430, 16
        %v2550 = vrot.slane %v2548, 7
        %v2551 = vshll.u32 %v2430, 16
        %v2553 = vor.u32 %v2550, %v2551
        %v2554 = vsel %vm698, %v2546, %v2553
        %v2556 = vshrl.u32 %v2431, 16
        %v2558 = vrot.slane %v2556, 7
        %v2559 = vrot.slane %v2558, 4
        %v2561 = vshrl.u32 %v2432, 16
        %v2563 = vrot.slane %v2561, 7
        %v2564 = vshll.u32 %v2432, 16
        %v2566 = vor.u32 %v2563, %v2564
        %v2567 = vsel %vm698, %v2559, %v2566
        %v2568 = vrot.slane %v2563, 4
        %v2570 = vshrl.u32 %v2433, 16
        %v2572 = vrot.slane %v2570, 7
        %v2573 = vshll.u32 %v2433, 16
        %v2575 = vor.u32 %v2572, %v2573
        %v2576 = vsel %vm698, %v2568, %v2575
        %v2578 = vshrl.u32 %v2434, 16
        %v2580 = vrot.slane %v2578, 7
        %v2581 = vrot.slane %v2580, 4
        %v2583 = vshrl.u32 %v2435, 16
        %v2585 = vrot.slane %v2583, 7
        %v2586 = vshll.u32 %v2435, 16
        %v2588 = vor.u32 %v2585, %v2586
        %v2589 = vsel %vm698, %v2581, %v2588
        %v2590 = vrot.slane %v2585, 4
        %v2592 = vshrl.u32 %v2436, 16
        %v2594 = vrot.slane %v2592, 7
        %v2595 = vshll.u32 %v2436, 16
        %v2597 = vor.u32 %v2594, %v2595
        %v2598 = vsel %vm698, %v2590, %v2597
        %v2600 = vshrl.u32 %v2437, 16
        %v2602 = vrot.slane %v2600, 7
        %v2603 = vrot.slane %v2602, 4
        %v2605 = vshrl.u32 %v2438, 16
        %v2607 = vrot.slane %v2605, 7
        %v2608 = vshll.u32 %v2438, 16
        %v2610 = vor.u32 %v2607, %v2608
        %v2611 = vsel %vm698, %v2603, %v2610
        %v2612 = vrot.slane %v2607, 4
        %v2614 = vshrl.u32 %v2439, 16
        %v2616 = vrot.slane %v2614, 7
        %v2617 = vshll.u32 %v2439, 16
        %v2619 = vor.u32 %v2616, %v2617
        %v2620 = vsel %vm698, %v2612, %v2619
        %v2622 = vshrl.u32 %v2440, 16
        %v2624 = vrot.slane %v2622, 7
        %v2625 = vrot.slane %v2624, 4
        %v2627 = vshrl.u32 %v2441, 16
        %v2629 = vrot.slane %v2627, 7
        %v2630 = vshll.u32 %v2441, 16
        %v2632 = vor.u32 %v2629, %v2630
        %v2633 = vsel %vm698, %v2625, %v2632
        %v2634 = vrot.slane %v2629, 4
        %v2636 = vshrl.u32 %v2442, 16
        %v2638 = vrot.slane %v2636, 7
        %v2639 = vshll.u32 %v2442, 16
        %v2641 = vor.u32 %v2638, %v2639
        %v2642 = vsel %vm698, %v2634, %v2641
        %v2644 = vshrl.u32 %v2443, 16
        %v2646 = vrot.slane %v2644, 7
        %v2647 = vrot.slane %v2646, 4
        %v2649 = vshrl.u32 %v2444, 16
        %v2651 = vrot.slane %v2649, 7
        %v2652 = vshll.u32 %v2444, 16
        %v2654 = vor.u32 %v2651, %v2652
        %v2655 = vsel %vm698, %v2647, %v2654
        %v2656 = vrot.slane %v2651, 4
        %v2658 = vshrl.u32 %v2445, 16
        %v2660 = vrot.slane %v2658, 7
        %v2661 = vshll.u32 %v2445, 16
        %v2663 = vor.u32 %v2660, %v2661
        %v2664 = vsel %vm698, %v2656, %v2663
        %v2666 = vshrl.u32 %v2446, 16
        %v2668 = vrot.slane %v2666, 7
        %v2669 = vrot.slane %v2668, 4
        %v2671 = vshrl.u32 %v2447, 16
        %v2673 = vrot.slane %v2671, 7
        %v2674 = vshll.u32 %v2447, 16
        %v2676 = vor.u32 %v2673, %v2674
        %v2677 = vsel %vm698, %v2669, %v2676
        %v2678 = vrot.slane %v2673, 4
        %v2680 = vshrl.u32 %v2448, 16
        %v2682 = vrot.slane %v2680, 7
        %v2683 = vshll.u32 %v2448, 16
        %v2685 = vor.u32 %v2682, %v2683
        %v2686 = vsel %vm698, %v2678, %v2685
        %v2688 = vshrl.u32 %v2449, 16
        %v2690 = vrot.slane %v2688, 7
        %v2691 = vrot.slane %v2690, 4
        %v2693 = vshrl.u32 %v2450, 16
        %v2695 = vrot.slane %v2693, 7
        %v2696 = vshll.u32 %v2450, 16
        %v2698 = vor.u32 %v2695, %v2696
        %v2699 = vsel %vm698, %v2691, %v2698
        %v2700 = vrot.slane %v2695, 4
        %v2702 = vshrl.u32 %v2451, 16
        %v2704 = vrot.slane %v2702, 7
        %v2705 = vshll.u32 %v2451, 16
        %v2707 = vor.u32 %v2704, %v2705
        %v2708 = vsel %vm698, %v2700, %v2707
        %v2710 = vshrl.u32 %v2452, 16
        %v2712 = vrot.slane %v2710, 7
        %v2713 = vrot.slane %v2712, 4
        %v2715 = vshrl.u32 %v2453, 16
        %v2717 = vrot.slane %v2715, 7
        %v2718 = vshll.u32 %v2453, 16
        %v2720 = vor.u32 %v2717, %v2718
        %v2721 = vsel %vm698, %v2713, %v2720
        %v2722 = vrot.slane %v2717, 4
        %v2724 = vshrl.u32 %v2454, 16
        %v2726 = vrot.slane %v2724, 7
        %v2727 = vshll.u32 %v2454, 16
        %v2729 = vor.u32 %v2726, %v2727
        %v2730 = vsel %vm698, %v2722, %v2729
        %v2732 = vshrl.u32 %v2455, 16
        %v2734 = vrot.slane %v2732, 7
        %v2735 = vrot.slane %v2734, 4
        %v2737 = vshrl.u32 %v2456, 16
        %v2739 = vrot.slane %v2737, 7
        %v2740 = vshll.u32 %v2456, 16
        %v2742 = vor.u32 %v2739, %v2740
        %v2743 = vsel %vm698, %v2735, %v2742
        %v2744 = vrot.slane %v2739, 4
        %v2746 = vshrl.u32 %v2457, 16
        %v2748 = vrot.slane %v2746, 7
        %v2749 = vshll.u32 %v2457, 16
        %v2751 = vor.u32 %v2748, %v2749
        %v2752 = vsel %vm698, %v2744, %v2751
        %v2754 = vshrl.u32 %v2458, 16
        %v2756 = vrot.slane %v2754, 7
        %v2757 = vrot.slane %v2756, 4
        %v2759 = vshrl.u32 %v2459, 16
        %v2761 = vrot.slane %v2759, 7
        %v2762 = vshll.u32 %v2459, 16
        %v2764 = vor.u32 %v2761, %v2762
        %v2765 = vsel %vm698, %v2757, %v2764
        %v2766 = vrot.slane %v2761, 4
        %v2768 = vshrl.u32 %v2460, 16
        %v2770 = vrot.slane %v2768, 7
        %v2771 = vshll.u32 %v2460, 16
        %v2773 = vor.u32 %v2770, %v2771
        %v2774 = vsel %vm698, %v2766, %v2773
        %v2776 = vshrl.u32 %v2461, 16
        %v2778 = vrot.slane %v2776, 7
        %v2779 = vrot.slane %v2778, 4
        %v2781 = vshrl.u32 %v2462, 16
        %v2783 = vrot.slane %v2781, 7
        %v2784 = vshll.u32 %v2462, 16
        %v2786 = vor.u32 %v2783, %v2784
        %v2787 = vsel %vm698, %v2779, %v2786
        %v2788 = vrot.slane %v2783, 4
        %v2790 = vshrl.u32 %v2463, 16
        %v2792 = vrot.slane %v2790, 7
        %v2793 = vshll.u32 %v2463, 16
        %v2795 = vor.u32 %v2792, %v2793
        %v2796 = vsel %vm698, %v2788, %v2795
        %v2798 = vshrl.u32 %v2464, 16
        %v2800 = vrot.slane %v2798, 7
        %v2801 = vrot.slane %v2800, 4
        %v2803 = vshrl.u32 %v2465, 16
        %v2805 = vrot.slane %v2803, 7
        %v2806 = vshll.u32 %v2465, 16
        %v2808 = vor.u32 %v2805, %v2806
        %v2809 = vsel %vm698, %v2801, %v2808
        %v2810 = vrot.slane %v2805, 4
        %v2812 = vshrl.u32 %v2466, 16
        %v2814 = vrot.slane %v2812, 7
        %v2815 = vshll.u32 %v2466, 16
        %v2817 = vor.u32 %v2814, %v2815
        %v2818 = vsel %vm698, %v2810, %v2817
        %s2819 = scalar_lea.vmem [#allocation6], 192
        %v2820 = vld [vmem:[%s2819] sm:$0xf]
        %v2821 = vld [vmem:[%s2819 + $0x4] sm:$0xf]
        %v2822 = vld [vmem:[%s2819 + $0x8] sm:$0xf]
        %v2823 = vld [vmem:[%s2819 + $0xc] sm:$0xf]
        %v2824 = vld [vmem:[%s2819 + $0x10] sm:$0xf]
        %v2825 = vld [vmem:[%s2819 + $0x14] sm:$0xf]
        %v2826 = vld [vmem:[%s2819 + $0x18] sm:$0xf]
        %v2827 = vld [vmem:[%s2819 + $0x1c] sm:$0xf]
        %v2828 = vld [vmem:[%s2819 + $0x20] sm:$0xf]
        %v2829 = vld [vmem:[%s2819 + $0x24] sm:$0xf]
        %v2830 = vld [vmem:[%s2819 + $0x28] sm:$0xf]
        %v2831 = vld [vmem:[%s2819 + $0x2c] sm:$0xf]
        %v2832 = vld [vmem:[%s2819 + $0x30] sm:$0xf]
        %v2833 = vld [vmem:[%s2819 + $0x34] sm:$0xf]
        %v2834 = vld [vmem:[%s2819 + $0x38] sm:$0xf]
        %v2835 = vld [vmem:[%s2819 + $0x3c] sm:$0xf]
        %v2836 = vunpack.c.l.b16 %v2479
        %v2837 = vunpack.c.l.b16 %v2488
        %v2838 = vunpack.c.l.b16 %v2501
        %v2839 = vunpack.c.l.b16 %v2510
        %v2840 = vunpack.c.l.b16 %v2523
        %v2841 = vunpack.c.l.b16 %v2532
        %v2842 = vunpack.c.l.b16 %v2545
        %v2843 = vunpack.c.l.b16 %v2554
        %v2844 = vunpack.c.l.b16 %v2567
        %v2845 = vunpack.c.l.b16 %v2576
        %v2846 = vunpack.c.l.b16 %v2589
        %v2847 = vunpack.c.l.b16 %v2598
        %v2848 = vunpack.c.l.b16 %v2611
        %v2849 = vunpack.c.l.b16 %v2620
        %v2850 = vunpack.c.l.b16 %v2633
        %v2851 = vunpack.c.l.b16 %v2642
        %v2852 = vunpack.c.l.b16 %v2655
        %v2853 = vunpack.c.l.b16 %v2664
        %v2854 = vunpack.c.l.b16 %v2677
        %v2855 = vunpack.c.l.b16 %v2686
        %v2856 = vunpack.c.l.b16 %v2699
        %v2857 = vunpack.c.l.b16 %v2708
        %v2858 = vunpack.c.l.b16 %v2721
        %v2859 = vunpack.c.l.b16 %v2730
        %v2860 = vunpack.c.l.b16 %v2743
        %v2861 = vunpack.c.l.b16 %v2752
        %v2862 = vunpack.c.l.b16 %v2765
        %v2863 = vunpack.c.l.b16 %v2774
        %v2864 = vunpack.c.l.b16 %v2787
        %v2865 = vunpack.c.l.b16 %v2796
        %v2866 = vunpack.c.l.b16 %v2809
        %v2867 = vunpack.c.l.b16 %v2818
        %v2868 = vpack.c.b16 %v2837, %v2836
        %v2869 = vpack.c.b16 %v2839, %v2838
        %v2870 = vpack.c.b16 %v2841, %v2840
        %v2871 = vpack.c.b16 %v2843, %v2842
        %v2872 = vpack.c.b16 %v2845, %v2844
        %v2873 = vpack.c.b16 %v2847, %v2846
        %v2874 = vpack.c.b16 %v2849, %v2848
        %v2875 = vpack.c.b16 %v2851, %v2850
        %v2876 = vpack.c.b16 %v2853, %v2852
        %v2877 = vpack.c.b16 %v2855, %v2854
        %v2878 = vpack.c.b16 %v2857, %v2856
        %v2879 = vpack.c.b16 %v2859, %v2858
        %v2880 = vpack.c.b16 %v2861, %v2860
        %v2881 = vpack.c.b16 %v2863, %v2862
        %v2882 = vpack.c.b16 %v2865, %v2864
        %v2883 = vpack.c.b16 %v2867, %v2866
        %v2916 = vunpack.c.l.b16 %v2820
        %v2917 = vunpack.c.l.b16 %v2821
        %v2918 = vunpack.c.l.b16 %v2822
        %v2919 = vunpack.c.l.b16 %v2823
        %v2920 = vunpack.c.l.b16 %v2824
        %v2921 = vunpack.c.l.b16 %v2825
        %v2922 = vunpack.c.l.b16 %v2826
        %v2923 = vunpack.c.l.b16 %v2827
        %v2924 = vunpack.c.l.b16 %v2828
        %v2925 = vunpack.c.l.b16 %v2829
        %v2926 = vunpack.c.l.b16 %v2830
        %v2927 = vunpack.c.l.b16 %v2831
        %v2928 = vunpack.c.l.b16 %v2832
        %v2929 = vunpack.c.l.b16 %v2833
        %v2930 = vunpack.c.l.b16 %v2834
        %v2931 = vunpack.c.l.b16 %v2835
        %v2932 = vpack.c.b16 %v2917, %v2916
        %v2933 = vpack.c.b16 %v2919, %v2918
        %v2934 = vpack.c.b16 %v2921, %v2920
        %v2935 = vpack.c.b16 %v2923, %v2922
        %v2936 = vpack.c.b16 %v2925, %v2924
        %v2937 = vpack.c.b16 %v2927, %v2926
        %v2938 = vpack.c.b16 %v2929, %v2928
        %v2939 = vpack.c.b16 %v2931, %v2930
        %2948 = vmatprep.subr.bf16.mxu0 0
        %2949 = vmatpush1.bf16.msra.mxu0 %v2939
        %2950 = vmatprep.subr.bf16.mxu0 0
        %2951 = vmatpush1.bf16.msra.mxu0 %v2938
        %2952 = vmatprep.subr.bf16.mxu0 0
        %2953 = vmatpush1.bf16.msra.mxu0 %v2937
        %2954 = vmatprep.subr.bf16.mxu0 0
        %2955 = vmatpush1.bf16.msra.mxu0 %v2936
        %2956 = vmatprep.subr.bf16.mxu0 0
        %2957 = vmatpush1.bf16.msra.mxu0 %v2935
        %2958 = vmatprep.subr.bf16.mxu0 0
        %2959 = vmatpush1.bf16.msra.mxu0 %v2934
        %2960 = vmatprep.subr.bf16.mxu0 0
        %2961 = vmatpush1.bf16.msra.mxu0 %v2933
        %2962 = vmatprep.subr.bf16.mxu0 0
        %2963 = vmatpush1.bf16.msra.mxu0 %v2932
        %2964 = vmatprep.subr.bf16.mxu0 0
        %2965 = vmatpush2.bf16.msra.mxu0 0
        %2966 = vmatprep.subr.bf16.mxu0 0
        %2967 = vmatpush2.bf16.msra.mxu0 0
        %2968 = vmatprep.subr.bf16.mxu0 0
        %2969 = vmatpush2.bf16.msra.mxu0 0
        %2970 = vmatprep.subr.bf16.mxu0 0
        %2971 = vmatpush2.bf16.msra.mxu0 0
        %2972 = vmatprep.subr.bf16.mxu0 0
        %2973 = vmatpush2.bf16.msra.mxu0 0
        %2974 = vmatprep.subr.bf16.mxu0 0
        %2975 = vmatpush2.bf16.msra.mxu0 0
        %2976 = vmatprep.subr.bf16.mxu0 0
        %2977 = vmatpush2.bf16.msra.mxu0 0
        %2978 = vmatprep.subr.bf16.mxu0 0
        %2979 = vmatpush2.bf16.msra.mxu0 0
        %2980 = vmatprep.mubr.bf16.mxu0 0
        %2981 = vmatmul.mubr.bf16.gmra.mxu0 %v2868
        %v2982 = vpop.f32.mrf.mxu0
        %v2983 = vadd.f32 0.0, %v2982
        %v2984 = vpop.f32.mrf.mxu0
        %v2985 = vpop.f32.mrf.mxu0
        %v2986 = vadd.f32 0.0, %v2985
        %v2987 = vpop.f32.mrf.mxu0
        %2988 = vmatprep.mubr.bf16.mxu0 0
        %2989 = vmatmul.mubr.bf16.gmra.mxu0 %v2869
        %v2990 = vpop.f32.mrf.mxu0
        %v2991 = vadd.f32 0.0, %v2990
        %v2992 = vpop.f32.mrf.mxu0
        %v2993 = vpop.f32.mrf.mxu0
        %v2994 = vadd.f32 0.0, %v2993
        %v2995 = vpop.f32.mrf.mxu0
        %2996 = vmatprep.mubr.bf16.mxu0 0
        %2997 = vmatmul.mubr.bf16.gmra.mxu0 %v2870
        %v2998 = vpop.f32.mrf.mxu0
        %v2999 = vadd.f32 0.0, %v2998
        %v3000 = vpop.f32.mrf.mxu0
        %v3001 = vpop.f32.mrf.mxu0
        %v3002 = vadd.f32 0.0, %v3001
        %v3003 = vpop.f32.mrf.mxu0
        %3004 = vmatprep.mubr.bf16.mxu0 0
        %3005 = vmatmul.mubr.bf16.gmra.mxu0 %v2871
        %v3006 = vpop.f32.mrf.mxu0
        %v3007 = vadd.f32 0.0, %v3006
        %v3008 = vpop.f32.mrf.mxu0
        %v3009 = vpop.f32.mrf.mxu0
        %v3010 = vadd.f32 0.0, %v3009
        %v3011 = vpop.f32.mrf.mxu0
        %3012 = vmatprep.mubr.bf16.mxu0 0
        %3013 = vmatmul.mubr.bf16.gmra.mxu0 %v2872
        %v3014 = vpop.f32.mrf.mxu0
        %v3015 = vadd.f32 0.0, %v3014
        %v3016 = vpop.f32.mrf.mxu0
        %v3017 = vpop.f32.mrf.mxu0
        %v3018 = vadd.f32 0.0, %v3017
        %v3019 = vpop.f32.mrf.mxu0
        %3020 = vmatprep.mubr.bf16.mxu0 0
        %3021 = vmatmul.mubr.bf16.gmra.mxu0 %v2873
        %v3022 = vpop.f32.mrf.mxu0
        %v3023 = vadd.f32 0.0, %v3022
        %v3024 = vpop.f32.mrf.mxu0
        %v3025 = vpop.f32.mrf.mxu0
        %v3026 = vadd.f32 0.0, %v3025
        %v3027 = vpop.f32.mrf.mxu0
        %3028 = vmatprep.mubr.bf16.mxu0 0
        %3029 = vmatmul.mubr.bf16.gmra.mxu0 %v2874
        %v3030 = vpop.f32.mrf.mxu0
        %v3031 = vadd.f32 0.0, %v3030
        %v3032 = vpop.f32.mrf.mxu0
        %v3033 = vpop.f32.mrf.mxu0
        %v3034 = vadd.f32 0.0, %v3033
        %v3035 = vpop.f32.mrf.mxu0
        %3036 = vmatprep.mubr.bf16.mxu0 0
        %3037 = vmatmul.mubr.bf16.gmra.mxu0 %v2875
        %v3038 = vpop.f32.mrf.mxu0
        %v3039 = vadd.f32 0.0, %v3038
        %v3040 = vpop.f32.mrf.mxu0
        %v3041 = vpop.f32.mrf.mxu0
        %v3042 = vadd.f32 0.0, %v3041
        %v3043 = vpop.f32.mrf.mxu0
        %3044 = vmatprep.mubr.bf16.mxu0 0
        %3045 = vmatmul.mubr.bf16.gmra.mxu0 %v2876
        %v3046 = vpop.f32.mrf.mxu0
        %v3047 = vadd.f32 0.0, %v3046
        %v3048 = vpop.f32.mrf.mxu0
        %v3049 = vpop.f32.mrf.mxu0
        %v3050 = vadd.f32 0.0, %v3049
        %v3051 = vpop.f32.mrf.mxu0
        %3052 = vmatprep.mubr.bf16.mxu0 0
        %3053 = vmatmul.mubr.bf16.gmra.mxu0 %v2877
        %v3054 = vpop.f32.mrf.mxu0
        %v3055 = vadd.f32 0.0, %v3054
        %v3056 = vpop.f32.mrf.mxu0
        %v3057 = vpop.f32.mrf.mxu0
        %v3058 = vadd.f32 0.0, %v3057
        %v3059 = vpop.f32.mrf.mxu0
        %3060 = vmatprep.mubr.bf16.mxu0 0
        %3061 = vmatmul.mubr.bf16.gmra.mxu0 %v2878
        %v3062 = vpop.f32.mrf.mxu0
        %v3063 = vadd.f32 0.0, %v3062
        %v3064 = vpop.f32.mrf.mxu0
        %v3065 = vpop.f32.mrf.mxu0
        %v3066 = vadd.f32 0.0, %v3065
        %v3067 = vpop.f32.mrf.mxu0
        %3068 = vmatprep.mubr.bf16.mxu0 0
        %3069 = vmatmul.mubr.bf16.gmra.mxu0 %v2879
        %v3070 = vpop.f32.mrf.mxu0
        %v3071 = vadd.f32 0.0, %v3070
        %v3072 = vpop.f32.mrf.mxu0
        %v3073 = vpop.f32.mrf.mxu0
        %v3074 = vadd.f32 0.0, %v3073
        %v3075 = vpop.f32.mrf.mxu0
        %3076 = vmatprep.mubr.bf16.mxu0 0
        %3077 = vmatmul.mubr.bf16.gmra.mxu0 %v2880
        %v3078 = vpop.f32.mrf.mxu0
        %v3079 = vadd.f32 0.0, %v3078
        %v3080 = vpop.f32.mrf.mxu0
        %v3081 = vpop.f32.mrf.mxu0
        %v3082 = vadd.f32 0.0, %v3081
        %v3083 = vpop.f32.mrf.mxu0
        %3084 = vmatprep.mubr.bf16.mxu0 0
        %3085 = vmatmul.mubr.bf16.gmra.mxu0 %v2881
        %v3086 = vpop.f32.mrf.mxu0
        %v3087 = vadd.f32 0.0, %v3086
        %v3088 = vpop.f32.mrf.mxu0
        %v3089 = vpop.f32.mrf.mxu0
        %v3090 = vadd.f32 0.0, %v3089
        %v3091 = vpop.f32.mrf.mxu0
        %3092 = vmatprep.mubr.bf16.mxu0 0
        %3093 = vmatmul.mubr.bf16.gmra.mxu0 %v2882
        %v3094 = vpop.f32.mrf.mxu0
        %v3095 = vadd.f32 0.0, %v3094
        %v3096 = vpop.f32.mrf.mxu0
        %v3097 = vpop.f32.mrf.mxu0
        %v3098 = vadd.f32 0.0, %v3097
        %v3099 = vpop.f32.mrf.mxu0
        %3100 = vmatprep.mubr.bf16.mxu0 0
        %3101 = vmatmul.mubr.bf16.gmra.mxu0 %v2883
        %v3102 = vpop.f32.mrf.mxu0
        %v3103 = vadd.f32 0.0, %v3102
        %v3104 = vpop.f32.mrf.mxu0
        %v3105 = vpop.f32.mrf.mxu0
        %v3106 = vadd.f32 0.0, %v3105
        %v3107 = vpop.f32.mrf.mxu0
        %3108 = vdwg.mxu0
        %v3109 = vadd.f32 %v2387, %v2983
        %v3110 = vadd.f32 %v2388, %v2986
        %v3111 = vadd.f32 %v2389, %v2991
        %v3112 = vadd.f32 %v2390, %v2994
        %v3113 = vadd.f32 %v2391, %v2999
        %v3114 = vadd.f32 %v2392, %v3002
        %v3115 = vadd.f32 %v2393, %v3007
        %v3116 = vadd.f32 %v2394, %v3010
        %v3117 = vadd.f32 %v2395, %v3015
        %v3118 = vadd.f32 %v2396, %v3018
        %v3119 = vadd.f32 %v2397, %v3023
        %v3120 = vadd.f32 %v2398, %v3026
        %v3121 = vadd.f32 %v2399, %v3031
        %v3122 = vadd.f32 %v2400, %v3034
        %v3123 = vadd.f32 %v2401, %v3039
        %v3124 = vadd.f32 %v2402, %v3042
        %v3125 = vadd.f32 %v2403, %v3047
        %v3126 = vadd.f32 %v2404, %v3050
        %v3127 = vadd.f32 %v2405, %v3055
        %v3128 = vadd.f32 %v2406, %v3058
        %v3129 = vadd.f32 %v2407, %v3063
        %v3130 = vadd.f32 %v2408, %v3066
        %v3131 = vadd.f32 %v2409, %v3071
        %v3132 = vadd.f32 %v2410, %v3074
        %v3133 = vadd.f32 %v2411, %v3079
        %v3134 = vadd.f32 %v2412, %v3082
        %v3135 = vadd.f32 %v2413, %v3087
        %v3136 = vadd.f32 %v2414, %v3090
        %v3137 = vadd.f32 %v2415, %v3095
        %v3138 = vadd.f32 %v2416, %v3098
        %v3139 = vadd.f32 %v2417, %v3103
        %v3140 = vadd.f32 %v2418, %v3106
        %s3141 = scalar_lea.vmem [#allocation6], 256
        %v3142 = vld [vmem:[%s3141] sm:$0xf]
        %v3143 = vld [vmem:[%s3141 + $0x4] sm:$0xf]
        %v3144 = vld [vmem:[%s3141 + $0x8] sm:$0xf]
        %v3145 = vld [vmem:[%s3141 + $0xc] sm:$0xf]
        %v3146 = vld [vmem:[%s3141 + $0x10] sm:$0xf]
        %v3147 = vld [vmem:[%s3141 + $0x14] sm:$0xf]
        %v3148 = vld [vmem:[%s3141 + $0x18] sm:$0xf]
        %v3149 = vld [vmem:[%s3141 + $0x1c] sm:$0xf]
        %v3150 = vld [vmem:[%s3141 + $0x20] sm:$0xf]
        %v3151 = vld [vmem:[%s3141 + $0x24] sm:$0xf]
        %v3152 = vld [vmem:[%s3141 + $0x28] sm:$0xf]
        %v3153 = vld [vmem:[%s3141 + $0x2c] sm:$0xf]
        %v3154 = vld [vmem:[%s3141 + $0x30] sm:$0xf]
        %v3155 = vld [vmem:[%s3141 + $0x34] sm:$0xf]
        %v3156 = vld [vmem:[%s3141 + $0x38] sm:$0xf]
        %v3157 = vld [vmem:[%s3141 + $0x3c] sm:$0xf]
        %v3190 = vunpack.c.l.b16 %v2420
        %v3191 = vunpack.c.l.b16 %v2421
        %v3192 = vunpack.c.l.b16 %v2423
        %v3193 = vunpack.c.l.b16 %v2424
        %v3194 = vunpack.c.l.b16 %v2426
        %v3195 = vunpack.c.l.b16 %v2427
        %v3196 = vunpack.c.l.b16 %v2429
        %v3197 = vunpack.c.l.b16 %v2430
        %v3198 = vunpack.c.l.b16 %v2432
        %v3199 = vunpack.c.l.b16 %v2433
        %v3200 = vunpack.c.l.b16 %v2435
        %v3201 = vunpack.c.l.b16 %v2436
        %v3202 = vunpack.c.l.b16 %v2438
        %v3203 = vunpack.c.l.b16 %v2439
        %v3204 = vunpack.c.l.b16 %v2441
        %v3205 = vunpack.c.l.b16 %v2442
        %v3206 = vunpack.c.l.b16 %v2444
        %v3207 = vunpack.c.l.b16 %v2445
        %v3208 = vunpack.c.l.b16 %v2447
        %v3209 = vunpack.c.l.b16 %v2448
        %v3210 = vunpack.c.l.b16 %v2450
        %v3211 = vunpack.c.l.b16 %v2451
        %v3212 = vunpack.c.l.b16 %v2453
        %v3213 = vunpack.c.l.b16 %v2454
        %v3214 = vunpack.c.l.b16 %v2456
        %v3215 = vunpack.c.l.b16 %v2457
        %v3216 = vunpack.c.l.b16 %v2459
        %v3217 = vunpack.c.l.b16 %v2460
        %v3218 = vunpack.c.l.b16 %v2462
        %v3219 = vunpack.c.l.b16 %v2463
        %v3220 = vunpack.c.l.b16 %v2465
        %v3221 = vunpack.c.l.b16 %v2466
        %v3222 = vpack.c.b16 %v3191, %v3190
        %v3223 = vpack.c.b16 %v3193, %v3192
        %v3224 = vpack.c.b16 %v3195, %v3194
        %v3225 = vpack.c.b16 %v3197, %v3196
        %v3226 = vpack.c.b16 %v3199, %v3198
        %v3227 = vpack.c.b16 %v3201, %v3200
        %v3228 = vpack.c.b16 %v3203, %v3202
        %v3229 = vpack.c.b16 %v3205, %v3204
        %v3230 = vpack.c.b16 %v3207, %v3206
        %v3231 = vpack.c.b16 %v3209, %v3208
        %v3232 = vpack.c.b16 %v3211, %v3210
        %v3233 = vpack.c.b16 %v3213, %v3212
        %v3234 = vpack.c.b16 %v3215, %v3214
        %v3235 = vpack.c.b16 %v3217, %v3216
        %v3236 = vpack.c.b16 %v3219, %v3218
        %v3237 = vpack.c.b16 %v3221, %v3220
        %v3270 = vunpack.c.l.b16 %v3142
        %v3271 = vunpack.c.l.b16 %v3143
        %v3272 = vunpack.c.l.b16 %v3144
        %v3273 = vunpack.c.l.b16 %v3145
        %v3274 = vunpack.c.l.b16 %v3146
        %v3275 = vunpack.c.l.b16 %v3147
        %v3276 = vunpack.c.l.b16 %v3148
        %v3277 = vunpack.c.l.b16 %v3149
        %v3278 = vunpack.c.l.b16 %v3150
        %v3279 = vunpack.c.l.b16 %v3151
        %v3280 = vunpack.c.l.b16 %v3152
        %v3281 = vunpack.c.l.b16 %v3153
        %v3282 = vunpack.c.l.b16 %v3154
        %v3283 = vunpack.c.l.b16 %v3155
        %v3284 = vunpack.c.l.b16 %v3156
        %v3285 = vunpack.c.l.b16 %v3157
        %v3286 = vpack.c.b16 %v3271, %v3270
        %v3287 = vpack.c.b16 %v3273, %v3272
        %v3288 = vpack.c.b16 %v3275, %v3274
        %v3289 = vpack.c.b16 %v3277, %v3276
        %v3290 = vpack.c.b16 %v3279, %v3278
        %v3291 = vpack.c.b16 %v3281, %v3280
        %v3292 = vpack.c.b16 %v3283, %v3282
        %v3293 = vpack.c.b16 %v3285, %v3284
        %3302 = vmatprep.subr.bf16.mxu0 0
        %3303 = vmatpush1.bf16.msra.mxu0 %v3293
        %3304 = vmatprep.subr.bf16.mxu0 0
        %3305 = vmatpush1.bf16.msra.mxu0 %v3292
        %3306 = vmatprep.subr.bf16.mxu0 0
        %3307 = vmatpush1.bf16.msra.mxu0 %v3291
        %3308 = vmatprep.subr.bf16.mxu0 0
        %3309 = vmatpush1.bf16.msra.mxu0 %v3290
        %3310 = vmatprep.subr.bf16.mxu0 0
        %3311 = vmatpush1.bf16.msra.mxu0 %v3289
        %3312 = vmatprep.subr.bf16.mxu0 0
        %3313 = vmatpush1.bf16.msra.mxu0 %v3288
        %3314 = vmatprep.subr.bf16.mxu0 0
        %3315 = vmatpush1.bf16.msra.mxu0 %v3287
        %3316 = vmatprep.subr.bf16.mxu0 0
        %3317 = vmatpush1.bf16.msra.mxu0 %v3286
        %3318 = vmatprep.subr.bf16.mxu0 0
        %3319 = vmatpush2.bf16.msra.mxu0 0
        %3320 = vmatprep.subr.bf16.mxu0 0
        %3321 = vmatpush2.bf16.msra.mxu0 0
        %3322 = vmatprep.subr.bf16.mxu0 0
        %3323 = vmatpush2.bf16.msra.mxu0 0
        %3324 = vmatprep.subr.bf16.mxu0 0
        %3325 = vmatpush2.bf16.msra.mxu0 0
        %3326 = vmatprep.subr.bf16.mxu0 0
        %3327 = vmatpush2.bf16.msra.mxu0 0
        %3328 = vmatprep.subr.bf16.mxu0 0
        %3329 = vmatpush2.bf16.msra.mxu0 0
        %3330 = vmatprep.subr.bf16.mxu0 0
        %3331 = vmatpush2.bf16.msra.mxu0 0
        %3332 = vmatprep.subr.bf16.mxu0 0
        %3333 = vmatpush2.bf16.msra.mxu0 0
        %3334 = vmatprep.mubr.bf16.mxu0 0
        %3335 = vmatmul.mubr.bf16.gmra.mxu0 %v3222
        %v3336 = vpop.f32.mrf.mxu0
        %v3337 = vadd.f32 0.0, %v3336
        %v3338 = vpop.f32.mrf.mxu0
        %v3339 = vpop.f32.mrf.mxu0
        %v3340 = vadd.f32 0.0, %v3339
        %v3341 = vpop.f32.mrf.mxu0
        %3342 = vmatprep.mubr.bf16.mxu0 0
        %3343 = vmatmul.mubr.bf16.gmra.mxu0 %v3223
        %v3344 = vpop.f32.mrf.mxu0
        %v3345 = vadd.f32 0.0, %v3344
        %v3346 = vpop.f32.mrf.mxu0
        %v3347 = vpop.f32.mrf.mxu0
        %v3348 = vadd.f32 0.0, %v3347
        %v3349 = vpop.f32.mrf.mxu0
        %3350 = vmatprep.mubr.bf16.mxu0 0
        %3351 = vmatmul.mubr.bf16.gmra.mxu0 %v3224
        %v3352 = vpop.f32.mrf.mxu0
        %v3353 = vadd.f32 0.0, %v3352
        %v3354 = vpop.f32.mrf.mxu0
        %v3355 = vpop.f32.mrf.mxu0
        %v3356 = vadd.f32 0.0, %v3355
        %v3357 = vpop.f32.mrf.mxu0
        %3358 = vmatprep.mubr.bf16.mxu0 0
        %3359 = vmatmul.mubr.bf16.gmra.mxu0 %v3225
        %v3360 = vpop.f32.mrf.mxu0
        %v3361 = vadd.f32 0.0, %v3360
        %v3362 = vpop.f32.mrf.mxu0
        %v3363 = vpop.f32.mrf.mxu0
        %v3364 = vadd.f32 0.0, %v3363
        %v3365 = vpop.f32.mrf.mxu0
        %3366 = vmatprep.mubr.bf16.mxu0 0
        %3367 = vmatmul.mubr.bf16.gmra.mxu0 %v3226
        %v3368 = vpop.f32.mrf.mxu0
        %v3369 = vadd.f32 0.0, %v3368
        %v3370 = vpop.f32.mrf.mxu0
        %v3371 = vpop.f32.mrf.mxu0
        %v3372 = vadd.f32 0.0, %v3371
        %v3373 = vpop.f32.mrf.mxu0
        %3374 = vmatprep.mubr.bf16.mxu0 0
        %3375 = vmatmul.mubr.bf16.gmra.mxu0 %v3227
        %v3376 = vpop.f32.mrf.mxu0
        %v3377 = vadd.f32 0.0, %v3376
        %v3378 = vpop.f32.mrf.mxu0
        %v3379 = vpop.f32.mrf.mxu0
        %v3380 = vadd.f32 0.0, %v3379
        %v3381 = vpop.f32.mrf.mxu0
        %3382 = vmatprep.mubr.bf16.mxu0 0
        %3383 = vmatmul.mubr.bf16.gmra.mxu0 %v3228
        %v3384 = vpop.f32.mrf.mxu0
        %v3385 = vadd.f32 0.0, %v3384
        %v3386 = vpop.f32.mrf.mxu0
        %v3387 = vpop.f32.mrf.mxu0
        %v3388 = vadd.f32 0.0, %v3387
        %v3389 = vpop.f32.mrf.mxu0
        %3390 = vmatprep.mubr.bf16.mxu0 0
        %3391 = vmatmul.mubr.bf16.gmra.mxu0 %v3229
        %v3392 = vpop.f32.mrf.mxu0
        %v3393 = vadd.f32 0.0, %v3392
        %v3394 = vpop.f32.mrf.mxu0
        %v3395 = vpop.f32.mrf.mxu0
        %v3396 = vadd.f32 0.0, %v3395
        %v3397 = vpop.f32.mrf.mxu0
        %3398 = vmatprep.mubr.bf16.mxu0 0
        %3399 = vmatmul.mubr.bf16.gmra.mxu0 %v3230
        %v3400 = vpop.f32.mrf.mxu0
        %v3401 = vadd.f32 0.0, %v3400
        %v3402 = vpop.f32.mrf.mxu0
        %v3403 = vpop.f32.mrf.mxu0
        %v3404 = vadd.f32 0.0, %v3403
        %v3405 = vpop.f32.mrf.mxu0
        %3406 = vmatprep.mubr.bf16.mxu0 0
        %3407 = vmatmul.mubr.bf16.gmra.mxu0 %v3231
        %v3408 = vpop.f32.mrf.mxu0
        %v3409 = vadd.f32 0.0, %v3408
        %v3410 = vpop.f32.mrf.mxu0
        %v3411 = vpop.f32.mrf.mxu0
        %v3412 = vadd.f32 0.0, %v3411
        %v3413 = vpop.f32.mrf.mxu0
        %3414 = vmatprep.mubr.bf16.mxu0 0
        %3415 = vmatmul.mubr.bf16.gmra.mxu0 %v3232
        %v3416 = vpop.f32.mrf.mxu0
        %v3417 = vadd.f32 0.0, %v3416
        %v3418 = vpop.f32.mrf.mxu0
        %v3419 = vpop.f32.mrf.mxu0
        %v3420 = vadd.f32 0.0, %v3419
        %v3421 = vpop.f32.mrf.mxu0
        %3422 = vmatprep.mubr.bf16.mxu0 0
        %3423 = vmatmul.mubr.bf16.gmra.mxu0 %v3233
        %v3424 = vpop.f32.mrf.mxu0
        %v3425 = vadd.f32 0.0, %v3424
        %v3426 = vpop.f32.mrf.mxu0
        %v3427 = vpop.f32.mrf.mxu0
        %v3428 = vadd.f32 0.0, %v3427
        %v3429 = vpop.f32.mrf.mxu0
        %3430 = vmatprep.mubr.bf16.mxu0 0
        %3431 = vmatmul.mubr.bf16.gmra.mxu0 %v3234
        %v3432 = vpop.f32.mrf.mxu0
        %v3433 = vadd.f32 0.0, %v3432
        %v3434 = vpop.f32.mrf.mxu0
        %v3435 = vpop.f32.mrf.mxu0
        %v3436 = vadd.f32 0.0, %v3435
        %v3437 = vpop.f32.mrf.mxu0
        %3438 = vmatprep.mubr.bf16.mxu0 0
        %3439 = vmatmul.mubr.bf16.gmra.mxu0 %v3235
        %v3440 = vpop.f32.mrf.mxu0
        %v3441 = vadd.f32 0.0, %v3440
        %v3442 = vpop.f32.mrf.mxu0
        %v3443 = vpop.f32.mrf.mxu0
        %v3444 = vadd.f32 0.0, %v3443
        %v3445 = vpop.f32.mrf.mxu0
        %3446 = vmatprep.mubr.bf16.mxu0 0
        %3447 = vmatmul.mubr.bf16.gmra.mxu0 %v3236
        %v3448 = vpop.f32.mrf.mxu0
        %v3449 = vadd.f32 0.0, %v3448
        %v3450 = vpop.f32.mrf.mxu0
        %v3451 = vpop.f32.mrf.mxu0
        %v3452 = vadd.f32 0.0, %v3451
        %v3453 = vpop.f32.mrf.mxu0
        %3454 = vmatprep.mubr.bf16.mxu0 0
        %3455 = vmatmul.mubr.bf16.gmra.mxu0 %v3237
        %v3456 = vpop.f32.mrf.mxu0
        %v3457 = vadd.f32 0.0, %v3456
        %v3458 = vpop.f32.mrf.mxu0
        %v3459 = vpop.f32.mrf.mxu0
        %v3460 = vadd.f32 0.0, %v3459
        %v3461 = vpop.f32.mrf.mxu0
        %3462 = vdwg.mxu0
        %v3463 = vadd.f32 %v3109, %v3337
        %v3464 = vadd.f32 %v3110, %v3340
        %v3465 = vadd.f32 %v3111, %v3345
        %v3466 = vadd.f32 %v3112, %v3348
        %v3467 = vadd.f32 %v3113, %v3353
        %v3468 = vadd.f32 %v3114, %v3356
        %v3469 = vadd.f32 %v3115, %v3361
        %v3470 = vadd.f32 %v3116, %v3364
        %v3471 = vadd.f32 %v3117, %v3369
        %v3472 = vadd.f32 %v3118, %v3372
        %v3473 = vadd.f32 %v3119, %v3377
        %v3474 = vadd.f32 %v3120, %v3380
        %v3475 = vadd.f32 %v3121, %v3385
        %v3476 = vadd.f32 %v3122, %v3388
        %v3477 = vadd.f32 %v3123, %v3393
        %v3478 = vadd.f32 %v3124, %v3396
        %v3479 = vadd.f32 %v3125, %v3401
        %v3480 = vadd.f32 %v3126, %v3404
        %v3481 = vadd.f32 %v3127, %v3409
        %v3482 = vadd.f32 %v3128, %v3412
        %v3483 = vadd.f32 %v3129, %v3417
        %v3484 = vadd.f32 %v3130, %v3420
        %v3485 = vadd.f32 %v3131, %v3425
        %v3486 = vadd.f32 %v3132, %v3428
        %v3487 = vadd.f32 %v3133, %v3433
        %v3488 = vadd.f32 %v3134, %v3436
        %v3489 = vadd.f32 %v3135, %v3441
        %v3490 = vadd.f32 %v3136, %v3444
        %v3491 = vadd.f32 %v3137, %v3449
        %v3492 = vadd.f32 %v3138, %v3452
        %v3493 = vadd.f32 %v3139, %v3457
        %v3494 = vadd.f32 %v3140, %v3460
        %v3495 = vld [vmem:[%s616 + $0x8] sm:$0xf]
        %v3496 = vld [vmem:[%s616 + $0xc] sm:$0xf]
        %v3497 = vld [vmem:[%s616 + $0x10] sm:$0x1]
        %v3498 = vld [vmem:[%s616 + $0x1c] sm:$0xf]
        %v3499 = vld [vmem:[%s616 + $0x20] sm:$0xf]
        %v3500 = vld [vmem:[%s616 + $0x24] sm:$0x1]
        %v3501 = vld [vmem:[%s616 + $0x30] sm:$0xf]
        %v3502 = vld [vmem:[%s616 + $0x34] sm:$0xf]
        %v3503 = vld [vmem:[%s616 + $0x38] sm:$0x1]
        %v3504 = vld [vmem:[%s616 + $0x44] sm:$0xf]
        %v3505 = vld [vmem:[%s616 + $0x48] sm:$0xf]
        %v3506 = vld [vmem:[%s616 + $0x4c] sm:$0x1]
        %v3507 = vld [vmem:[%s616 + $0x58] sm:$0xf]
        %v3508 = vld [vmem:[%s616 + $0x5c] sm:$0xf]
        %v3509 = vld [vmem:[%s616 + $0x60] sm:$0x1]
        %v3510 = vld [vmem:[%s616 + $0x6c] sm:$0xf]
        %v3511 = vld [vmem:[%s616 + $0x70] sm:$0xf]
        %v3512 = vld [vmem:[%s616 + $0x74] sm:$0x1]
        %v3513 = vld [vmem:[%s616 + $0x80] sm:$0xf]
        %v3514 = vld [vmem:[%s616 + $0x84] sm:$0xf]
        %v3515 = vld [vmem:[%s616 + $0x88] sm:$0x1]
        %v3516 = vld [vmem:[%s616 + $0x94] sm:$0xf]
        %v3517 = vld [vmem:[%s616 + $0x98] sm:$0xf]
        %v3518 = vld [vmem:[%s616 + $0x9c] sm:$0x1]
        %v3519 = vld [vmem:[%s616 + $0xa8] sm:$0xf]
        %v3520 = vld [vmem:[%s616 + $0xac] sm:$0xf]
        %v3521 = vld [vmem:[%s616 + $0xb0] sm:$0x1]
        %v3522 = vld [vmem:[%s616 + $0xbc] sm:$0xf]
        %v3523 = vld [vmem:[%s616 + $0xc0] sm:$0xf]
        %v3524 = vld [vmem:[%s616 + $0xc4] sm:$0x1]
        %v3525 = vld [vmem:[%s616 + $0xd0] sm:$0xf]
        %v3526 = vld [vmem:[%s616 + $0xd4] sm:$0xf]
        %v3527 = vld [vmem:[%s616 + $0xd8] sm:$0x1]
        %v3528 = vld [vmem:[%s616 + $0xe4] sm:$0xf]
        %v3529 = vld [vmem:[%s616 + $0xe8] sm:$0xf]
        %v3530 = vld [vmem:[%s616 + $0xec] sm:$0x1]
        %v3531 = vld [vmem:[%s616 + $0xf8] sm:$0xf]
        %v3532 = vld [vmem:[%s616 + $0xfc] sm:$0xf]
        %v3533 = vld [vmem:[%s616 + $0x100] sm:$0x1]
        %v3534 = vld [vmem:[%s616 + $0x10c] sm:$0xf]
        %v3535 = vld [vmem:[%s616 + $0x110] sm:$0xf]
        %v3536 = vld [vmem:[%s616 + $0x114] sm:$0x1]
        %v3537 = vld [vmem:[%s616 + $0x120] sm:$0xf]
        %v3538 = vld [vmem:[%s616 + $0x124] sm:$0xf]
        %v3539 = vld [vmem:[%s616 + $0x128] sm:$0x1]
        %v3540 = vld [vmem:[%s616 + $0x134] sm:$0xf]
        %v3541 = vld [vmem:[%s616 + $0x138] sm:$0xf]
        %v3542 = vld [vmem:[%s616 + $0x13c] sm:$0x1]
        %v3544 = vshrl.u32 %v3495, 16
        %v3546 = vrot.slane %v3544, 4
        %v3547 = vshll.u32 %v3495, 16
        %v3549 = vrot.slane %v3547, 5
        %v3550 = vor.u32 %v3546, %v3549
        %v3551 = vrot.slane %v3550, 4
        %v3553 = vshll.u32 %v3496, 16
        %v3555 = vrot.slane %v3553, 5
        %v3556 = vsel %vm1712, %v3551, %v3555
        %v3557 = vshrl.u32 %v3496, 16
        %v3559 = vrot.slane %v3557, 4
        %v3560 = vor.u32 %v3559, %v3555
        %v3561 = vrot.slane %v3560, 4
        %v3563 = vshll.u32 %v3497, 16
        %v3565 = vrot.slane %v3563, 5
        %v3566 = vsel %vm1712, %v3561, %v3565
        %v3568 = vshrl.u32 %v3498, 16
        %v3570 = vrot.slane %v3568, 4
        %v3571 = vshll.u32 %v3498, 16
        %v3573 = vrot.slane %v3571, 5
        %v3574 = vor.u32 %v3570, %v3573
        %v3575 = vrot.slane %v3574, 4
        %v3577 = vshll.u32 %v3499, 16
        %v3579 = vrot.slane %v3577, 5
        %v3580 = vsel %vm1712, %v3575, %v3579
        %v3581 = vshrl.u32 %v3499, 16
        %v3583 = vrot.slane %v3581, 4
        %v3584 = vor.u32 %v3583, %v3579
        %v3585 = vrot.slane %v3584, 4
        %v3587 = vshll.u32 %v3500, 16
        %v3589 = vrot.slane %v3587, 5
        %v3590 = vsel %vm1712, %v3585, %v3589
        %v3592 = vshrl.u32 %v3501, 16
        %v3594 = vrot.slane %v3592, 4
        %v3595 = vshll.u32 %v3501, 16
        %v3597 = vrot.slane %v3595, 5
        %v3598 = vor.u32 %v3594, %v3597
        %v3599 = vrot.slane %v3598, 4
        %v3601 = vshll.u32 %v3502, 16
        %v3603 = vrot.slane %v3601, 5
        %v3604 = vsel %vm1712, %v3599, %v3603
        %v3605 = vshrl.u32 %v3502, 16
        %v3607 = vrot.slane %v3605, 4
        %v3608 = vor.u32 %v3607, %v3603
        %v3609 = vrot.slane %v3608, 4
        %v3611 = vshll.u32 %v3503, 16
        %v3613 = vrot.slane %v3611, 5
        %v3614 = vsel %vm1712, %v3609, %v3613
        %v3616 = vshrl.u32 %v3504, 16
        %v3618 = vrot.slane %v3616, 4
        %v3619 = vshll.u32 %v3504, 16
        %v3621 = vrot.slane %v3619, 5
        %v3622 = vor.u32 %v3618, %v3621
        %v3623 = vrot.slane %v3622, 4
        %v3625 = vshll.u32 %v3505, 16
        %v3627 = vrot.slane %v3625, 5
        %v3628 = vsel %vm1712, %v3623, %v3627
        %v3629 = vshrl.u32 %v3505, 16
        %v3631 = vrot.slane %v3629, 4
        %v3632 = vor.u32 %v3631, %v3627
        %v3633 = vrot.slane %v3632, 4
        %v3635 = vshll.u32 %v3506, 16
        %v3637 = vrot.slane %v3635, 5
        %v3638 = vsel %vm1712, %v3633, %v3637
        %v3640 = vshrl.u32 %v3507, 16
        %v3642 = vrot.slane %v3640, 4
        %v3643 = vshll.u32 %v3507, 16
        %v3645 = vrot.slane %v3643, 5
        %v3646 = vor.u32 %v3642, %v3645
        %v3647 = vrot.slane %v3646, 4
        %v3649 = vshll.u32 %v3508, 16
        %v3651 = vrot.slane %v3649, 5
        %v3652 = vsel %vm1712, %v3647, %v3651
        %v3653 = vshrl.u32 %v3508, 16
        %v3655 = vrot.slane %v3653, 4
        %v3656 = vor.u32 %v3655, %v3651
        %v3657 = vrot.slane %v3656, 4
        %v3659 = vshll.u32 %v3509, 16
        %v3661 = vrot.slane %v3659, 5
        %v3662 = vsel %vm1712, %v3657, %v3661
        %v3664 = vshrl.u32 %v3510, 16
        %v3666 = vrot.slane %v3664, 4
        %v3667 = vshll.u32 %v3510, 16
        %v3669 = vrot.slane %v3667, 5
        %v3670 = vor.u32 %v3666, %v3669
        %v3671 = vrot.slane %v3670, 4
        %v3673 = vshll.u32 %v3511, 16
        %v3675 = vrot.slane %v3673, 5
        %v3676 = vsel %vm1712, %v3671, %v3675
        %v3677 = vshrl.u32 %v3511, 16
        %v3679 = vrot.slane %v3677, 4
        %v3680 = vor.u32 %v3679, %v3675
        %v3681 = vrot.slane %v3680, 4
        %v3683 = vshll.u32 %v3512, 16
        %v3685 = vrot.slane %v3683, 5
        %v3686 = vsel %vm1712, %v3681, %v3685
        %v3688 = vshrl.u32 %v3513, 16
        %v3690 = vrot.slane %v3688, 4
        %v3691 = vshll.u32 %v3513, 16
        %v3693 = vrot.slane %v3691, 5
        %v3694 = vor.u32 %v3690, %v3693
        %v3695 = vrot.slane %v3694, 4
        %v3697 = vshll.u32 %v3514, 16
        %v3699 = vrot.slane %v3697, 5
        %v3700 = vsel %vm1712, %v3695, %v3699
        %v3701 = vshrl.u32 %v3514, 16
        %v3703 = vrot.slane %v3701, 4
        %v3704 = vor.u32 %v3703, %v3699
        %v3705 = vrot.slane %v3704, 4
        %v3707 = vshll.u32 %v3515, 16
        %v3709 = vrot.slane %v3707, 5
        %v3710 = vsel %vm1712, %v3705, %v3709
        %v3712 = vshrl.u32 %v3516, 16
        %v3714 = vrot.slane %v3712, 4
        %v3715 = vshll.u32 %v3516, 16
        %v3717 = vrot.slane %v3715, 5
        %v3718 = vor.u32 %v3714, %v3717
        %v3719 = vrot.slane %v3718, 4
        %v3721 = vshll.u32 %v3517, 16
        %v3723 = vrot.slane %v3721, 5
        %v3724 = vsel %vm1712, %v3719, %v3723
        %v3725 = vshrl.u32 %v3517, 16
        %v3727 = vrot.slane %v3725, 4
        %v3728 = vor.u32 %v3727, %v3723
        %v3729 = vrot.slane %v3728, 4
        %v3731 = vshll.u32 %v3518, 16
        %v3733 = vrot.slane %v3731, 5
        %v3734 = vsel %vm1712, %v3729, %v3733
        %v3736 = vshrl.u32 %v3519, 16
        %v3738 = vrot.slane %v3736, 4
        %v3739 = vshll.u32 %v3519, 16
        %v3741 = vrot.slane %v3739, 5
        %v3742 = vor.u32 %v3738, %v3741
        %v3743 = vrot.slane %v3742, 4
        %v3745 = vshll.u32 %v3520, 16
        %v3747 = vrot.slane %v3745, 5
        %v3748 = vsel %vm1712, %v3743, %v3747
        %v3749 = vshrl.u32 %v3520, 16
        %v3751 = vrot.slane %v3749, 4
        %v3752 = vor.u32 %v3751, %v3747
        %v3753 = vrot.slane %v3752, 4
        %v3755 = vshll.u32 %v3521, 16
        %v3757 = vrot.slane %v3755, 5
        %v3758 = vsel %vm1712, %v3753, %v3757
        %v3760 = vshrl.u32 %v3522, 16
        %v3762 = vrot.slane %v3760, 4
        %v3763 = vshll.u32 %v3522, 16
        %v3765 = vrot.slane %v3763, 5
        %v3766 = vor.u32 %v3762, %v3765
        %v3767 = vrot.slane %v3766, 4
        %v3769 = vshll.u32 %v3523, 16
        %v3771 = vrot.slane %v3769, 5
        %v3772 = vsel %vm1712, %v3767, %v3771
        %v3773 = vshrl.u32 %v3523, 16
        %v3775 = vrot.slane %v3773, 4
        %v3776 = vor.u32 %v3775, %v3771
        %v3777 = vrot.slane %v3776, 4
        %v3779 = vshll.u32 %v3524, 16
        %v3781 = vrot.slane %v3779, 5
        %v3782 = vsel %vm1712, %v3777, %v3781
        %v3784 = vshrl.u32 %v3525, 16
        %v3786 = vrot.slane %v3784, 4
        %v3787 = vshll.u32 %v3525, 16
        %v3789 = vrot.slane %v3787, 5
        %v3790 = vor.u32 %v3786, %v3789
        %v3791 = vrot.slane %v3790, 4
        %v3793 = vshll.u32 %v3526, 16
        %v3795 = vrot.slane %v3793, 5
        %v3796 = vsel %vm1712, %v3791, %v3795
        %v3797 = vshrl.u32 %v3526, 16
        %v3799 = vrot.slane %v3797, 4
        %v3800 = vor.u32 %v3799, %v3795
        %v3801 = vrot.slane %v3800, 4
        %v3803 = vshll.u32 %v3527, 16
        %v3805 = vrot.slane %v3803, 5
        %v3806 = vsel %vm1712, %v3801, %v3805
        %v3808 = vshrl.u32 %v3528, 16
        %v3810 = vrot.slane %v3808, 4
        %v3811 = vshll.u32 %v3528, 16
        %v3813 = vrot.slane %v3811, 5
        %v3814 = vor.u32 %v3810, %v3813
        %v3815 = vrot.slane %v3814, 4
        %v3817 = vshll.u32 %v3529, 16
        %v3819 = vrot.slane %v3817, 5
        %v3820 = vsel %vm1712, %v3815, %v3819
        %v3821 = vshrl.u32 %v3529, 16
        %v3823 = vrot.slane %v3821, 4
        %v3824 = vor.u32 %v3823, %v3819
        %v3825 = vrot.slane %v3824, 4
        %v3827 = vshll.u32 %v3530, 16
        %v3829 = vrot.slane %v3827, 5
        %v3830 = vsel %vm1712, %v3825, %v3829
        %v3832 = vshrl.u32 %v3531, 16
        %v3834 = vrot.slane %v3832, 4
        %v3835 = vshll.u32 %v3531, 16
        %v3837 = vrot.slane %v3835, 5
        %v3838 = vor.u32 %v3834, %v3837
        %v3839 = vrot.slane %v3838, 4
        %v3841 = vshll.u32 %v3532, 16
        %v3843 = vrot.slane %v3841, 5
        %v3844 = vsel %vm1712, %v3839, %v3843
        %v3845 = vshrl.u32 %v3532, 16
        %v3847 = vrot.slane %v3845, 4
        %v3848 = vor.u32 %v3847, %v3843
        %v3849 = vrot.slane %v3848, 4
        %v3851 = vshll.u32 %v3533, 16
        %v3853 = vrot.slane %v3851, 5
        %v3854 = vsel %vm1712, %v3849, %v3853
        %v3856 = vshrl.u32 %v3534, 16
        %v3858 = vrot.slane %v3856, 4
        %v3859 = vshll.u32 %v3534, 16
        %v3861 = vrot.slane %v3859, 5
        %v3862 = vor.u32 %v3858, %v3861
        %v3863 = vrot.slane %v3862, 4
        %v3865 = vshll.u32 %v3535, 16
        %v3867 = vrot.slane %v3865, 5
        %v3868 = vsel %vm1712, %v3863, %v3867
        %v3869 = vshrl.u32 %v3535, 16
        %v3871 = vrot.slane %v3869, 4
        %v3872 = vor.u32 %v3871, %v3867
        %v3873 = vrot.slane %v3872, 4
        %v3875 = vshll.u32 %v3536, 16
        %v3877 = vrot.slane %v3875, 5
        %v3878 = vsel %vm1712, %v3873, %v3877
        %v3880 = vshrl.u32 %v3537, 16
        %v3882 = vrot.slane %v3880, 4
        %v3883 = vshll.u32 %v3537, 16
        %v3885 = vrot.slane %v3883, 5
        %v3886 = vor.u32 %v3882, %v3885
        %v3887 = vrot.slane %v3886, 4
        %v3889 = vshll.u32 %v3538, 16
        %v3891 = vrot.slane %v3889, 5
        %v3892 = vsel %vm1712, %v3887, %v3891
        %v3893 = vshrl.u32 %v3538, 16
        %v3895 = vrot.slane %v3893, 4
        %v3896 = vor.u32 %v3895, %v3891
        %v3897 = vrot.slane %v3896, 4
        %v3899 = vshll.u32 %v3539, 16
        %v3901 = vrot.slane %v3899, 5
        %v3902 = vsel %vm1712, %v3897, %v3901
        %v3904 = vshrl.u32 %v3540, 16
        %v3906 = vrot.slane %v3904, 4
        %v3907 = vshll.u32 %v3540, 16
        %v3909 = vrot.slane %v3907, 5
        %v3910 = vor.u32 %v3906, %v3909
        %v3911 = vrot.slane %v3910, 4
        %v3913 = vshll.u32 %v3541, 16
        %v3915 = vrot.slane %v3913, 5
        %v3916 = vsel %vm1712, %v3911, %v3915
        %v3917 = vshrl.u32 %v3541, 16
        %v3919 = vrot.slane %v3917, 4
        %v3920 = vor.u32 %v3919, %v3915
        %v3921 = vrot.slane %v3920, 4
        %v3923 = vshll.u32 %v3542, 16
        %v3925 = vrot.slane %v3923, 5
        %v3926 = vsel %vm1712, %v3921, %v3925
        %s3927 = scalar_lea.vmem [#allocation6], 320
        %v3928 = vld [vmem:[%s3927] sm:$0xf]
        %v3929 = vld [vmem:[%s3927 + $0x4] sm:$0xf]
        %v3930 = vld [vmem:[%s3927 + $0x8] sm:$0xf]
        %v3931 = vld [vmem:[%s3927 + $0xc] sm:$0xf]
        %v3932 = vld [vmem:[%s3927 + $0x10] sm:$0xf]
        %v3933 = vld [vmem:[%s3927 + $0x14] sm:$0xf]
        %v3934 = vld [vmem:[%s3927 + $0x18] sm:$0xf]
        %v3935 = vld [vmem:[%s3927 + $0x1c] sm:$0xf]
        %v3936 = vld [vmem:[%s3927 + $0x20] sm:$0xf]
        %v3937 = vld [vmem:[%s3927 + $0x24] sm:$0xf]
        %v3938 = vld [vmem:[%s3927 + $0x28] sm:$0xf]
        %v3939 = vld [vmem:[%s3927 + $0x2c] sm:$0xf]
        %v3940 = vld [vmem:[%s3927 + $0x30] sm:$0xf]
        %v3941 = vld [vmem:[%s3927 + $0x34] sm:$0xf]
        %v3942 = vld [vmem:[%s3927 + $0x38] sm:$0xf]
        %v3943 = vld [vmem:[%s3927 + $0x3c] sm:$0xf]
        %v3944 = vunpack.c.l.b16 %v3556
        %v3945 = vunpack.c.l.b16 %v3566
        %v3946 = vunpack.c.l.b16 %v3580
        %v3947 = vunpack.c.l.b16 %v3590
        %v3948 = vunpack.c.l.b16 %v3604
        %v3949 = vunpack.c.l.b16 %v3614
        %v3950 = vunpack.c.l.b16 %v3628
        %v3951 = vunpack.c.l.b16 %v3638
        %v3952 = vunpack.c.l.b16 %v3652
        %v3953 = vunpack.c.l.b16 %v3662
        %v3954 = vunpack.c.l.b16 %v3676
        %v3955 = vunpack.c.l.b16 %v3686
        %v3956 = vunpack.c.l.b16 %v3700
        %v3957 = vunpack.c.l.b16 %v3710
        %v3958 = vunpack.c.l.b16 %v3724
        %v3959 = vunpack.c.l.b16 %v3734
        %v3960 = vunpack.c.l.b16 %v3748
        %v3961 = vunpack.c.l.b16 %v3758
        %v3962 = vunpack.c.l.b16 %v3772
        %v3963 = vunpack.c.l.b16 %v3782
        %v3964 = vunpack.c.l.b16 %v3796
        %v3965 = vunpack.c.l.b16 %v3806
        %v3966 = vunpack.c.l.b16 %v3820
        %v3967 = vunpack.c.l.b16 %v3830
        %v3968 = vunpack.c.l.b16 %v3844
        %v3969 = vunpack.c.l.b16 %v3854
        %v3970 = vunpack.c.l.b16 %v3868
        %v3971 = vunpack.c.l.b16 %v3878
        %v3972 = vunpack.c.l.b16 %v3892
        %v3973 = vunpack.c.l.b16 %v3902
        %v3974 = vunpack.c.l.b16 %v3916
        %v3975 = vunpack.c.l.b16 %v3926
        %v3976 = vpack.c.b16 %v3945, %v3944
        %v3977 = vpack.c.b16 %v3947, %v3946
        %v3978 = vpack.c.b16 %v3949, %v3948
        %v3979 = vpack.c.b16 %v3951, %v3950
        %v3980 = vpack.c.b16 %v3953, %v3952
        %v3981 = vpack.c.b16 %v3955, %v3954
        %v3982 = vpack.c.b16 %v3957, %v3956
        %v3983 = vpack.c.b16 %v3959, %v3958
        %v3984 = vpack.c.b16 %v3961, %v3960
        %v3985 = vpack.c.b16 %v3963, %v3962
        %v3986 = vpack.c.b16 %v3965, %v3964
        %v3987 = vpack.c.b16 %v3967, %v3966
        %v3988 = vpack.c.b16 %v3969, %v3968
        %v3989 = vpack.c.b16 %v3971, %v3970
        %v3990 = vpack.c.b16 %v3973, %v3972
        %v3991 = vpack.c.b16 %v3975, %v3974
        %v4024 = vunpack.c.l.b16 %v3928
        %v4025 = vunpack.c.l.b16 %v3929
        %v4026 = vunpack.c.l.b16 %v3930
        %v4027 = vunpack.c.l.b16 %v3931
        %v4028 = vunpack.c.l.b16 %v3932
        %v4029 = vunpack.c.l.b16 %v3933
        %v4030 = vunpack.c.l.b16 %v3934
        %v4031 = vunpack.c.l.b16 %v3935
        %v4032 = vunpack.c.l.b16 %v3936
        %v4033 = vunpack.c.l.b16 %v3937
        %v4034 = vunpack.c.l.b16 %v3938
        %v4035 = vunpack.c.l.b16 %v3939
        %v4036 = vunpack.c.l.b16 %v3940
        %v4037 = vunpack.c.l.b16 %v3941
        %v4038 = vunpack.c.l.b16 %v3942
        %v4039 = vunpack.c.l.b16 %v3943
        %v4040 = vpack.c.b16 %v4025, %v4024
        %v4041 = vpack.c.b16 %v4027, %v4026
        %v4042 = vpack.c.b16 %v4029, %v4028
        %v4043 = vpack.c.b16 %v4031, %v4030
        %v4044 = vpack.c.b16 %v4033, %v4032
        %v4045 = vpack.c.b16 %v4035, %v4034
        %v4046 = vpack.c.b16 %v4037, %v4036
        %v4047 = vpack.c.b16 %v4039, %v4038
        %4056 = vmatprep.subr.bf16.mxu0 0
        %4057 = vmatpush1.bf16.msra.mxu0 %v4047
        %4058 = vmatprep.subr.bf16.mxu0 0
        %4059 = vmatpush1.bf16.msra.mxu0 %v4046
        %4060 = vmatprep.subr.bf16.mxu0 0
        %4061 = vmatpush1.bf16.msra.mxu0 %v4045
        %4062 = vmatprep.subr.bf16.mxu0 0
        %4063 = vmatpush1.bf16.msra.mxu0 %v4044
        %4064 = vmatprep.subr.bf16.mxu0 0
        %4065 = vmatpush1.bf16.msra.mxu0 %v4043
        %4066 = vmatprep.subr.bf16.mxu0 0
        %4067 = vmatpush1.bf16.msra.mxu0 %v4042
        %4068 = vmatprep.subr.bf16.mxu0 0
        %4069 = vmatpush1.bf16.msra.mxu0 %v4041
        %4070 = vmatprep.subr.bf16.mxu0 0
        %4071 = vmatpush1.bf16.msra.mxu0 %v4040
        %4072 = vmatprep.subr.bf16.mxu0 0
        %4073 = vmatpush2.bf16.msra.mxu0 0
        %4074 = vmatprep.subr.bf16.mxu0 0
        %4075 = vmatpush2.bf16.msra.mxu0 0
        %4076 = vmatprep.subr.bf16.mxu0 0
        %4077 = vmatpush2.bf16.msra.mxu0 0
        %4078 = vmatprep.subr.bf16.mxu0 0
        %4079 = vmatpush2.bf16.msra.mxu0 0
        %4080 = vmatprep.subr.bf16.mxu0 0
        %4081 = vmatpush2.bf16.msra.mxu0 0
        %4082 = vmatprep.subr.bf16.mxu0 0
        %4083 = vmatpush2.bf16.msra.mxu0 0
        %4084 = vmatprep.subr.bf16.mxu0 0
        %4085 = vmatpush2.bf16.msra.mxu0 0
        %4086 = vmatprep.subr.bf16.mxu0 0
        %4087 = vmatpush2.bf16.msra.mxu0 0
        %4088 = vmatprep.mubr.bf16.mxu0 0
        %4089 = vmatmul.mubr.bf16.gmra.mxu0 %v3976
        %v4090 = vpop.f32.mrf.mxu0
        %v4091 = vadd.f32 0.0, %v4090
        %v4092 = vpop.f32.mrf.mxu0
        %v4093 = vpop.f32.mrf.mxu0
        %v4094 = vadd.f32 0.0, %v4093
        %v4095 = vpop.f32.mrf.mxu0
        %4096 = vmatprep.mubr.bf16.mxu0 0
        %4097 = vmatmul.mubr.bf16.gmra.mxu0 %v3977
        %v4098 = vpop.f32.mrf.mxu0
        %v4099 = vadd.f32 0.0, %v4098
        %v4100 = vpop.f32.mrf.mxu0
        %v4101 = vpop.f32.mrf.mxu0
        %v4102 = vadd.f32 0.0, %v4101
        %v4103 = vpop.f32.mrf.mxu0
        %4104 = vmatprep.mubr.bf16.mxu0 0
        %4105 = vmatmul.mubr.bf16.gmra.mxu0 %v3978
        %v4106 = vpop.f32.mrf.mxu0
        %v4107 = vadd.f32 0.0, %v4106
        %v4108 = vpop.f32.mrf.mxu0
        %v4109 = vpop.f32.mrf.mxu0
        %v4110 = vadd.f32 0.0, %v4109
        %v4111 = vpop.f32.mrf.mxu0
        %4112 = vmatprep.mubr.bf16.mxu0 0
        %4113 = vmatmul.mubr.bf16.gmra.mxu0 %v3979
        %v4114 = vpop.f32.mrf.mxu0
        %v4115 = vadd.f32 0.0, %v4114
        %v4116 = vpop.f32.mrf.mxu0
        %v4117 = vpop.f32.mrf.mxu0
        %v4118 = vadd.f32 0.0, %v4117
        %v4119 = vpop.f32.mrf.mxu0
        %4120 = vmatprep.mubr.bf16.mxu0 0
        %4121 = vmatmul.mubr.bf16.gmra.mxu0 %v3980
        %v4122 = vpop.f32.mrf.mxu0
        %v4123 = vadd.f32 0.0, %v4122
        %v4124 = vpop.f32.mrf.mxu0
        %v4125 = vpop.f32.mrf.mxu0
        %v4126 = vadd.f32 0.0, %v4125
        %v4127 = vpop.f32.mrf.mxu0
        %4128 = vmatprep.mubr.bf16.mxu0 0
        %4129 = vmatmul.mubr.bf16.gmra.mxu0 %v3981
        %v4130 = vpop.f32.mrf.mxu0
        %v4131 = vadd.f32 0.0, %v4130
        %v4132 = vpop.f32.mrf.mxu0
        %v4133 = vpop.f32.mrf.mxu0
        %v4134 = vadd.f32 0.0, %v4133
        %v4135 = vpop.f32.mrf.mxu0
        %4136 = vmatprep.mubr.bf16.mxu0 0
        %4137 = vmatmul.mubr.bf16.gmra.mxu0 %v3982
        %v4138 = vpop.f32.mrf.mxu0
        %v4139 = vadd.f32 0.0, %v4138
        %v4140 = vpop.f32.mrf.mxu0
        %v4141 = vpop.f32.mrf.mxu0
        %v4142 = vadd.f32 0.0, %v4141
        %v4143 = vpop.f32.mrf.mxu0
        %4144 = vmatprep.mubr.bf16.mxu0 0
        %4145 = vmatmul.mubr.bf16.gmra.mxu0 %v3983
        %v4146 = vpop.f32.mrf.mxu0
        %v4147 = vadd.f32 0.0, %v4146
        %v4148 = vpop.f32.mrf.mxu0
        %v4149 = vpop.f32.mrf.mxu0
        %v4150 = vadd.f32 0.0, %v4149
        %v4151 = vpop.f32.mrf.mxu0
        %4152 = vmatprep.mubr.bf16.mxu0 0
        %4153 = vmatmul.mubr.bf16.gmra.mxu0 %v3984
        %v4154 = vpop.f32.mrf.mxu0
        %v4155 = vadd.f32 0.0, %v4154
        %v4156 = vpop.f32.mrf.mxu0
        %v4157 = vpop.f32.mrf.mxu0
        %v4158 = vadd.f32 0.0, %v4157
        %v4159 = vpop.f32.mrf.mxu0
        %4160 = vmatprep.mubr.bf16.mxu0 0
        %4161 = vmatmul.mubr.bf16.gmra.mxu0 %v3985
        %v4162 = vpop.f32.mrf.mxu0
        %v4163 = vadd.f32 0.0, %v4162
        %v4164 = vpop.f32.mrf.mxu0
        %v4165 = vpop.f32.mrf.mxu0
        %v4166 = vadd.f32 0.0, %v4165
        %v4167 = vpop.f32.mrf.mxu0
        %4168 = vmatprep.mubr.bf16.mxu0 0
        %4169 = vmatmul.mubr.bf16.gmra.mxu0 %v3986
        %v4170 = vpop.f32.mrf.mxu0
        %v4171 = vadd.f32 0.0, %v4170
        %v4172 = vpop.f32.mrf.mxu0
        %v4173 = vpop.f32.mrf.mxu0
        %v4174 = vadd.f32 0.0, %v4173
        %v4175 = vpop.f32.mrf.mxu0
        %4176 = vmatprep.mubr.bf16.mxu0 0
        %4177 = vmatmul.mubr.bf16.gmra.mxu0 %v3987
        %v4178 = vpop.f32.mrf.mxu0
        %v4179 = vadd.f32 0.0, %v4178
        %v4180 = vpop.f32.mrf.mxu0
        %v4181 = vpop.f32.mrf.mxu0
        %v4182 = vadd.f32 0.0, %v4181
        %v4183 = vpop.f32.mrf.mxu0
        %4184 = vmatprep.mubr.bf16.mxu0 0
        %4185 = vmatmul.mubr.bf16.gmra.mxu0 %v3988
        %v4186 = vpop.f32.mrf.mxu0
        %v4187 = vadd.f32 0.0, %v4186
        %v4188 = vpop.f32.mrf.mxu0
        %v4189 = vpop.f32.mrf.mxu0
        %v4190 = vadd.f32 0.0, %v4189
        %v4191 = vpop.f32.mrf.mxu0
        %4192 = vmatprep.mubr.bf16.mxu0 0
        %4193 = vmatmul.mubr.bf16.gmra.mxu0 %v3989
        %v4194 = vpop.f32.mrf.mxu0
        %v4195 = vadd.f32 0.0, %v4194
        %v4196 = vpop.f32.mrf.mxu0
        %v4197 = vpop.f32.mrf.mxu0
        %v4198 = vadd.f32 0.0, %v4197
        %v4199 = vpop.f32.mrf.mxu0
        %4200 = vmatprep.mubr.bf16.mxu0 0
        %4201 = vmatmul.mubr.bf16.gmra.mxu0 %v3990
        %v4202 = vpop.f32.mrf.mxu0
        %v4203 = vadd.f32 0.0, %v4202
        %v4204 = vpop.f32.mrf.mxu0
        %v4205 = vpop.f32.mrf.mxu0
        %v4206 = vadd.f32 0.0, %v4205
        %v4207 = vpop.f32.mrf.mxu0
        %4208 = vmatprep.mubr.bf16.mxu0 0
        %4209 = vmatmul.mubr.bf16.gmra.mxu0 %v3991
        %v4210 = vpop.f32.mrf.mxu0
        %v4211 = vadd.f32 0.0, %v4210
        %v4212 = vpop.f32.mrf.mxu0
        %v4213 = vpop.f32.mrf.mxu0
        %v4214 = vadd.f32 0.0, %v4213
        %v4215 = vpop.f32.mrf.mxu0
        %4216 = vdwg.mxu0
        %v4217 = vadd.f32 %v3463, %v4091
        %v4218 = vadd.f32 %v3464, %v4094
        %v4219 = vadd.f32 %v3465, %v4099
        %v4220 = vadd.f32 %v3466, %v4102
        %v4221 = vadd.f32 %v3467, %v4107
        %v4222 = vadd.f32 %v3468, %v4110
        %v4223 = vadd.f32 %v3469, %v4115
        %v4224 = vadd.f32 %v3470, %v4118
        %v4225 = vadd.f32 %v3471, %v4123
        %v4226 = vadd.f32 %v3472, %v4126
        %v4227 = vadd.f32 %v3473, %v4131
        %v4228 = vadd.f32 %v3474, %v4134
        %v4229 = vadd.f32 %v3475, %v4139
        %v4230 = vadd.f32 %v3476, %v4142
        %v4231 = vadd.f32 %v3477, %v4147
        %v4232 = vadd.f32 %v3478, %v4150
        %v4233 = vadd.f32 %v3479, %v4155
        %v4234 = vadd.f32 %v3480, %v4158
        %v4235 = vadd.f32 %v3481, %v4163
        %v4236 = vadd.f32 %v3482, %v4166
        %v4237 = vadd.f32 %v3483, %v4171
        %v4238 = vadd.f32 %v3484, %v4174
        %v4239 = vadd.f32 %v3485, %v4179
        %v4240 = vadd.f32 %v3486, %v4182
        %v4241 = vadd.f32 %v3487, %v4187
        %v4242 = vadd.f32 %v3488, %v4190
        %v4243 = vadd.f32 %v3489, %v4195
        %v4244 = vadd.f32 %v3490, %v4198
        %v4245 = vadd.f32 %v3491, %v4203
        %v4246 = vadd.f32 %v3492, %v4206
        %v4247 = vadd.f32 %v3493, %v4211
        %v4248 = vadd.f32 %v3494, %v4214
        %s4249 = scalar_lea.vmem [#allocation2], 40
        %v4250 = vld [vmem:[%s4249 + $0x4] sm:$0x8]
        %v4251 = vld [vmem:[%s4249 + $0x8] sm:$0xf]
        %v4252 = vld [vmem:[%s4249 + $0xc] sm:$0xf]
        %v4253 = vld [vmem:[%s4249 + $0x18] sm:$0x8]
        %v4254 = vld [vmem:[%s4249 + $0x1c] sm:$0xf]
        %v4255 = vld [vmem:[%s4249 + $0x20] sm:$0xf]
        %v4256 = vld [vmem:[%s4249 + $0x2c] sm:$0x8]
        %v4257 = vld [vmem:[%s4249 + $0x30] sm:$0xf]
        %v4258 = vld [vmem:[%s4249 + $0x34] sm:$0xf]
        %v4259 = vld [vmem:[%s4249 + $0x40] sm:$0x8]
        %v4260 = vld [vmem:[%s4249 + $0x44] sm:$0xf]
        %v4261 = vld [vmem:[%s4249 + $0x48] sm:$0xf]
        %v4262 = vld [vmem:[%s4249 + $0x54] sm:$0x8]
        %v4263 = vld [vmem:[%s4249 + $0x58] sm:$0xf]
        %v4264 = vld [vmem:[%s4249 + $0x5c] sm:$0xf]
        %v4265 = vld [vmem:[%s4249 + $0x68] sm:$0x8]
        %v4266 = vld [vmem:[%s4249 + $0x6c] sm:$0xf]
        %v4267 = vld [vmem:[%s4249 + $0x70] sm:$0xf]
        %v4268 = vld [vmem:[%s4249 + $0x7c] sm:$0x8]
        %v4269 = vld [vmem:[%s4249 + $0x80] sm:$0xf]
        %v4270 = vld [vmem:[%s4249 + $0x84] sm:$0xf]
        %v4271 = vld [vmem:[%s4249 + $0x90] sm:$0x8]
        %v4272 = vld [vmem:[%s4249 + $0x94] sm:$0xf]
        %v4273 = vld [vmem:[%s4249 + $0x98] sm:$0xf]
        %v4274 = vld [vmem:[%s4249 + $0xa4] sm:$0x8]
        %v4275 = vld [vmem:[%s4249 + $0xa8] sm:$0xf]
        %v4276 = vld [vmem:[%s4249 + $0xac] sm:$0xf]
        %v4277 = vld [vmem:[%s4249 + $0xb8] sm:$0x8]
        %v4278 = vld [vmem:[%s4249 + $0xbc] sm:$0xf]
        %v4279 = vld [vmem:[%s4249 + $0xc0] sm:$0xf]
        %v4280 = vld [vmem:[%s4249 + $0xcc] sm:$0x8]
        %v4281 = vld [vmem:[%s4249 + $0xd0] sm:$0xf]
        %v4282 = vld [vmem:[%s4249 + $0xd4] sm:$0xf]
        %v4283 = vld [vmem:[%s4249 + $0xe0] sm:$0x8]
        %v4284 = vld [vmem:[%s4249 + $0xe4] sm:$0xf]
        %v4285 = vld [vmem:[%s4249 + $0xe8] sm:$0xf]
        %v4286 = vld [vmem:[%s4249 + $0xf4] sm:$0x8]
        %v4287 = vld [vmem:[%s4249 + $0xf8] sm:$0xf]
        %v4288 = vld [vmem:[%s4249 + $0xfc] sm:$0xf]
        %v4289 = vld [vmem:[%s4249 + $0x108] sm:$0x8]
        %v4290 = vld [vmem:[%s4249 + $0x10c] sm:$0xf]
        %v4291 = vld [vmem:[%s4249 + $0x110] sm:$0xf]
        %v4292 = vld [vmem:[%s4249 + $0x11c] sm:$0x8]
        %v4293 = vld [vmem:[%s4249 + $0x120] sm:$0xf]
        %v4294 = vld [vmem:[%s4249 + $0x124] sm:$0xf]
        %v4295 = vld [vmem:[%s4249 + $0x130] sm:$0x8]
        %v4296 = vld [vmem:[%s4249 + $0x134] sm:$0xf]
        %v4297 = vld [vmem:[%s4249 + $0x138] sm:$0xf]
        %v4299 = vshrl.u32 %v4250, 16
        %v4301 = vrot.slane %v4299, 7
        %v4302 = vrot.slane %v4301, 4
        %v4304 = vshrl.u32 %v4251, 16
        %v4306 = vrot.slane %v4304, 7
        %v4307 = vshll.u32 %v4251, 16
        %v4309 = vor.u32 %v4306, %v4307
        %v4310 = vsel %vm698, %v4302, %v4309
        %v4311 = vrot.slane %v4306, 4
        %v4313 = vshrl.u32 %v4252, 16
        %v4315 = vrot.slane %v4313, 7
        %v4316 = vshll.u32 %v4252, 16
        %v4318 = vor.u32 %v4315, %v4316
        %v4319 = vsel %vm698, %v4311, %v4318
        %v4321 = vshrl.u32 %v4253, 16
        %v4323 = vrot.slane %v4321, 7
        %v4324 = vrot.slane %v4323, 4
        %v4326 = vshrl.u32 %v4254, 16
        %v4328 = vrot.slane %v4326, 7
        %v4329 = vshll.u32 %v4254, 16
        %v4331 = vor.u32 %v4328, %v4329
        %v4332 = vsel %vm698, %v4324, %v4331
        %v4333 = vrot.slane %v4328, 4
        %v4335 = vshrl.u32 %v4255, 16
        %v4337 = vrot.slane %v4335, 7
        %v4338 = vshll.u32 %v4255, 16
        %v4340 = vor.u32 %v4337, %v4338
        %v4341 = vsel %vm698, %v4333, %v4340
        %v4343 = vshrl.u32 %v4256, 16
        %v4345 = vrot.slane %v4343, 7
        %v4346 = vrot.slane %v4345, 4
        %v4348 = vshrl.u32 %v4257, 16
        %v4350 = vrot.slane %v4348, 7
        %v4351 = vshll.u32 %v4257, 16
        %v4353 = vor.u32 %v4350, %v4351
        %v4354 = vsel %vm698, %v4346, %v4353
        %v4355 = vrot.slane %v4350, 4
        %v4357 = vshrl.u32 %v4258, 16
        %v4359 = vrot.slane %v4357, 7
        %v4360 = vshll.u32 %v4258, 16
        %v4362 = vor.u32 %v4359, %v4360
        %v4363 = vsel %vm698, %v4355, %v4362
        %v4365 = vshrl.u32 %v4259, 16
        %v4367 = vrot.slane %v4365, 7
        %v4368 = vrot.slane %v4367, 4
        %v4370 = vshrl.u32 %v4260, 16
        %v4372 = vrot.slane %v4370, 7
        %v4373 = vshll.u32 %v4260, 16
        %v4375 = vor.u32 %v4372, %v4373
        %v4376 = vsel %vm698, %v4368, %v4375
        %v4377 = vrot.slane %v4372, 4
        %v4379 = vshrl.u32 %v4261, 16
        %v4381 = vrot.slane %v4379, 7
        %v4382 = vshll.u32 %v4261, 16
        %v4384 = vor.u32 %v4381, %v4382
        %v4385 = vsel %vm698, %v4377, %v4384
        %v4387 = vshrl.u32 %v4262, 16
        %v4389 = vrot.slane %v4387, 7
        %v4390 = vrot.slane %v4389, 4
        %v4392 = vshrl.u32 %v4263, 16
        %v4394 = vrot.slane %v4392, 7
        %v4395 = vshll.u32 %v4263, 16
        %v4397 = vor.u32 %v4394, %v4395
        %v4398 = vsel %vm698, %v4390, %v4397
        %v4399 = vrot.slane %v4394, 4
        %v4401 = vshrl.u32 %v4264, 16
        %v4403 = vrot.slane %v4401, 7
        %v4404 = vshll.u32 %v4264, 16
        %v4406 = vor.u32 %v4403, %v4404
        %v4407 = vsel %vm698, %v4399, %v4406
        %v4409 = vshrl.u32 %v4265, 16
        %v4411 = vrot.slane %v4409, 7
        %v4412 = vrot.slane %v4411, 4
        %v4414 = vshrl.u32 %v4266, 16
        %v4416 = vrot.slane %v4414, 7
        %v4417 = vshll.u32 %v4266, 16
        %v4419 = vor.u32 %v4416, %v4417
        %v4420 = vsel %vm698, %v4412, %v4419
        %v4421 = vrot.slane %v4416, 4
        %v4423 = vshrl.u32 %v4267, 16
        %v4425 = vrot.slane %v4423, 7
        %v4426 = vshll.u32 %v4267, 16
        %v4428 = vor.u32 %v4425, %v4426
        %v4429 = vsel %vm698, %v4421, %v4428
        %v4431 = vshrl.u32 %v4268, 16
        %v4433 = vrot.slane %v4431, 7
        %v4434 = vrot.slane %v4433, 4
        %v4436 = vshrl.u32 %v4269, 16
        %v4438 = vrot.slane %v4436, 7
        %v4439 = vshll.u32 %v4269, 16
        %v4441 = vor.u32 %v4438, %v4439
        %v4442 = vsel %vm698, %v4434, %v4441
        %v4443 = vrot.slane %v4438, 4
        %v4445 = vshrl.u32 %v4270, 16
        %v4447 = vrot.slane %v4445, 7
        %v4448 = vshll.u32 %v4270, 16
        %v4450 = vor.u32 %v4447, %v4448
        %v4451 = vsel %vm698, %v4443, %v4450
        %v4453 = vshrl.u32 %v4271, 16
        %v4455 = vrot.slane %v4453, 7
        %v4456 = vrot.slane %v4455, 4
        %v4458 = vshrl.u32 %v4272, 16
        %v4460 = vrot.slane %v4458, 7
        %v4461 = vshll.u32 %v4272, 16
        %v4463 = vor.u32 %v4460, %v4461
        %v4464 = vsel %vm698, %v4456, %v4463
        %v4465 = vrot.slane %v4460, 4
        %v4467 = vshrl.u32 %v4273, 16
        %v4469 = vrot.slane %v4467, 7
        %v4470 = vshll.u32 %v4273, 16
        %v4472 = vor.u32 %v4469, %v4470
        %v4473 = vsel %vm698, %v4465, %v4472
        %v4475 = vshrl.u32 %v4274, 16
        %v4477 = vrot.slane %v4475, 7
        %v4478 = vrot.slane %v4477, 4
        %v4480 = vshrl.u32 %v4275, 16
        %v4482 = vrot.slane %v4480, 7
        %v4483 = vshll.u32 %v4275, 16
        %v4485 = vor.u32 %v4482, %v4483
        %v4486 = vsel %vm698, %v4478, %v4485
        %v4487 = vrot.slane %v4482, 4
        %v4489 = vshrl.u32 %v4276, 16
        %v4491 = vrot.slane %v4489, 7
        %v4492 = vshll.u32 %v4276, 16
        %v4494 = vor.u32 %v4491, %v4492
        %v4495 = vsel %vm698, %v4487, %v4494
        %v4497 = vshrl.u32 %v4277, 16
        %v4499 = vrot.slane %v4497, 7
        %v4500 = vrot.slane %v4499, 4
        %v4502 = vshrl.u32 %v4278, 16
        %v4504 = vrot.slane %v4502, 7
        %v4505 = vshll.u32 %v4278, 16
        %v4507 = vor.u32 %v4504, %v4505
        %v4508 = vsel %vm698, %v4500, %v4507
        %v4509 = vrot.slane %v4504, 4
        %v4511 = vshrl.u32 %v4279, 16
        %v4513 = vrot.slane %v4511, 7
        %v4514 = vshll.u32 %v4279, 16
        %v4516 = vor.u32 %v4513, %v4514
        %v4517 = vsel %vm698, %v4509, %v4516
        %v4519 = vshrl.u32 %v4280, 16
        %v4521 = vrot.slane %v4519, 7
        %v4522 = vrot.slane %v4521, 4
        %v4524 = vshrl.u32 %v4281, 16
        %v4526 = vrot.slane %v4524, 7
        %v4527 = vshll.u32 %v4281, 16
        %v4529 = vor.u32 %v4526, %v4527
        %v4530 = vsel %vm698, %v4522, %v4529
        %v4531 = vrot.slane %v4526, 4
        %v4533 = vshrl.u32 %v4282, 16
        %v4535 = vrot.slane %v4533, 7
        %v4536 = vshll.u32 %v4282, 16
        %v4538 = vor.u32 %v4535, %v4536
        %v4539 = vsel %vm698, %v4531, %v4538
        %v4541 = vshrl.u32 %v4283, 16
        %v4543 = vrot.slane %v4541, 7
        %v4544 = vrot.slane %v4543, 4
        %v4546 = vshrl.u32 %v4284, 16
        %v4548 = vrot.slane %v4546, 7
        %v4549 = vshll.u32 %v4284, 16
        %v4551 = vor.u32 %v4548, %v4549
        %v4552 = vsel %vm698, %v4544, %v4551
        %v4553 = vrot.slane %v4548, 4
        %v4555 = vshrl.u32 %v4285, 16
        %v4557 = vrot.slane %v4555, 7
        %v4558 = vshll.u32 %v4285, 16
        %v4560 = vor.u32 %v4557, %v4558
        %v4561 = vsel %vm698, %v4553, %v4560
        %v4563 = vshrl.u32 %v4286, 16
        %v4565 = vrot.slane %v4563, 7
        %v4566 = vrot.slane %v4565, 4
        %v4568 = vshrl.u32 %v4287, 16
        %v4570 = vrot.slane %v4568, 7
        %v4571 = vshll.u32 %v4287, 16
        %v4573 = vor.u32 %v4570, %v4571
        %v4574 = vsel %vm698, %v4566, %v4573
        %v4575 = vrot.slane %v4570, 4
        %v4577 = vshrl.u32 %v4288, 16
        %v4579 = vrot.slane %v4577, 7
        %v4580 = vshll.u32 %v4288, 16
        %v4582 = vor.u32 %v4579, %v4580
        %v4583 = vsel %vm698, %v4575, %v4582
        %v4585 = vshrl.u32 %v4289, 16
        %v4587 = vrot.slane %v4585, 7
        %v4588 = vrot.slane %v4587, 4
        %v4590 = vshrl.u32 %v4290, 16
        %v4592 = vrot.slane %v4590, 7
        %v4593 = vshll.u32 %v4290, 16
        %v4595 = vor.u32 %v4592, %v4593
        %v4596 = vsel %vm698, %v4588, %v4595
        %v4597 = vrot.slane %v4592, 4
        %v4599 = vshrl.u32 %v4291, 16
        %v4601 = vrot.slane %v4599, 7
        %v4602 = vshll.u32 %v4291, 16
        %v4604 = vor.u32 %v4601, %v4602
        %v4605 = vsel %vm698, %v4597, %v4604
        %v4607 = vshrl.u32 %v4292, 16
        %v4609 = vrot.slane %v4607, 7
        %v4610 = vrot.slane %v4609, 4
        %v4612 = vshrl.u32 %v4293, 16
        %v4614 = vrot.slane %v4612, 7
        %v4615 = vshll.u32 %v4293, 16
        %v4617 = vor.u32 %v4614, %v4615
        %v4618 = vsel %vm698, %v4610, %v4617
        %v4619 = vrot.slane %v4614, 4
        %v4621 = vshrl.u32 %v4294, 16
        %v4623 = vrot.slane %v4621, 7
        %v4624 = vshll.u32 %v4294, 16
        %v4626 = vor.u32 %v4623, %v4624
        %v4627 = vsel %vm698, %v4619, %v4626
        %v4629 = vshrl.u32 %v4295, 16
        %v4631 = vrot.slane %v4629, 7
        %v4632 = vrot.slane %v4631, 4
        %v4634 = vshrl.u32 %v4296, 16
        %v4636 = vrot.slane %v4634, 7
        %v4637 = vshll.u32 %v4296, 16
        %v4639 = vor.u32 %v4636, %v4637
        %v4640 = vsel %vm698, %v4632, %v4639
        %v4641 = vrot.slane %v4636, 4
        %v4643 = vshrl.u32 %v4297, 16
        %v4645 = vrot.slane %v4643, 7
        %v4646 = vshll.u32 %v4297, 16
        %v4648 = vor.u32 %v4645, %v4646
        %v4649 = vsel %vm698, %v4641, %v4648
        %s4650 = scalar_lea.vmem [#allocation6], 384
        %v4651 = vld [vmem:[%s4650] sm:$0xf]
        %v4652 = vld [vmem:[%s4650 + $0x4] sm:$0xf]
        %v4653 = vld [vmem:[%s4650 + $0x8] sm:$0xf]
        %v4654 = vld [vmem:[%s4650 + $0xc] sm:$0xf]
        %v4655 = vld [vmem:[%s4650 + $0x10] sm:$0xf]
        %v4656 = vld [vmem:[%s4650 + $0x14] sm:$0xf]
        %v4657 = vld [vmem:[%s4650 + $0x18] sm:$0xf]
        %v4658 = vld [vmem:[%s4650 + $0x1c] sm:$0xf]
        %v4659 = vld [vmem:[%s4650 + $0x20] sm:$0xf]
        %v4660 = vld [vmem:[%s4650 + $0x24] sm:$0xf]
        %v4661 = vld [vmem:[%s4650 + $0x28] sm:$0xf]
        %v4662 = vld [vmem:[%s4650 + $0x2c] sm:$0xf]
        %v4663 = vld [vmem:[%s4650 + $0x30] sm:$0xf]
        %v4664 = vld [vmem:[%s4650 + $0x34] sm:$0xf]
        %v4665 = vld [vmem:[%s4650 + $0x38] sm:$0xf]
        %v4666 = vld [vmem:[%s4650 + $0x3c] sm:$0xf]
        %v4667 = vunpack.c.l.b16 %v4310
        %v4668 = vunpack.c.l.b16 %v4319
        %v4669 = vunpack.c.l.b16 %v4332
        %v4670 = vunpack.c.l.b16 %v4341
        %v4671 = vunpack.c.l.b16 %v4354
        %v4672 = vunpack.c.l.b16 %v4363
        %v4673 = vunpack.c.l.b16 %v4376
        %v4674 = vunpack.c.l.b16 %v4385
        %v4675 = vunpack.c.l.b16 %v4398
        %v4676 = vunpack.c.l.b16 %v4407
        %v4677 = vunpack.c.l.b16 %v4420
        %v4678 = vunpack.c.l.b16 %v4429
        %v4679 = vunpack.c.l.b16 %v4442
        %v4680 = vunpack.c.l.b16 %v4451
        %v4681 = vunpack.c.l.b16 %v4464
        %v4682 = vunpack.c.l.b16 %v4473
        %v4683 = vunpack.c.l.b16 %v4486
        %v4684 = vunpack.c.l.b16 %v4495
        %v4685 = vunpack.c.l.b16 %v4508
        %v4686 = vunpack.c.l.b16 %v4517
        %v4687 = vunpack.c.l.b16 %v4530
        %v4688 = vunpack.c.l.b16 %v4539
        %v4689 = vunpack.c.l.b16 %v4552
        %v4690 = vunpack.c.l.b16 %v4561
        %v4691 = vunpack.c.l.b16 %v4574
        %v4692 = vunpack.c.l.b16 %v4583
        %v4693 = vunpack.c.l.b16 %v4596
        %v4694 = vunpack.c.l.b16 %v4605
        %v4695 = vunpack.c.l.b16 %v4618
        %v4696 = vunpack.c.l.b16 %v4627
        %v4697 = vunpack.c.l.b16 %v4640
        %v4698 = vunpack.c.l.b16 %v4649
        %v4699 = vpack.c.b16 %v4668, %v4667
        %v4700 = vpack.c.b16 %v4670, %v4669
        %v4701 = vpack.c.b16 %v4672, %v4671
        %v4702 = vpack.c.b16 %v4674, %v4673
        %v4703 = vpack.c.b16 %v4676, %v4675
        %v4704 = vpack.c.b16 %v4678, %v4677
        %v4705 = vpack.c.b16 %v4680, %v4679
        %v4706 = vpack.c.b16 %v4682, %v4681
        %v4707 = vpack.c.b16 %v4684, %v4683
        %v4708 = vpack.c.b16 %v4686, %v4685
        %v4709 = vpack.c.b16 %v4688, %v4687
        %v4710 = vpack.c.b16 %v4690, %v4689
        %v4711 = vpack.c.b16 %v4692, %v4691
        %v4712 = vpack.c.b16 %v4694, %v4693
        %v4713 = vpack.c.b16 %v4696, %v4695
        %v4714 = vpack.c.b16 %v4698, %v4697
        %v4747 = vunpack.c.l.b16 %v4651
        %v4748 = vunpack.c.l.b16 %v4652
        %v4749 = vunpack.c.l.b16 %v4653
        %v4750 = vunpack.c.l.b16 %v4654
        %v4751 = vunpack.c.l.b16 %v4655
        %v4752 = vunpack.c.l.b16 %v4656
        %v4753 = vunpack.c.l.b16 %v4657
        %v4754 = vunpack.c.l.b16 %v4658
        %v4755 = vunpack.c.l.b16 %v4659
        %v4756 = vunpack.c.l.b16 %v4660
        %v4757 = vunpack.c.l.b16 %v4661
        %v4758 = vunpack.c.l.b16 %v4662
        %v4759 = vunpack.c.l.b16 %v4663
        %v4760 = vunpack.c.l.b16 %v4664
        %v4761 = vunpack.c.l.b16 %v4665
        %v4762 = vunpack.c.l.b16 %v4666
        %v4763 = vpack.c.b16 %v4748, %v4747
        %v4764 = vpack.c.b16 %v4750, %v4749
        %v4765 = vpack.c.b16 %v4752, %v4751
        %v4766 = vpack.c.b16 %v4754, %v4753
        %v4767 = vpack.c.b16 %v4756, %v4755
        %v4768 = vpack.c.b16 %v4758, %v4757
        %v4769 = vpack.c.b16 %v4760, %v4759
        %v4770 = vpack.c.b16 %v4762, %v4761
        %4779 = vmatprep.subr.bf16.mxu0 0
        %4780 = vmatpush1.bf16.msra.mxu0 %v4770
        %4781 = vmatprep.subr.bf16.mxu0 0
        %4782 = vmatpush1.bf16.msra.mxu0 %v4769
        %4783 = vmatprep.subr.bf16.mxu0 0
        %4784 = vmatpush1.bf16.msra.mxu0 %v4768
        %4785 = vmatprep.subr.bf16.mxu0 0
        %4786 = vmatpush1.bf16.msra.mxu0 %v4767
        %4787 = vmatprep.subr.bf16.mxu0 0
        %4788 = vmatpush1.bf16.msra.mxu0 %v4766
        %4789 = vmatprep.subr.bf16.mxu0 0
        %4790 = vmatpush1.bf16.msra.mxu0 %v4765
        %4791 = vmatprep.subr.bf16.mxu0 0
        %4792 = vmatpush1.bf16.msra.mxu0 %v4764
        %4793 = vmatprep.subr.bf16.mxu0 0
        %4794 = vmatpush1.bf16.msra.mxu0 %v4763
        %4795 = vmatprep.subr.bf16.mxu0 0
        %4796 = vmatpush2.bf16.msra.mxu0 0
        %4797 = vmatprep.subr.bf16.mxu0 0
        %4798 = vmatpush2.bf16.msra.mxu0 0
        %4799 = vmatprep.subr.bf16.mxu0 0
        %4800 = vmatpush2.bf16.msra.mxu0 0
        %4801 = vmatprep.subr.bf16.mxu0 0
        %4802 = vmatpush2.bf16.msra.mxu0 0
        %4803 = vmatprep.subr.bf16.mxu0 0
        %4804 = vmatpush2.bf16.msra.mxu0 0
        %4805 = vmatprep.subr.bf16.mxu0 0
        %4806 = vmatpush2.bf16.msra.mxu0 0
        %4807 = vmatprep.subr.bf16.mxu0 0
        %4808 = vmatpush2.bf16.msra.mxu0 0
        %4809 = vmatprep.subr.bf16.mxu0 0
        %4810 = vmatpush2.bf16.msra.mxu0 0
        %4811 = vmatprep.mubr.bf16.mxu0 0
        %4812 = vmatmul.mubr.bf16.gmra.mxu0 %v4699
        %v4813 = vpop.f32.mrf.mxu0
        %v4814 = vadd.f32 0.0, %v4813
        %v4815 = vpop.f32.mrf.mxu0
        %v4816 = vpop.f32.mrf.mxu0
        %v4817 = vadd.f32 0.0, %v4816
        %v4818 = vpop.f32.mrf.mxu0
        %4819 = vmatprep.mubr.bf16.mxu0 0
        %4820 = vmatmul.mubr.bf16.gmra.mxu0 %v4700
        %v4821 = vpop.f32.mrf.mxu0
        %v4822 = vadd.f32 0.0, %v4821
        %v4823 = vpop.f32.mrf.mxu0
        %v4824 = vpop.f32.mrf.mxu0
        %v4825 = vadd.f32 0.0, %v4824
        %v4826 = vpop.f32.mrf.mxu0
        %4827 = vmatprep.mubr.bf16.mxu0 0
        %4828 = vmatmul.mubr.bf16.gmra.mxu0 %v4701
        %v4829 = vpop.f32.mrf.mxu0
        %v4830 = vadd.f32 0.0, %v4829
        %v4831 = vpop.f32.mrf.mxu0
        %v4832 = vpop.f32.mrf.mxu0
        %v4833 = vadd.f32 0.0, %v4832
        %v4834 = vpop.f32.mrf.mxu0
        %4835 = vmatprep.mubr.bf16.mxu0 0
        %4836 = vmatmul.mubr.bf16.gmra.mxu0 %v4702
        %v4837 = vpop.f32.mrf.mxu0
        %v4838 = vadd.f32 0.0, %v4837
        %v4839 = vpop.f32.mrf.mxu0
        %v4840 = vpop.f32.mrf.mxu0
        %v4841 = vadd.f32 0.0, %v4840
        %v4842 = vpop.f32.mrf.mxu0
        %4843 = vmatprep.mubr.bf16.mxu0 0
        %4844 = vmatmul.mubr.bf16.gmra.mxu0 %v4703
        %v4845 = vpop.f32.mrf.mxu0
        %v4846 = vadd.f32 0.0, %v4845
        %v4847 = vpop.f32.mrf.mxu0
        %v4848 = vpop.f32.mrf.mxu0
        %v4849 = vadd.f32 0.0, %v4848
        %v4850 = vpop.f32.mrf.mxu0
        %4851 = vmatprep.mubr.bf16.mxu0 0
        %4852 = vmatmul.mubr.bf16.gmra.mxu0 %v4704
        %v4853 = vpop.f32.mrf.mxu0
        %v4854 = vadd.f32 0.0, %v4853
        %v4855 = vpop.f32.mrf.mxu0
        %v4856 = vpop.f32.mrf.mxu0
        %v4857 = vadd.f32 0.0, %v4856
        %v4858 = vpop.f32.mrf.mxu0
        %4859 = vmatprep.mubr.bf16.mxu0 0
        %4860 = vmatmul.mubr.bf16.gmra.mxu0 %v4705
        %v4861 = vpop.f32.mrf.mxu0
        %v4862 = vadd.f32 0.0, %v4861
        %v4863 = vpop.f32.mrf.mxu0
        %v4864 = vpop.f32.mrf.mxu0
        %v4865 = vadd.f32 0.0, %v4864
        %v4866 = vpop.f32.mrf.mxu0
        %4867 = vmatprep.mubr.bf16.mxu0 0
        %4868 = vmatmul.mubr.bf16.gmra.mxu0 %v4706
        %v4869 = vpop.f32.mrf.mxu0
        %v4870 = vadd.f32 0.0, %v4869
        %v4871 = vpop.f32.mrf.mxu0
        %v4872 = vpop.f32.mrf.mxu0
        %v4873 = vadd.f32 0.0, %v4872
        %v4874 = vpop.f32.mrf.mxu0
        %4875 = vmatprep.mubr.bf16.mxu0 0
        %4876 = vmatmul.mubr.bf16.gmra.mxu0 %v4707
        %v4877 = vpop.f32.mrf.mxu0
        %v4878 = vadd.f32 0.0, %v4877
        %v4879 = vpop.f32.mrf.mxu0
        %v4880 = vpop.f32.mrf.mxu0
        %v4881 = vadd.f32 0.0, %v4880
        %v4882 = vpop.f32.mrf.mxu0
        %4883 = vmatprep.mubr.bf16.mxu0 0
        %4884 = vmatmul.mubr.bf16.gmra.mxu0 %v4708
        %v4885 = vpop.f32.mrf.mxu0
        %v4886 = vadd.f32 0.0, %v4885
        %v4887 = vpop.f32.mrf.mxu0
        %v4888 = vpop.f32.mrf.mxu0
        %v4889 = vadd.f32 0.0, %v4888
        %v4890 = vpop.f32.mrf.mxu0
        %4891 = vmatprep.mubr.bf16.mxu0 0
        %4892 = vmatmul.mubr.bf16.gmra.mxu0 %v4709
        %v4893 = vpop.f32.mrf.mxu0
        %v4894 = vadd.f32 0.0, %v4893
        %v4895 = vpop.f32.mrf.mxu0
        %v4896 = vpop.f32.mrf.mxu0
        %v4897 = vadd.f32 0.0, %v4896
        %v4898 = vpop.f32.mrf.mxu0
        %4899 = vmatprep.mubr.bf16.mxu0 0
        %4900 = vmatmul.mubr.bf16.gmra.mxu0 %v4710
        %v4901 = vpop.f32.mrf.mxu0
        %v4902 = vadd.f32 0.0, %v4901
        %v4903 = vpop.f32.mrf.mxu0
        %v4904 = vpop.f32.mrf.mxu0
        %v4905 = vadd.f32 0.0, %v4904
        %v4906 = vpop.f32.mrf.mxu0
        %4907 = vmatprep.mubr.bf16.mxu0 0
        %4908 = vmatmul.mubr.bf16.gmra.mxu0 %v4711
        %v4909 = vpop.f32.mrf.mxu0
        %v4910 = vadd.f32 0.0, %v4909
        %v4911 = vpop.f32.mrf.mxu0
        %v4912 = vpop.f32.mrf.mxu0
        %v4913 = vadd.f32 0.0, %v4912
        %v4914 = vpop.f32.mrf.mxu0
        %4915 = vmatprep.mubr.bf16.mxu0 0
        %4916 = vmatmul.mubr.bf16.gmra.mxu0 %v4712
        %v4917 = vpop.f32.mrf.mxu0
        %v4918 = vadd.f32 0.0, %v4917
        %v4919 = vpop.f32.mrf.mxu0
        %v4920 = vpop.f32.mrf.mxu0
        %v4921 = vadd.f32 0.0, %v4920
        %v4922 = vpop.f32.mrf.mxu0
        %4923 = vmatprep.mubr.bf16.mxu0 0
        %4924 = vmatmul.mubr.bf16.gmra.mxu0 %v4713
        %v4925 = vpop.f32.mrf.mxu0
        %v4926 = vadd.f32 0.0, %v4925
        %v4927 = vpop.f32.mrf.mxu0
        %v4928 = vpop.f32.mrf.mxu0
        %v4929 = vadd.f32 0.0, %v4928
        %v4930 = vpop.f32.mrf.mxu0
        %4931 = vmatprep.mubr.bf16.mxu0 0
        %4932 = vmatmul.mubr.bf16.gmra.mxu0 %v4714
        %v4933 = vpop.f32.mrf.mxu0
        %v4934 = vadd.f32 0.0, %v4933
        %v4935 = vpop.f32.mrf.mxu0
        %v4936 = vpop.f32.mrf.mxu0
        %v4937 = vadd.f32 0.0, %v4936
        %v4938 = vpop.f32.mrf.mxu0
        %4939 = vdwg.mxu0
        %v4940 = vadd.f32 %v4217, %v4814
        %v4941 = vadd.f32 %v4218, %v4817
        %v4942 = vadd.f32 %v4219, %v4822
        %v4943 = vadd.f32 %v4220, %v4825
        %v4944 = vadd.f32 %v4221, %v4830
        %v4945 = vadd.f32 %v4222, %v4833
        %v4946 = vadd.f32 %v4223, %v4838
        %v4947 = vadd.f32 %v4224, %v4841
        %v4948 = vadd.f32 %v4225, %v4846
        %v4949 = vadd.f32 %v4226, %v4849
        %v4950 = vadd.f32 %v4227, %v4854
        %v4951 = vadd.f32 %v4228, %v4857
        %v4952 = vadd.f32 %v4229, %v4862
        %v4953 = vadd.f32 %v4230, %v4865
        %v4954 = vadd.f32 %v4231, %v4870
        %v4955 = vadd.f32 %v4232, %v4873
        %v4956 = vadd.f32 %v4233, %v4878
        %v4957 = vadd.f32 %v4234, %v4881
        %v4958 = vadd.f32 %v4235, %v4886
        %v4959 = vadd.f32 %v4236, %v4889
        %v4960 = vadd.f32 %v4237, %v4894
        %v4961 = vadd.f32 %v4238, %v4897
        %v4962 = vadd.f32 %v4239, %v4902
        %v4963 = vadd.f32 %v4240, %v4905
        %v4964 = vadd.f32 %v4241, %v4910
        %v4965 = vadd.f32 %v4242, %v4913
        %v4966 = vadd.f32 %v4243, %v4918
        %v4967 = vadd.f32 %v4244, %v4921
        %v4968 = vadd.f32 %v4245, %v4926
        %v4969 = vadd.f32 %v4246, %v4929
        %v4970 = vadd.f32 %v4247, %v4934
        %v4971 = vadd.f32 %v4248, %v4937
        %s4972 = scalar_lea.vmem [#allocation6], 448
        %v4973 = vld [vmem:[%s4972] sm:$0xf]
        %v4974 = vld [vmem:[%s4972 + $0x4] sm:$0xf]
        %v4975 = vld [vmem:[%s4972 + $0x8] sm:$0xf]
        %v4976 = vld [vmem:[%s4972 + $0xc] sm:$0xf]
        %v4977 = vld [vmem:[%s4972 + $0x10] sm:$0xf]
        %v4978 = vld [vmem:[%s4972 + $0x14] sm:$0xf]
        %v4979 = vld [vmem:[%s4972 + $0x18] sm:$0xf]
        %v4980 = vld [vmem:[%s4972 + $0x1c] sm:$0xf]
        %v4981 = vld [vmem:[%s4972 + $0x20] sm:$0xf]
        %v4982 = vld [vmem:[%s4972 + $0x24] sm:$0xf]
        %v4983 = vld [vmem:[%s4972 + $0x28] sm:$0xf]
        %v4984 = vld [vmem:[%s4972 + $0x2c] sm:$0xf]
        %v4985 = vld [vmem:[%s4972 + $0x30] sm:$0xf]
        %v4986 = vld [vmem:[%s4972 + $0x34] sm:$0xf]
        %v4987 = vld [vmem:[%s4972 + $0x38] sm:$0xf]
        %v4988 = vld [vmem:[%s4972 + $0x3c] sm:$0xf]
        %v5021 = vunpack.c.l.b16 %v4251
        %v5022 = vunpack.c.l.b16 %v4252
        %v5023 = vunpack.c.l.b16 %v4254
        %v5024 = vunpack.c.l.b16 %v4255
        %v5025 = vunpack.c.l.b16 %v4257
        %v5026 = vunpack.c.l.b16 %v4258
        %v5027 = vunpack.c.l.b16 %v4260
        %v5028 = vunpack.c.l.b16 %v4261
        %v5029 = vunpack.c.l.b16 %v4263
        %v5030 = vunpack.c.l.b16 %v4264
        %v5031 = vunpack.c.l.b16 %v4266
        %v5032 = vunpack.c.l.b16 %v4267
        %v5033 = vunpack.c.l.b16 %v4269
        %v5034 = vunpack.c.l.b16 %v4270
        %v5035 = vunpack.c.l.b16 %v4272
        %v5036 = vunpack.c.l.b16 %v4273
        %v5037 = vunpack.c.l.b16 %v4275
        %v5038 = vunpack.c.l.b16 %v4276
        %v5039 = vunpack.c.l.b16 %v4278
        %v5040 = vunpack.c.l.b16 %v4279
        %v5041 = vunpack.c.l.b16 %v4281
        %v5042 = vunpack.c.l.b16 %v4282
        %v5043 = vunpack.c.l.b16 %v4284
        %v5044 = vunpack.c.l.b16 %v4285
        %v5045 = vunpack.c.l.b16 %v4287
        %v5046 = vunpack.c.l.b16 %v4288
        %v5047 = vunpack.c.l.b16 %v4290
        %v5048 = vunpack.c.l.b16 %v4291
        %v5049 = vunpack.c.l.b16 %v4293
        %v5050 = vunpack.c.l.b16 %v4294
        %v5051 = vunpack.c.l.b16 %v4296
        %v5052 = vunpack.c.l.b16 %v4297
        %v5053 = vpack.c.b16 %v5022, %v5021
        %v5054 = vpack.c.b16 %v5024, %v5023
        %v5055 = vpack.c.b16 %v5026, %v5025
        %v5056 = vpack.c.b16 %v5028, %v5027
        %v5057 = vpack.c.b16 %v5030, %v5029
        %v5058 = vpack.c.b16 %v5032, %v5031
        %v5059 = vpack.c.b16 %v5034, %v5033
        %v5060 = vpack.c.b16 %v5036, %v5035
        %v5061 = vpack.c.b16 %v5038, %v5037
        %v5062 = vpack.c.b16 %v5040, %v5039
        %v5063 = vpack.c.b16 %v5042, %v5041
        %v5064 = vpack.c.b16 %v5044, %v5043
        %v5065 = vpack.c.b16 %v5046, %v5045
        %v5066 = vpack.c.b16 %v5048, %v5047
        %v5067 = vpack.c.b16 %v5050, %v5049
        %v5068 = vpack.c.b16 %v5052, %v5051
        %v5101 = vunpack.c.l.b16 %v4973
        %v5102 = vunpack.c.l.b16 %v4974
        %v5103 = vunpack.c.l.b16 %v4975
        %v5104 = vunpack.c.l.b16 %v4976
        %v5105 = vunpack.c.l.b16 %v4977
        %v5106 = vunpack.c.l.b16 %v4978
        %v5107 = vunpack.c.l.b16 %v4979
        %v5108 = vunpack.c.l.b16 %v4980
        %v5109 = vunpack.c.l.b16 %v4981
        %v5110 = vunpack.c.l.b16 %v4982
        %v5111 = vunpack.c.l.b16 %v4983
        %v5112 = vunpack.c.l.b16 %v4984
        %v5113 = vunpack.c.l.b16 %v4985
        %v5114 = vunpack.c.l.b16 %v4986
        %v5115 = vunpack.c.l.b16 %v4987
        %v5116 = vunpack.c.l.b16 %v4988
        %v5117 = vpack.c.b16 %v5102, %v5101
        %v5118 = vpack.c.b16 %v5104, %v5103
        %v5119 = vpack.c.b16 %v5106, %v5105
        %v5120 = vpack.c.b16 %v5108, %v5107
        %v5121 = vpack.c.b16 %v5110, %v5109
        %v5122 = vpack.c.b16 %v5112, %v5111
        %v5123 = vpack.c.b16 %v5114, %v5113
        %v5124 = vpack.c.b16 %v5116, %v5115
        %5133 = vmatprep.subr.bf16.mxu0 0
        %5134 = vmatpush1.bf16.msra.mxu0 %v5124
        %5135 = vmatprep.subr.bf16.mxu0 0
        %5136 = vmatpush1.bf16.msra.mxu0 %v5123
        %5137 = vmatprep.subr.bf16.mxu0 0
        %5138 = vmatpush1.bf16.msra.mxu0 %v5122
        %5139 = vmatprep.subr.bf16.mxu0 0
        %5140 = vmatpush1.bf16.msra.mxu0 %v5121
        %5141 = vmatprep.subr.bf16.mxu0 0
        %5142 = vmatpush1.bf16.msra.mxu0 %v5120
        %5143 = vmatprep.subr.bf16.mxu0 0
        %5144 = vmatpush1.bf16.msra.mxu0 %v5119
        %5145 = vmatprep.subr.bf16.mxu0 0
        %5146 = vmatpush1.bf16.msra.mxu0 %v5118
        %5147 = vmatprep.subr.bf16.mxu0 0
        %5148 = vmatpush1.bf16.msra.mxu0 %v5117
        %5149 = vmatprep.subr.bf16.mxu0 0
        %5150 = vmatpush2.bf16.msra.mxu0 0
        %5151 = vmatprep.subr.bf16.mxu0 0
        %5152 = vmatpush2.bf16.msra.mxu0 0
        %5153 = vmatprep.subr.bf16.mxu0 0
        %5154 = vmatpush2.bf16.msra.mxu0 0
        %5155 = vmatprep.subr.bf16.mxu0 0
        %5156 = vmatpush2.bf16.msra.mxu0 0
        %5157 = vmatprep.subr.bf16.mxu0 0
        %5158 = vmatpush2.bf16.msra.mxu0 0
        %5159 = vmatprep.subr.bf16.mxu0 0
        %5160 = vmatpush2.bf16.msra.mxu0 0
        %5161 = vmatprep.subr.bf16.mxu0 0
        %5162 = vmatpush2.bf16.msra.mxu0 0
        %5163 = vmatprep.subr.bf16.mxu0 0
        %5164 = vmatpush2.bf16.msra.mxu0 0
        %5165 = vmatprep.mubr.bf16.mxu0 0
        %5166 = vmatmul.mubr.bf16.gmra.mxu0 %v5053
        %v5167 = vpop.f32.mrf.mxu0
        %v5168 = vadd.f32 0.0, %v5167
        %v5169 = vpop.f32.mrf.mxu0
        %v5170 = vpop.f32.mrf.mxu0
        %v5171 = vadd.f32 0.0, %v5170
        %v5172 = vpop.f32.mrf.mxu0
        %5173 = vmatprep.mubr.bf16.mxu0 0
        %5174 = vmatmul.mubr.bf16.gmra.mxu0 %v5054
        %v5175 = vpop.f32.mrf.mxu0
        %v5176 = vadd.f32 0.0, %v5175
        %v5177 = vpop.f32.mrf.mxu0
        %v5178 = vpop.f32.mrf.mxu0
        %v5179 = vadd.f32 0.0, %v5178
        %v5180 = vpop.f32.mrf.mxu0
        %5181 = vmatprep.mubr.bf16.mxu0 0
        %5182 = vmatmul.mubr.bf16.gmra.mxu0 %v5055
        %v5183 = vpop.f32.mrf.mxu0
        %v5184 = vadd.f32 0.0, %v5183
        %v5185 = vpop.f32.mrf.mxu0
        %v5186 = vpop.f32.mrf.mxu0
        %v5187 = vadd.f32 0.0, %v5186
        %v5188 = vpop.f32.mrf.mxu0
        %5189 = vmatprep.mubr.bf16.mxu0 0
        %5190 = vmatmul.mubr.bf16.gmra.mxu0 %v5056
        %v5191 = vpop.f32.mrf.mxu0
        %v5192 = vadd.f32 0.0, %v5191
        %v5193 = vpop.f32.mrf.mxu0
        %v5194 = vpop.f32.mrf.mxu0
        %v5195 = vadd.f32 0.0, %v5194
        %v5196 = vpop.f32.mrf.mxu0
        %5197 = vmatprep.mubr.bf16.mxu0 0
        %5198 = vmatmul.mubr.bf16.gmra.mxu0 %v5057
        %v5199 = vpop.f32.mrf.mxu0
        %v5200 = vadd.f32 0.0, %v5199
        %v5201 = vpop.f32.mrf.mxu0
        %v5202 = vpop.f32.mrf.mxu0
        %v5203 = vadd.f32 0.0, %v5202
        %v5204 = vpop.f32.mrf.mxu0
        %5205 = vmatprep.mubr.bf16.mxu0 0
        %5206 = vmatmul.mubr.bf16.gmra.mxu0 %v5058
        %v5207 = vpop.f32.mrf.mxu0
        %v5208 = vadd.f32 0.0, %v5207
        %v5209 = vpop.f32.mrf.mxu0
        %v5210 = vpop.f32.mrf.mxu0
        %v5211 = vadd.f32 0.0, %v5210
        %v5212 = vpop.f32.mrf.mxu0
        %5213 = vmatprep.mubr.bf16.mxu0 0
        %5214 = vmatmul.mubr.bf16.gmra.mxu0 %v5059
        %v5215 = vpop.f32.mrf.mxu0
        %v5216 = vadd.f32 0.0, %v5215
        %v5217 = vpop.f32.mrf.mxu0
        %v5218 = vpop.f32.mrf.mxu0
        %v5219 = vadd.f32 0.0, %v5218
        %v5220 = vpop.f32.mrf.mxu0
        %5221 = vmatprep.mubr.bf16.mxu0 0
        %5222 = vmatmul.mubr.bf16.gmra.mxu0 %v5060
        %v5223 = vpop.f32.mrf.mxu0
        %v5224 = vadd.f32 0.0, %v5223
        %v5225 = vpop.f32.mrf.mxu0
        %v5226 = vpop.f32.mrf.mxu0
        %v5227 = vadd.f32 0.0, %v5226
        %v5228 = vpop.f32.mrf.mxu0
        %5229 = vmatprep.mubr.bf16.mxu0 0
        %5230 = vmatmul.mubr.bf16.gmra.mxu0 %v5061
        %v5231 = vpop.f32.mrf.mxu0
        %v5232 = vadd.f32 0.0, %v5231
        %v5233 = vpop.f32.mrf.mxu0
        %v5234 = vpop.f32.mrf.mxu0
        %v5235 = vadd.f32 0.0, %v5234
        %v5236 = vpop.f32.mrf.mxu0
        %5237 = vmatprep.mubr.bf16.mxu0 0
        %5238 = vmatmul.mubr.bf16.gmra.mxu0 %v5062
        %v5239 = vpop.f32.mrf.mxu0
        %v5240 = vadd.f32 0.0, %v5239
        %v5241 = vpop.f32.mrf.mxu0
        %v5242 = vpop.f32.mrf.mxu0
        %v5243 = vadd.f32 0.0, %v5242
        %v5244 = vpop.f32.mrf.mxu0
        %5245 = vmatprep.mubr.bf16.mxu0 0
        %5246 = vmatmul.mubr.bf16.gmra.mxu0 %v5063
        %v5247 = vpop.f32.mrf.mxu0
        %v5248 = vadd.f32 0.0, %v5247
        %v5249 = vpop.f32.mrf.mxu0
        %v5250 = vpop.f32.mrf.mxu0
        %v5251 = vadd.f32 0.0, %v5250
        %v5252 = vpop.f32.mrf.mxu0
        %5253 = vmatprep.mubr.bf16.mxu0 0
        %5254 = vmatmul.mubr.bf16.gmra.mxu0 %v5064
        %v5255 = vpop.f32.mrf.mxu0
        %v5256 = vadd.f32 0.0, %v5255
        %v5257 = vpop.f32.mrf.mxu0
        %v5258 = vpop.f32.mrf.mxu0
        %v5259 = vadd.f32 0.0, %v5258
        %v5260 = vpop.f32.mrf.mxu0
        %5261 = vmatprep.mubr.bf16.mxu0 0
        %5262 = vmatmul.mubr.bf16.gmra.mxu0 %v5065
        %v5263 = vpop.f32.mrf.mxu0
        %v5264 = vadd.f32 0.0, %v5263
        %v5265 = vpop.f32.mrf.mxu0
        %v5266 = vpop.f32.mrf.mxu0
        %v5267 = vadd.f32 0.0, %v5266
        %v5268 = vpop.f32.mrf.mxu0
        %5269 = vmatprep.mubr.bf16.mxu0 0
        %5270 = vmatmul.mubr.bf16.gmra.mxu0 %v5066
        %v5271 = vpop.f32.mrf.mxu0
        %v5272 = vadd.f32 0.0, %v5271
        %v5273 = vpop.f32.mrf.mxu0
        %v5274 = vpop.f32.mrf.mxu0
        %v5275 = vadd.f32 0.0, %v5274
        %v5276 = vpop.f32.mrf.mxu0
        %5277 = vmatprep.mubr.bf16.mxu0 0
        %5278 = vmatmul.mubr.bf16.gmra.mxu0 %v5067
        %v5279 = vpop.f32.mrf.mxu0
        %v5280 = vadd.f32 0.0, %v5279
        %v5281 = vpop.f32.mrf.mxu0
        %v5282 = vpop.f32.mrf.mxu0
        %v5283 = vadd.f32 0.0, %v5282
        %v5284 = vpop.f32.mrf.mxu0
        %5285 = vmatprep.mubr.bf16.mxu0 0
        %5286 = vmatmul.mubr.bf16.gmra.mxu0 %v5068
        %v5287 = vpop.f32.mrf.mxu0
        %v5288 = vadd.f32 0.0, %v5287
        %v5289 = vpop.f32.mrf.mxu0
        %v5290 = vpop.f32.mrf.mxu0
        %v5291 = vadd.f32 0.0, %v5290
        %v5292 = vpop.f32.mrf.mxu0
        %5293 = vdwg.mxu0
        %v5294 = vadd.f32 %v4940, %v5168
        %v5295 = vadd.f32 %v4941, %v5171
        %v5296 = vadd.f32 %v4942, %v5176
        %v5297 = vadd.f32 %v4943, %v5179
        %v5298 = vadd.f32 %v4944, %v5184
        %v5299 = vadd.f32 %v4945, %v5187
        %v5300 = vadd.f32 %v4946, %v5192
        %v5301 = vadd.f32 %v4947, %v5195
        %v5302 = vadd.f32 %v4948, %v5200
        %v5303 = vadd.f32 %v4949, %v5203
        %v5304 = vadd.f32 %v4950, %v5208
        %v5305 = vadd.f32 %v4951, %v5211
        %v5306 = vadd.f32 %v4952, %v5216
        %v5307 = vadd.f32 %v4953, %v5219
        %v5308 = vadd.f32 %v4954, %v5224
        %v5309 = vadd.f32 %v4955, %v5227
        %v5310 = vadd.f32 %v4956, %v5232
        %v5311 = vadd.f32 %v4957, %v5235
        %v5312 = vadd.f32 %v4958, %v5240
        %v5313 = vadd.f32 %v4959, %v5243
        %v5314 = vadd.f32 %v4960, %v5248
        %v5315 = vadd.f32 %v4961, %v5251
        %v5316 = vadd.f32 %v4962, %v5256
        %v5317 = vadd.f32 %v4963, %v5259
        %v5318 = vadd.f32 %v4964, %v5264
        %v5319 = vadd.f32 %v4965, %v5267
        %v5320 = vadd.f32 %v4966, %v5272
        %v5321 = vadd.f32 %v4967, %v5275
        %v5322 = vadd.f32 %v4968, %v5280
        %v5323 = vadd.f32 %v4969, %v5283
        %v5324 = vadd.f32 %v4970, %v5288
        %v5325 = vadd.f32 %v4971, %v5291
        %v5326 = vld [vmem:[%s4249 + $0x8] sm:$0xf]
        %v5327 = vld [vmem:[%s4249 + $0xc] sm:$0xf]
        %v5328 = vld [vmem:[%s4249 + $0x10] sm:$0x1]
        %v5329 = vld [vmem:[%s4249 + $0x1c] sm:$0xf]
        %v5330 = vld [vmem:[%s4249 + $0x20] sm:$0xf]
        %v5331 = vld [vmem:[%s4249 + $0x24] sm:$0x1]
        %v5332 = vld [vmem:[%s4249 + $0x30] sm:$0xf]
        %v5333 = vld [vmem:[%s4249 + $0x34] sm:$0xf]
        %v5334 = vld [vmem:[%s4249 + $0x38] sm:$0x1]
        %v5335 = vld [vmem:[%s4249 + $0x44] sm:$0xf]
        %v5336 = vld [vmem:[%s4249 + $0x48] sm:$0xf]
        %v5337 = vld [vmem:[%s4249 + $0x4c] sm:$0x1]
        %v5338 = vld [vmem:[%s4249 + $0x58] sm:$0xf]
        %v5339 = vld [vmem:[%s4249 + $0x5c] sm:$0xf]
        %v5340 = vld [vmem:[%s4249 + $0x60] sm:$0x1]
        %v5341 = vld [vmem:[%s4249 + $0x6c] sm:$0xf]
        %v5342 = vld [vmem:[%s4249 + $0x70] sm:$0xf]
        %v5343 = vld [vmem:[%s4249 + $0x74] sm:$0x1]
        %v5344 = vld [vmem:[%s4249 + $0x80] sm:$0xf]
        %v5345 = vld [vmem:[%s4249 + $0x84] sm:$0xf]
        %v5346 = vld [vmem:[%s4249 + $0x88] sm:$0x1]
        %v5347 = vld [vmem:[%s4249 + $0x94] sm:$0xf]
        %v5348 = vld [vmem:[%s4249 + $0x98] sm:$0xf]
        %v5349 = vld [vmem:[%s4249 + $0x9c] sm:$0x1]
        %v5350 = vld [vmem:[%s4249 + $0xa8] sm:$0xf]
        %v5351 = vld [vmem:[%s4249 + $0xac] sm:$0xf]
        %v5352 = vld [vmem:[%s4249 + $0xb0] sm:$0x1]
        %v5353 = vld [vmem:[%s4249 + $0xbc] sm:$0xf]
        %v5354 = vld [vmem:[%s4249 + $0xc0] sm:$0xf]
        %v5355 = vld [vmem:[%s4249 + $0xc4] sm:$0x1]
        %v5356 = vld [vmem:[%s4249 + $0xd0] sm:$0xf]
        %v5357 = vld [vmem:[%s4249 + $0xd4] sm:$0xf]
        %v5358 = vld [vmem:[%s4249 + $0xd8] sm:$0x1]
        %v5359 = vld [vmem:[%s4249 + $0xe4] sm:$0xf]
        %v5360 = vld [vmem:[%s4249 + $0xe8] sm:$0xf]
        %v5361 = vld [vmem:[%s4249 + $0xec] sm:$0x1]
        %v5362 = vld [vmem:[%s4249 + $0xf8] sm:$0xf]
        %v5363 = vld [vmem:[%s4249 + $0xfc] sm:$0xf]
        %v5364 = vld [vmem:[%s4249 + $0x100] sm:$0x1]
        %v5365 = vld [vmem:[%s4249 + $0x10c] sm:$0xf]
        %v5366 = vld [vmem:[%s4249 + $0x110] sm:$0xf]
        %v5367 = vld [vmem:[%s4249 + $0x114] sm:$0x1]
        %v5368 = vld [vmem:[%s4249 + $0x120] sm:$0xf]
        %v5369 = vld [vmem:[%s4249 + $0x124] sm:$0xf]
        %v5370 = vld [vmem:[%s4249 + $0x128] sm:$0x1]
        %v5371 = vld [vmem:[%s4249 + $0x134] sm:$0xf]
        %v5372 = vld [vmem:[%s4249 + $0x138] sm:$0xf]
        %v5373 = vld [vmem:[%s4249 + $0x13c] sm:$0x1]
        %v5375 = vshrl.u32 %v5326, 16
        %v5377 = vrot.slane %v5375, 4
        %v5378 = vshll.u32 %v5326, 16
        %v5380 = vrot.slane %v5378, 5
        %v5381 = vor.u32 %v5377, %v5380
        %v5382 = vrot.slane %v5381, 4
        %v5384 = vshll.u32 %v5327, 16
        %v5386 = vrot.slane %v5384, 5
        %v5387 = vsel %vm1712, %v5382, %v5386
        %v5388 = vshrl.u32 %v5327, 16
        %v5390 = vrot.slane %v5388, 4
        %v5391 = vor.u32 %v5390, %v5386
        %v5392 = vrot.slane %v5391, 4
        %v5394 = vshll.u32 %v5328, 16
        %v5396 = vrot.slane %v5394, 5
        %v5397 = vsel %vm1712, %v5392, %v5396
        %v5399 = vshrl.u32 %v5329, 16
        %v5401 = vrot.slane %v5399, 4
        %v5402 = vshll.u32 %v5329, 16
        %v5404 = vrot.slane %v5402, 5
        %v5405 = vor.u32 %v5401, %v5404
        %v5406 = vrot.slane %v5405, 4
        %v5408 = vshll.u32 %v5330, 16
        %v5410 = vrot.slane %v5408, 5
        %v5411 = vsel %vm1712, %v5406, %v5410
        %v5412 = vshrl.u32 %v5330, 16
        %v5414 = vrot.slane %v5412, 4
        %v5415 = vor.u32 %v5414, %v5410
        %v5416 = vrot.slane %v5415, 4
        %v5418 = vshll.u32 %v5331, 16
        %v5420 = vrot.slane %v5418, 5
        %v5421 = vsel %vm1712, %v5416, %v5420
        %v5423 = vshrl.u32 %v5332, 16
        %v5425 = vrot.slane %v5423, 4
        %v5426 = vshll.u32 %v5332, 16
        %v5428 = vrot.slane %v5426, 5
        %v5429 = vor.u32 %v5425, %v5428
        %v5430 = vrot.slane %v5429, 4
        %v5432 = vshll.u32 %v5333, 16
        %v5434 = vrot.slane %v5432, 5
        %v5435 = vsel %vm1712, %v5430, %v5434
        %v5436 = vshrl.u32 %v5333, 16
        %v5438 = vrot.slane %v5436, 4
        %v5439 = vor.u32 %v5438, %v5434
        %v5440 = vrot.slane %v5439, 4
        %v5442 = vshll.u32 %v5334, 16
        %v5444 = vrot.slane %v5442, 5
        %v5445 = vsel %vm1712, %v5440, %v5444
        %v5447 = vshrl.u32 %v5335, 16
        %v5449 = vrot.slane %v5447, 4
        %v5450 = vshll.u32 %v5335, 16
        %v5452 = vrot.slane %v5450, 5
        %v5453 = vor.u32 %v5449, %v5452
        %v5454 = vrot.slane %v5453, 4
        %v5456 = vshll.u32 %v5336, 16
        %v5458 = vrot.slane %v5456, 5
        %v5459 = vsel %vm1712, %v5454, %v5458
        %v5460 = vshrl.u32 %v5336, 16
        %v5462 = vrot.slane %v5460, 4
        %v5463 = vor.u32 %v5462, %v5458
        %v5464 = vrot.slane %v5463, 4
        %v5466 = vshll.u32 %v5337, 16
        %v5468 = vrot.slane %v5466, 5
        %v5469 = vsel %vm1712, %v5464, %v5468
        %v5471 = vshrl.u32 %v5338, 16
        %v5473 = vrot.slane %v5471, 4
        %v5474 = vshll.u32 %v5338, 16
        %v5476 = vrot.slane %v5474, 5
        %v5477 = vor.u32 %v5473, %v5476
        %v5478 = vrot.slane %v5477, 4
        %v5480 = vshll.u32 %v5339, 16
        %v5482 = vrot.slane %v5480, 5
        %v5483 = vsel %vm1712, %v5478, %v5482
        %v5484 = vshrl.u32 %v5339, 16
        %v5486 = vrot.slane %v5484, 4
        %v5487 = vor.u32 %v5486, %v5482
        %v5488 = vrot.slane %v5487, 4
        %v5490 = vshll.u32 %v5340, 16
        %v5492 = vrot.slane %v5490, 5
        %v5493 = vsel %vm1712, %v5488, %v5492
        %v5495 = vshrl.u32 %v5341, 16
        %v5497 = vrot.slane %v5495, 4
        %v5498 = vshll.u32 %v5341, 16
        %v5500 = vrot.slane %v5498, 5
        %v5501 = vor.u32 %v5497, %v5500
        %v5502 = vrot.slane %v5501, 4
        %v5504 = vshll.u32 %v5342, 16
        %v5506 = vrot.slane %v5504, 5
        %v5507 = vsel %vm1712, %v5502, %v5506
        %v5508 = vshrl.u32 %v5342, 16
        %v5510 = vrot.slane %v5508, 4
        %v5511 = vor.u32 %v5510, %v5506
        %v5512 = vrot.slane %v5511, 4
        %v5514 = vshll.u32 %v5343, 16
        %v5516 = vrot.slane %v5514, 5
        %v5517 = vsel %vm1712, %v5512, %v5516
        %v5519 = vshrl.u32 %v5344, 16
        %v5521 = vrot.slane %v5519, 4
        %v5522 = vshll.u32 %v5344, 16
        %v5524 = vrot.slane %v5522, 5
        %v5525 = vor.u32 %v5521, %v5524
        %v5526 = vrot.slane %v5525, 4
        %v5528 = vshll.u32 %v5345, 16
        %v5530 = vrot.slane %v5528, 5
        %v5531 = vsel %vm1712, %v5526, %v5530
        %v5532 = vshrl.u32 %v5345, 16
        %v5534 = vrot.slane %v5532, 4
        %v5535 = vor.u32 %v5534, %v5530
        %v5536 = vrot.slane %v5535, 4
        %v5538 = vshll.u32 %v5346, 16
        %v5540 = vrot.slane %v5538, 5
        %v5541 = vsel %vm1712, %v5536, %v5540
        %v5543 = vshrl.u32 %v5347, 16
        %v5545 = vrot.slane %v5543, 4
        %v5546 = vshll.u32 %v5347, 16
        %v5548 = vrot.slane %v5546, 5
        %v5549 = vor.u32 %v5545, %v5548
        %v5550 = vrot.slane %v5549, 4
        %v5552 = vshll.u32 %v5348, 16
        %v5554 = vrot.slane %v5552, 5
        %v5555 = vsel %vm1712, %v5550, %v5554
        %v5556 = vshrl.u32 %v5348, 16
        %v5558 = vrot.slane %v5556, 4
        %v5559 = vor.u32 %v5558, %v5554
        %v5560 = vrot.slane %v5559, 4
        %v5562 = vshll.u32 %v5349, 16
        %v5564 = vrot.slane %v5562, 5
        %v5565 = vsel %vm1712, %v5560, %v5564
        %v5567 = vshrl.u32 %v5350, 16
        %v5569 = vrot.slane %v5567, 4
        %v5570 = vshll.u32 %v5350, 16
        %v5572 = vrot.slane %v5570, 5
        %v5573 = vor.u32 %v5569, %v5572
        %v5574 = vrot.slane %v5573, 4
        %v5576 = vshll.u32 %v5351, 16
        %v5578 = vrot.slane %v5576, 5
        %v5579 = vsel %vm1712, %v5574, %v5578
        %v5580 = vshrl.u32 %v5351, 16
        %v5582 = vrot.slane %v5580, 4
        %v5583 = vor.u32 %v5582, %v5578
        %v5584 = vrot.slane %v5583, 4
        %v5586 = vshll.u32 %v5352, 16
        %v5588 = vrot.slane %v5586, 5
        %v5589 = vsel %vm1712, %v5584, %v5588
        %v5591 = vshrl.u32 %v5353, 16
        %v5593 = vrot.slane %v5591, 4
        %v5594 = vshll.u32 %v5353, 16
        %v5596 = vrot.slane %v5594, 5
        %v5597 = vor.u32 %v5593, %v5596
        %v5598 = vrot.slane %v5597, 4
        %v5600 = vshll.u32 %v5354, 16
        %v5602 = vrot.slane %v5600, 5
        %v5603 = vsel %vm1712, %v5598, %v5602
        %v5604 = vshrl.u32 %v5354, 16
        %v5606 = vrot.slane %v5604, 4
        %v5607 = vor.u32 %v5606, %v5602
        %v5608 = vrot.slane %v5607, 4
        %v5610 = vshll.u32 %v5355, 16
        %v5612 = vrot.slane %v5610, 5
        %v5613 = vsel %vm1712, %v5608, %v5612
        %v5615 = vshrl.u32 %v5356, 16
        %v5617 = vrot.slane %v5615, 4
        %v5618 = vshll.u32 %v5356, 16
        %v5620 = vrot.slane %v5618, 5
        %v5621 = vor.u32 %v5617, %v5620
        %v5622 = vrot.slane %v5621, 4
        %v5624 = vshll.u32 %v5357, 16
        %v5626 = vrot.slane %v5624, 5
        %v5627 = vsel %vm1712, %v5622, %v5626
        %v5628 = vshrl.u32 %v5357, 16
        %v5630 = vrot.slane %v5628, 4
        %v5631 = vor.u32 %v5630, %v5626
        %v5632 = vrot.slane %v5631, 4
        %v5634 = vshll.u32 %v5358, 16
        %v5636 = vrot.slane %v5634, 5
        %v5637 = vsel %vm1712, %v5632, %v5636
        %v5639 = vshrl.u32 %v5359, 16
        %v5641 = vrot.slane %v5639, 4
        %v5642 = vshll.u32 %v5359, 16
        %v5644 = vrot.slane %v5642, 5
        %v5645 = vor.u32 %v5641, %v5644
        %v5646 = vrot.slane %v5645, 4
        %v5648 = vshll.u32 %v5360, 16
        %v5650 = vrot.slane %v5648, 5
        %v5651 = vsel %vm1712, %v5646, %v5650
        %v5652 = vshrl.u32 %v5360, 16
        %v5654 = vrot.slane %v5652, 4
        %v5655 = vor.u32 %v5654, %v5650
        %v5656 = vrot.slane %v5655, 4
        %v5658 = vshll.u32 %v5361, 16
        %v5660 = vrot.slane %v5658, 5
        %v5661 = vsel %vm1712, %v5656, %v5660
        %v5663 = vshrl.u32 %v5362, 16
        %v5665 = vrot.slane %v5663, 4
        %v5666 = vshll.u32 %v5362, 16
        %v5668 = vrot.slane %v5666, 5
        %v5669 = vor.u32 %v5665, %v5668
        %v5670 = vrot.slane %v5669, 4
        %v5672 = vshll.u32 %v5363, 16
        %v5674 = vrot.slane %v5672, 5
        %v5675 = vsel %vm1712, %v5670, %v5674
        %v5676 = vshrl.u32 %v5363, 16
        %v5678 = vrot.slane %v5676, 4
        %v5679 = vor.u32 %v5678, %v5674
        %v5680 = vrot.slane %v5679, 4
        %v5682 = vshll.u32 %v5364, 16
        %v5684 = vrot.slane %v5682, 5
        %v5685 = vsel %vm1712, %v5680, %v5684
        %v5687 = vshrl.u32 %v5365, 16
        %v5689 = vrot.slane %v5687, 4
        %v5690 = vshll.u32 %v5365, 16
        %v5692 = vrot.slane %v5690, 5
        %v5693 = vor.u32 %v5689, %v5692
        %v5694 = vrot.slane %v5693, 4
        %v5696 = vshll.u32 %v5366, 16
        %v5698 = vrot.slane %v5696, 5
        %v5699 = vsel %vm1712, %v5694, %v5698
        %v5700 = vshrl.u32 %v5366, 16
        %v5702 = vrot.slane %v5700, 4
        %v5703 = vor.u32 %v5702, %v5698
        %v5704 = vrot.slane %v5703, 4
        %v5706 = vshll.u32 %v5367, 16
        %v5708 = vrot.slane %v5706, 5
        %v5709 = vsel %vm1712, %v5704, %v5708
        %v5711 = vshrl.u32 %v5368, 16
        %v5713 = vrot.slane %v5711, 4
        %v5714 = vshll.u32 %v5368, 16
        %v5716 = vrot.slane %v5714, 5
        %v5717 = vor.u32 %v5713, %v5716
        %v5718 = vrot.slane %v5717, 4
        %v5720 = vshll.u32 %v5369, 16
        %v5722 = vrot.slane %v5720, 5
        %v5723 = vsel %vm1712, %v5718, %v5722
        %v5724 = vshrl.u32 %v5369, 16
        %v5726 = vrot.slane %v5724, 4
        %v5727 = vor.u32 %v5726, %v5722
        %v5728 = vrot.slane %v5727, 4
        %v5730 = vshll.u32 %v5370, 16
        %v5732 = vrot.slane %v5730, 5
        %v5733 = vsel %vm1712, %v5728, %v5732
        %v5735 = vshrl.u32 %v5371, 16
        %v5737 = vrot.slane %v5735, 4
        %v5738 = vshll.u32 %v5371, 16
        %v5740 = vrot.slane %v5738, 5
        %v5741 = vor.u32 %v5737, %v5740
        %v5742 = vrot.slane %v5741, 4
        %v5744 = vshll.u32 %v5372, 16
        %v5746 = vrot.slane %v5744, 5
        %v5747 = vsel %vm1712, %v5742, %v5746
        %v5748 = vshrl.u32 %v5372, 16
        %v5750 = vrot.slane %v5748, 4
        %v5751 = vor.u32 %v5750, %v5746
        %v5752 = vrot.slane %v5751, 4
        %v5754 = vshll.u32 %v5373, 16
        %v5756 = vrot.slane %v5754, 5
        %v5757 = vsel %vm1712, %v5752, %v5756
        %s5758 = scalar_lea.vmem [#allocation6], 512
        %v5759 = vld [vmem:[%s5758] sm:$0xf]
        %v5760 = vld [vmem:[%s5758 + $0x4] sm:$0xf]
        %v5761 = vld [vmem:[%s5758 + $0x8] sm:$0xf]
        %v5762 = vld [vmem:[%s5758 + $0xc] sm:$0xf]
        %v5763 = vld [vmem:[%s5758 + $0x10] sm:$0xf]
        %v5764 = vld [vmem:[%s5758 + $0x14] sm:$0xf]
        %v5765 = vld [vmem:[%s5758 + $0x18] sm:$0xf]
        %v5766 = vld [vmem:[%s5758 + $0x1c] sm:$0xf]
        %v5767 = vld [vmem:[%s5758 + $0x20] sm:$0xf]
        %v5768 = vld [vmem:[%s5758 + $0x24] sm:$0xf]
        %v5769 = vld [vmem:[%s5758 + $0x28] sm:$0xf]
        %v5770 = vld [vmem:[%s5758 + $0x2c] sm:$0xf]
        %v5771 = vld [vmem:[%s5758 + $0x30] sm:$0xf]
        %v5772 = vld [vmem:[%s5758 + $0x34] sm:$0xf]
        %v5773 = vld [vmem:[%s5758 + $0x38] sm:$0xf]
        %v5774 = vld [vmem:[%s5758 + $0x3c] sm:$0xf]
        %v5775 = vunpack.c.l.b16 %v5387
        %v5776 = vunpack.c.l.b16 %v5397
        %v5777 = vunpack.c.l.b16 %v5411
        %v5778 = vunpack.c.l.b16 %v5421
        %v5779 = vunpack.c.l.b16 %v5435
        %v5780 = vunpack.c.l.b16 %v5445
        %v5781 = vunpack.c.l.b16 %v5459
        %v5782 = vunpack.c.l.b16 %v5469
        %v5783 = vunpack.c.l.b16 %v5483
        %v5784 = vunpack.c.l.b16 %v5493
        %v5785 = vunpack.c.l.b16 %v5507
        %v5786 = vunpack.c.l.b16 %v5517
        %v5787 = vunpack.c.l.b16 %v5531
        %v5788 = vunpack.c.l.b16 %v5541
        %v5789 = vunpack.c.l.b16 %v5555
        %v5790 = vunpack.c.l.b16 %v5565
        %v5791 = vunpack.c.l.b16 %v5579
        %v5792 = vunpack.c.l.b16 %v5589
        %v5793 = vunpack.c.l.b16 %v5603
        %v5794 = vunpack.c.l.b16 %v5613
        %v5795 = vunpack.c.l.b16 %v5627
        %v5796 = vunpack.c.l.b16 %v5637
        %v5797 = vunpack.c.l.b16 %v5651
        %v5798 = vunpack.c.l.b16 %v5661
        %v5799 = vunpack.c.l.b16 %v5675
        %v5800 = vunpack.c.l.b16 %v5685
        %v5801 = vunpack.c.l.b16 %v5699
        %v5802 = vunpack.c.l.b16 %v5709
        %v5803 = vunpack.c.l.b16 %v5723
        %v5804 = vunpack.c.l.b16 %v5733
        %v5805 = vunpack.c.l.b16 %v5747
        %v5806 = vunpack.c.l.b16 %v5757
        %v5807 = vpack.c.b16 %v5776, %v5775
        %v5808 = vpack.c.b16 %v5778, %v5777
        %v5809 = vpack.c.b16 %v5780, %v5779
        %v5810 = vpack.c.b16 %v5782, %v5781
        %v5811 = vpack.c.b16 %v5784, %v5783
        %v5812 = vpack.c.b16 %v5786, %v5785
        %v5813 = vpack.c.b16 %v5788, %v5787
        %v5814 = vpack.c.b16 %v5790, %v5789
        %v5815 = vpack.c.b16 %v5792, %v5791
        %v5816 = vpack.c.b16 %v5794, %v5793
        %v5817 = vpack.c.b16 %v5796, %v5795
        %v5818 = vpack.c.b16 %v5798, %v5797
        %v5819 = vpack.c.b16 %v5800, %v5799
        %v5820 = vpack.c.b16 %v5802, %v5801
        %v5821 = vpack.c.b16 %v5804, %v5803
        %v5822 = vpack.c.b16 %v5806, %v5805
        %v5855 = vunpack.c.l.b16 %v5759
        %v5856 = vunpack.c.l.b16 %v5760
        %v5857 = vunpack.c.l.b16 %v5761
        %v5858 = vunpack.c.l.b16 %v5762
        %v5859 = vunpack.c.l.b16 %v5763
        %v5860 = vunpack.c.l.b16 %v5764
        %v5861 = vunpack.c.l.b16 %v5765
        %v5862 = vunpack.c.l.b16 %v5766
        %v5863 = vunpack.c.l.b16 %v5767
        %v5864 = vunpack.c.l.b16 %v5768
        %v5865 = vunpack.c.l.b16 %v5769
        %v5866 = vunpack.c.l.b16 %v5770
        %v5867 = vunpack.c.l.b16 %v5771
        %v5868 = vunpack.c.l.b16 %v5772
        %v5869 = vunpack.c.l.b16 %v5773
        %v5870 = vunpack.c.l.b16 %v5774
        %v5871 = vpack.c.b16 %v5856, %v5855
        %v5872 = vpack.c.b16 %v5858, %v5857
        %v5873 = vpack.c.b16 %v5860, %v5859
        %v5874 = vpack.c.b16 %v5862, %v5861
        %v5875 = vpack.c.b16 %v5864, %v5863
        %v5876 = vpack.c.b16 %v5866, %v5865
        %v5877 = vpack.c.b16 %v5868, %v5867
        %v5878 = vpack.c.b16 %v5870, %v5869
        %5887 = vmatprep.subr.bf16.mxu0 0
        %5888 = vmatpush1.bf16.msra.mxu0 %v5878
        %5889 = vmatprep.subr.bf16.mxu0 0
        %5890 = vmatpush1.bf16.msra.mxu0 %v5877
        %5891 = vmatprep.subr.bf16.mxu0 0
        %5892 = vmatpush1.bf16.msra.mxu0 %v5876
        %5893 = vmatprep.subr.bf16.mxu0 0
        %5894 = vmatpush1.bf16.msra.mxu0 %v5875
        %5895 = vmatprep.subr.bf16.mxu0 0
        %5896 = vmatpush1.bf16.msra.mxu0 %v5874
        %5897 = vmatprep.subr.bf16.mxu0 0
        %5898 = vmatpush1.bf16.msra.mxu0 %v5873
        %5899 = vmatprep.subr.bf16.mxu0 0
        %5900 = vmatpush1.bf16.msra.mxu0 %v5872
        %5901 = vmatprep.subr.bf16.mxu0 0
        %5902 = vmatpush1.bf16.msra.mxu0 %v5871
        %5903 = vmatprep.subr.bf16.mxu0 0
        %5904 = vmatpush2.bf16.msra.mxu0 0
        %5905 = vmatprep.subr.bf16.mxu0 0
        %5906 = vmatpush2.bf16.msra.mxu0 0
        %5907 = vmatprep.subr.bf16.mxu0 0
        %5908 = vmatpush2.bf16.msra.mxu0 0
        %5909 = vmatprep.subr.bf16.mxu0 0
        %5910 = vmatpush2.bf16.msra.mxu0 0
        %5911 = vmatprep.subr.bf16.mxu0 0
        %5912 = vmatpush2.bf16.msra.mxu0 0
        %5913 = vmatprep.subr.bf16.mxu0 0
        %5914 = vmatpush2.bf16.msra.mxu0 0
        %5915 = vmatprep.subr.bf16.mxu0 0
        %5916 = vmatpush2.bf16.msra.mxu0 0
        %5917 = vmatprep.subr.bf16.mxu0 0
        %5918 = vmatpush2.bf16.msra.mxu0 0
        %5919 = vmatprep.mubr.bf16.mxu0 0
        %5920 = vmatmul.mubr.bf16.gmra.mxu0 %v5807
        %v5921 = vpop.f32.mrf.mxu0
        %v5922 = vadd.f32 0.0, %v5921
        %v5923 = vpop.f32.mrf.mxu0
        %v5924 = vpop.f32.mrf.mxu0
        %v5925 = vadd.f32 0.0, %v5924
        %v5926 = vpop.f32.mrf.mxu0
        %5927 = vmatprep.mubr.bf16.mxu0 0
        %5928 = vmatmul.mubr.bf16.gmra.mxu0 %v5808
        %v5929 = vpop.f32.mrf.mxu0
        %v5930 = vadd.f32 0.0, %v5929
        %v5931 = vpop.f32.mrf.mxu0
        %v5932 = vpop.f32.mrf.mxu0
        %v5933 = vadd.f32 0.0, %v5932
        %v5934 = vpop.f32.mrf.mxu0
        %5935 = vmatprep.mubr.bf16.mxu0 0
        %5936 = vmatmul.mubr.bf16.gmra.mxu0 %v5809
        %v5937 = vpop.f32.mrf.mxu0
        %v5938 = vadd.f32 0.0, %v5937
        %v5939 = vpop.f32.mrf.mxu0
        %v5940 = vpop.f32.mrf.mxu0
        %v5941 = vadd.f32 0.0, %v5940
        %v5942 = vpop.f32.mrf.mxu0
        %5943 = vmatprep.mubr.bf16.mxu0 0
        %5944 = vmatmul.mubr.bf16.gmra.mxu0 %v5810
        %v5945 = vpop.f32.mrf.mxu0
        %v5946 = vadd.f32 0.0, %v5945
        %v5947 = vpop.f32.mrf.mxu0
        %v5948 = vpop.f32.mrf.mxu0
        %v5949 = vadd.f32 0.0, %v5948
        %v5950 = vpop.f32.mrf.mxu0
        %5951 = vmatprep.mubr.bf16.mxu0 0
        %5952 = vmatmul.mubr.bf16.gmra.mxu0 %v5811
        %v5953 = vpop.f32.mrf.mxu0
        %v5954 = vadd.f32 0.0, %v5953
        %v5955 = vpop.f32.mrf.mxu0
        %v5956 = vpop.f32.mrf.mxu0
        %v5957 = vadd.f32 0.0, %v5956
        %v5958 = vpop.f32.mrf.mxu0
        %5959 = vmatprep.mubr.bf16.mxu0 0
        %5960 = vmatmul.mubr.bf16.gmra.mxu0 %v5812
        %v5961 = vpop.f32.mrf.mxu0
        %v5962 = vadd.f32 0.0, %v5961
        %v5963 = vpop.f32.mrf.mxu0
        %v5964 = vpop.f32.mrf.mxu0
        %v5965 = vadd.f32 0.0, %v5964
        %v5966 = vpop.f32.mrf.mxu0
        %5967 = vmatprep.mubr.bf16.mxu0 0
        %5968 = vmatmul.mubr.bf16.gmra.mxu0 %v5813
        %v5969 = vpop.f32.mrf.mxu0
        %v5970 = vadd.f32 0.0, %v5969
        %v5971 = vpop.f32.mrf.mxu0
        %v5972 = vpop.f32.mrf.mxu0
        %v5973 = vadd.f32 0.0, %v5972
        %v5974 = vpop.f32.mrf.mxu0
        %5975 = vmatprep.mubr.bf16.mxu0 0
        %5976 = vmatmul.mubr.bf16.gmra.mxu0 %v5814
        %v5977 = vpop.f32.mrf.mxu0
        %v5978 = vadd.f32 0.0, %v5977
        %v5979 = vpop.f32.mrf.mxu0
        %v5980 = vpop.f32.mrf.mxu0
        %v5981 = vadd.f32 0.0, %v5980
        %v5982 = vpop.f32.mrf.mxu0
        %5983 = vmatprep.mubr.bf16.mxu0 0
        %5984 = vmatmul.mubr.bf16.gmra.mxu0 %v5815
        %v5985 = vpop.f32.mrf.mxu0
        %v5986 = vadd.f32 0.0, %v5985
        %v5987 = vpop.f32.mrf.mxu0
        %v5988 = vpop.f32.mrf.mxu0
        %v5989 = vadd.f32 0.0, %v5988
        %v5990 = vpop.f32.mrf.mxu0
        %5991 = vmatprep.mubr.bf16.mxu0 0
        %5992 = vmatmul.mubr.bf16.gmra.mxu0 %v5816
        %v5993 = vpop.f32.mrf.mxu0
        %v5994 = vadd.f32 0.0, %v5993
        %v5995 = vpop.f32.mrf.mxu0
        %v5996 = vpop.f32.mrf.mxu0
        %v5997 = vadd.f32 0.0, %v5996
        %v5998 = vpop.f32.mrf.mxu0
        %5999 = vmatprep.mubr.bf16.mxu0 0
        %6000 = vmatmul.mubr.bf16.gmra.mxu0 %v5817
        %v6001 = vpop.f32.mrf.mxu0
        %v6002 = vadd.f32 0.0, %v6001
        %v6003 = vpop.f32.mrf.mxu0
        %v6004 = vpop.f32.mrf.mxu0
        %v6005 = vadd.f32 0.0, %v6004
        %v6006 = vpop.f32.mrf.mxu0
        %6007 = vmatprep.mubr.bf16.mxu0 0
        %6008 = vmatmul.mubr.bf16.gmra.mxu0 %v5818
        %v6009 = vpop.f32.mrf.mxu0
        %v6010 = vadd.f32 0.0, %v6009
        %v6011 = vpop.f32.mrf.mxu0
        %v6012 = vpop.f32.mrf.mxu0
        %v6013 = vadd.f32 0.0, %v6012
        %v6014 = vpop.f32.mrf.mxu0
        %6015 = vmatprep.mubr.bf16.mxu0 0
        %6016 = vmatmul.mubr.bf16.gmra.mxu0 %v5819
        %v6017 = vpop.f32.mrf.mxu0
        %v6018 = vadd.f32 0.0, %v6017
        %v6019 = vpop.f32.mrf.mxu0
        %v6020 = vpop.f32.mrf.mxu0
        %v6021 = vadd.f32 0.0, %v6020
        %v6022 = vpop.f32.mrf.mxu0
        %6023 = vmatprep.mubr.bf16.mxu0 0
        %6024 = vmatmul.mubr.bf16.gmra.mxu0 %v5820
        %v6025 = vpop.f32.mrf.mxu0
        %v6026 = vadd.f32 0.0, %v6025
        %v6027 = vpop.f32.mrf.mxu0
        %v6028 = vpop.f32.mrf.mxu0
        %v6029 = vadd.f32 0.0, %v6028
        %v6030 = vpop.f32.mrf.mxu0
        %6031 = vmatprep.mubr.bf16.mxu0 0
        %6032 = vmatmul.mubr.bf16.gmra.mxu0 %v5821
        %v6033 = vpop.f32.mrf.mxu0
        %v6034 = vadd.f32 0.0, %v6033
        %v6035 = vpop.f32.mrf.mxu0
        %v6036 = vpop.f32.mrf.mxu0
        %v6037 = vadd.f32 0.0, %v6036
        %v6038 = vpop.f32.mrf.mxu0
        %6039 = vmatprep.mubr.bf16.mxu0 0
        %6040 = vmatmul.mubr.bf16.gmra.mxu0 %v5822
        %v6041 = vpop.f32.mrf.mxu0
        %v6042 = vadd.f32 0.0, %v6041
        %v6043 = vpop.f32.mrf.mxu0
        %v6044 = vpop.f32.mrf.mxu0
        %v6045 = vadd.f32 0.0, %v6044
        %v6046 = vpop.f32.mrf.mxu0
        %6047 = vdwg.mxu0
        %v6048 = vadd.f32 %v5294, %v5922
        %v6049 = vadd.f32 %v5295, %v5925
        %v6050 = vadd.f32 %v5296, %v5930
        %v6051 = vadd.f32 %v5297, %v5933
        %v6052 = vadd.f32 %v5298, %v5938
        %v6053 = vadd.f32 %v5299, %v5941
        %v6054 = vadd.f32 %v5300, %v5946
        %v6055 = vadd.f32 %v5301, %v5949
        %v6056 = vadd.f32 %v5302, %v5954
        %v6057 = vadd.f32 %v5303, %v5957
        %v6058 = vadd.f32 %v5304, %v5962
        %v6059 = vadd.f32 %v5305, %v5965
        %v6060 = vadd.f32 %v5306, %v5970
        %v6061 = vadd.f32 %v5307, %v5973
        %v6062 = vadd.f32 %v5308, %v5978
        %v6063 = vadd.f32 %v5309, %v5981
        %v6064 = vadd.f32 %v5310, %v5986
        %v6065 = vadd.f32 %v5311, %v5989
        %v6066 = vadd.f32 %v5312, %v5994
        %v6067 = vadd.f32 %v5313, %v5997
        %v6068 = vadd.f32 %v5314, %v6002
        %v6069 = vadd.f32 %v5315, %v6005
        %v6070 = vadd.f32 %v5316, %v6010
        %v6071 = vadd.f32 %v5317, %v6013
        %v6072 = vadd.f32 %v5318, %v6018
        %v6073 = vadd.f32 %v5319, %v6021
        %v6074 = vadd.f32 %v5320, %v6026
        %v6075 = vadd.f32 %v5321, %v6029
        %v6076 = vadd.f32 %v5322, %v6034
        %v6077 = vadd.f32 %v5323, %v6037
        %v6078 = vadd.f32 %v5324, %v6042
        %v6079 = vadd.f32 %v5325, %v6045
        %v6080 = vld [vmem:[%s2] sm:$0x1]
        %v6082 = vlaneseq
        %v6083 = vshrl.u32 %v6082, 7
        %v6084 = vsub.s32 0, %v6083
        %v6085 = vrot.slane %v6080, %v6084
        %v6087 = vmul.f32 %v6048, %v6085
        %v6088 = vmul.f32 %v6049, %v6085
        %v6089 = vmul.f32 %v6050, %v6085
        %v6090 = vmul.f32 %v6051, %v6085
        %v6091 = vmul.f32 %v6052, %v6085
        %v6092 = vmul.f32 %v6053, %v6085
        %v6093 = vmul.f32 %v6054, %v6085
        %v6094 = vmul.f32 %v6055, %v6085
        %v6095 = vmul.f32 %v6056, %v6085
        %v6096 = vmul.f32 %v6057, %v6085
        %v6097 = vmul.f32 %v6058, %v6085
        %v6098 = vmul.f32 %v6059, %v6085
        %v6099 = vmul.f32 %v6060, %v6085
        %v6100 = vmul.f32 %v6061, %v6085
        %v6101 = vmul.f32 %v6062, %v6085
        %v6102 = vmul.f32 %v6063, %v6085
        %v6103 = vmul.f32 %v6064, %v6085
        %v6104 = vmul.f32 %v6065, %v6085
        %v6105 = vmul.f32 %v6066, %v6085
        %v6106 = vmul.f32 %v6067, %v6085
        %v6107 = vmul.f32 %v6068, %v6085
        %v6108 = vmul.f32 %v6069, %v6085
        %v6109 = vmul.f32 %v6070, %v6085
        %v6110 = vmul.f32 %v6071, %v6085
        %v6111 = vmul.f32 %v6072, %v6085
        %v6112 = vmul.f32 %v6073, %v6085
        %v6113 = vmul.f32 %v6074, %v6085
        %v6114 = vmul.f32 %v6075, %v6085
        %v6115 = vmul.f32 %v6076, %v6085
        %v6116 = vmul.f32 %v6077, %v6085
        %v6117 = vmul.f32 %v6078, %v6085
        %v6118 = vmul.f32 %v6079, %v6085
        %v6119 = vld [vmem:[%s3] sm:$0x1]
        %v6121 = vlaneseq
        %v6122 = vshrl.u32 %v6121, 7
        %v6123 = vsub.s32 0, %v6122
        %v6124 = vrot.slane %v6119, %v6123
        %v6126 = vadd.f32 %v6087, %v6124
        %v6127 = vadd.f32 %v6088, %v6124
        %v6128 = vadd.f32 %v6089, %v6124
        %v6129 = vadd.f32 %v6090, %v6124
        %v6130 = vadd.f32 %v6091, %v6124
        %v6131 = vadd.f32 %v6092, %v6124
        %v6132 = vadd.f32 %v6093, %v6124
        %v6133 = vadd.f32 %v6094, %v6124
        %v6134 = vadd.f32 %v6095, %v6124
        %v6135 = vadd.f32 %v6096, %v6124
        %v6136 = vadd.f32 %v6097, %v6124
        %v6137 = vadd.f32 %v6098, %v6124
        %v6138 = vadd.f32 %v6099, %v6124
        %v6139 = vadd.f32 %v6100, %v6124
        %v6140 = vadd.f32 %v6101, %v6124
        %v6141 = vadd.f32 %v6102, %v6124
        %v6142 = vadd.f32 %v6103, %v6124
        %v6143 = vadd.f32 %v6104, %v6124
        %v6144 = vadd.f32 %v6105, %v6124
        %v6145 = vadd.f32 %v6106, %v6124
        %v6146 = vadd.f32 %v6107, %v6124
        %v6147 = vadd.f32 %v6108, %v6124
        %v6148 = vadd.f32 %v6109, %v6124
        %v6149 = vadd.f32 %v6110, %v6124
        %v6150 = vadd.f32 %v6111, %v6124
        %v6151 = vadd.f32 %v6112, %v6124
        %v6152 = vadd.f32 %v6113, %v6124
        %v6153 = vadd.f32 %v6114, %v6124
        %v6154 = vadd.f32 %v6115, %v6124
        %v6155 = vadd.f32 %v6116, %v6124
        %v6156 = vadd.f32 %v6117, %v6124
        %v6157 = vadd.f32 %v6118, %v6124
        %v6158 = vxor.u32 %v6126, 2147483648
        %v6159 = vxor.u32 %v6127, 2147483648
        %v6160 = vxor.u32 %v6128, 2147483648
        %v6161 = vxor.u32 %v6129, 2147483648
        %v6162 = vxor.u32 %v6130, 2147483648
        %v6163 = vxor.u32 %v6131, 2147483648
        %v6164 = vxor.u32 %v6132, 2147483648
        %v6165 = vxor.u32 %v6133, 2147483648
        %v6166 = vxor.u32 %v6134, 2147483648
        %v6167 = vxor.u32 %v6135, 2147483648
        %v6168 = vxor.u32 %v6136, 2147483648
        %v6169 = vxor.u32 %v6137, 2147483648
        %v6170 = vxor.u32 %v6138, 2147483648
        %v6171 = vxor.u32 %v6139, 2147483648
        %v6172 = vxor.u32 %v6140, 2147483648
        %v6173 = vxor.u32 %v6141, 2147483648
        %v6174 = vxor.u32 %v6142, 2147483648
        %v6175 = vxor.u32 %v6143, 2147483648
        %v6176 = vxor.u32 %v6144, 2147483648
        %v6177 = vxor.u32 %v6145, 2147483648
        %v6178 = vxor.u32 %v6146, 2147483648
        %v6179 = vxor.u32 %v6147, 2147483648
        %v6180 = vxor.u32 %v6148, 2147483648
        %v6181 = vxor.u32 %v6149, 2147483648
        %v6182 = vxor.u32 %v6150, 2147483648
        %v6183 = vxor.u32 %v6151, 2147483648
        %v6184 = vxor.u32 %v6152, 2147483648
        %v6185 = vxor.u32 %v6153, 2147483648
        %v6186 = vxor.u32 %v6154, 2147483648
        %v6187 = vxor.u32 %v6155, 2147483648
        %v6188 = vxor.u32 %v6156, 2147483648
        %v6189 = vxor.u32 %v6157, 2147483648
        %v6190 = vmul.f32 %v6158, 1.442695
        %v6191 = vpow.pop %v6190
        %v6192 = vmul.f32 %v6159, 1.442695
        %v6193 = vpow.pop %v6192
        %v6194 = vmul.f32 %v6160, 1.442695
        %v6195 = vpow.pop %v6194
        %v6196 = vmul.f32 %v6161, 1.442695
        %v6197 = vpow.pop %v6196
        %v6198 = vmul.f32 %v6162, 1.442695
        %v6199 = vpow.pop %v6198
        %v6200 = vmul.f32 %v6163, 1.442695
        %v6201 = vpow.pop %v6200
        %v6202 = vmul.f32 %v6164, 1.442695
        %v6203 = vpow.pop %v6202
        %v6204 = vmul.f32 %v6165, 1.442695
        %v6205 = vpow.pop %v6204
        %v6206 = vmul.f32 %v6166, 1.442695
        %v6207 = vpow.pop %v6206
        %v6208 = vmul.f32 %v6167, 1.442695
        %v6209 = vpow.pop %v6208
        %v6210 = vmul.f32 %v6168, 1.442695
        %v6211 = vpow.pop %v6210
        %v6212 = vmul.f32 %v6169, 1.442695
        %v6213 = vpow.pop %v6212
        %v6214 = vmul.f32 %v6170, 1.442695
        %v6215 = vpow.pop %v6214
        %v6216 = vmul.f32 %v6171, 1.442695
        %v6217 = vpow.pop %v6216
        %v6218 = vmul.f32 %v6172, 1.442695
        %v6219 = vpow.pop %v6218
        %v6220 = vmul.f32 %v6173, 1.442695
        %v6221 = vpow.pop %v6220
        %v6222 = vmul.f32 %v6174, 1.442695
        %v6223 = vpow.pop %v6222
        %v6224 = vmul.f32 %v6175, 1.442695
        %v6225 = vpow.pop %v6224
        %v6226 = vmul.f32 %v6176, 1.442695
        %v6227 = vpow.pop %v6226
        %v6228 = vmul.f32 %v6177, 1.442695
        %v6229 = vpow.pop %v6228
        %v6230 = vmul.f32 %v6178, 1.442695
        %v6231 = vpow.pop %v6230
        %v6232 = vmul.f32 %v6179, 1.442695
        %v6233 = vpow.pop %v6232
        %v6234 = vmul.f32 %v6180, 1.442695
        %v6235 = vpow.pop %v6234
        %v6236 = vmul.f32 %v6181, 1.442695
        %v6237 = vpow.pop %v6236
        %v6238 = vmul.f32 %v6182, 1.442695
        %v6239 = vpow.pop %v6238
        %v6240 = vmul.f32 %v6183, 1.442695
        %v6241 = vpow.pop %v6240
        %v6242 = vmul.f32 %v6184, 1.442695
        %v6243 = vpow.pop %v6242
        %v6244 = vmul.f32 %v6185, 1.442695
        %v6245 = vpow.pop %v6244
        %v6246 = vmul.f32 %v6186, 1.442695
        %v6247 = vpow.pop %v6246
        %v6248 = vmul.f32 %v6187, 1.442695
        %v6249 = vpow.pop %v6248
        %v6250 = vmul.f32 %v6188, 1.442695
        %v6251 = vpow.pop %v6250
        %v6252 = vmul.f32 %v6189, 1.442695
        %v6253 = vpow.pop %v6252
        %v6254 = vadd.f32 %v6191, 1.0
        %v6255 = vadd.f32 %v6193, 1.0
        %v6256 = vadd.f32 %v6195, 1.0
        %v6257 = vadd.f32 %v6197, 1.0
        %v6258 = vadd.f32 %v6199, 1.0
        %v6259 = vadd.f32 %v6201, 1.0
        %v6260 = vadd.f32 %v6203, 1.0
        %v6261 = vadd.f32 %v6205, 1.0
        %v6262 = vadd.f32 %v6207, 1.0
        %v6263 = vadd.f32 %v6209, 1.0
        %v6264 = vadd.f32 %v6211, 1.0
        %v6265 = vadd.f32 %v6213, 1.0
        %v6266 = vadd.f32 %v6215, 1.0
        %v6267 = vadd.f32 %v6217, 1.0
        %v6268 = vadd.f32 %v6219, 1.0
        %v6269 = vadd.f32 %v6221, 1.0
        %v6270 = vadd.f32 %v6223, 1.0
        %v6271 = vadd.f32 %v6225, 1.0
        %v6272 = vadd.f32 %v6227, 1.0
        %v6273 = vadd.f32 %v6229, 1.0
        %v6274 = vadd.f32 %v6231, 1.0
        %v6275 = vadd.f32 %v6233, 1.0
        %v6276 = vadd.f32 %v6235, 1.0
        %v6277 = vadd.f32 %v6237, 1.0
        %v6278 = vadd.f32 %v6239, 1.0
        %v6279 = vadd.f32 %v6241, 1.0
        %v6280 = vadd.f32 %v6243, 1.0
        %v6281 = vadd.f32 %v6245, 1.0
        %v6282 = vadd.f32 %v6247, 1.0
        %v6283 = vadd.f32 %v6249, 1.0
        %v6284 = vadd.f32 %v6251, 1.0
        %v6285 = vadd.f32 %v6253, 1.0
        %v6286 = vrcp.pop %v6254
        %v6287 = vmul.f32 1.0, %v6286
        %v6288 = vrcp.pop %v6255
        %v6289 = vmul.f32 1.0, %v6288
        %v6290 = vrcp.pop %v6256
        %v6291 = vmul.f32 1.0, %v6290
        %v6292 = vrcp.pop %v6257
        %v6293 = vmul.f32 1.0, %v6292
        %v6294 = vrcp.pop %v6258
        %v6295 = vmul.f32 1.0, %v6294
        %v6296 = vrcp.pop %v6259
        %v6297 = vmul.f32 1.0, %v6296
        %v6298 = vrcp.pop %v6260
        %v6299 = vmul.f32 1.0, %v6298
        %v6300 = vrcp.pop %v6261
        %v6301 = vmul.f32 1.0, %v6300
        %v6302 = vrcp.pop %v6262
        %v6303 = vmul.f32 1.0, %v6302
        %v6304 = vrcp.pop %v6263
        %v6305 = vmul.f32 1.0, %v6304
        %v6306 = vrcp.pop %v6264
        %v6307 = vmul.f32 1.0, %v6306
        %v6308 = vrcp.pop %v6265
        %v6309 = vmul.f32 1.0, %v6308
        %v6310 = vrcp.pop %v6266
        %v6311 = vmul.f32 1.0, %v6310
        %v6312 = vrcp.pop %v6267
        %v6313 = vmul.f32 1.0, %v6312
        %v6314 = vrcp.pop %v6268
        %v6315 = vmul.f32 1.0, %v6314
        %v6316 = vrcp.pop %v6269
        %v6317 = vmul.f32 1.0, %v6316
        %v6318 = vrcp.pop %v6270
        %v6319 = vmul.f32 1.0, %v6318
        %v6320 = vrcp.pop %v6271
        %v6321 = vmul.f32 1.0, %v6320
        %v6322 = vrcp.pop %v6272
        %v6323 = vmul.f32 1.0, %v6322
        %v6324 = vrcp.pop %v6273
        %v6325 = vmul.f32 1.0, %v6324
        %v6326 = vrcp.pop %v6274
        %v6327 = vmul.f32 1.0, %v6326
        %v6328 = vrcp.pop %v6275
        %v6329 = vmul.f32 1.0, %v6328
        %v6330 = vrcp.pop %v6276
        %v6331 = vmul.f32 1.0, %v6330
        %v6332 = vrcp.pop %v6277
        %v6333 = vmul.f32 1.0, %v6332
        %v6334 = vrcp.pop %v6278
        %v6335 = vmul.f32 1.0, %v6334
        %v6336 = vrcp.pop %v6279
        %v6337 = vmul.f32 1.0, %v6336
        %v6338 = vrcp.pop %v6280
        %v6339 = vmul.f32 1.0, %v6338
        %v6340 = vrcp.pop %v6281
        %v6341 = vmul.f32 1.0, %v6340
        %v6342 = vrcp.pop %v6282
        %v6343 = vmul.f32 1.0, %v6342
        %v6344 = vrcp.pop %v6283
        %v6345 = vmul.f32 1.0, %v6344
        %v6346 = vrcp.pop %v6284
        %v6347 = vmul.f32 1.0, %v6346
        %v6348 = vrcp.pop %v6285
        %v6349 = vmul.f32 1.0, %v6348
        %v6350 = vmul.f32 %v6126, %v6287
        %v6351 = vmul.f32 %v6127, %v6289
        %v6352 = vmul.f32 %v6128, %v6291
        %v6353 = vmul.f32 %v6129, %v6293
        %v6354 = vmul.f32 %v6130, %v6295
        %v6355 = vmul.f32 %v6131, %v6297
        %v6356 = vmul.f32 %v6132, %v6299
        %v6357 = vmul.f32 %v6133, %v6301
        %v6358 = vmul.f32 %v6134, %v6303
        %v6359 = vmul.f32 %v6135, %v6305
        %v6360 = vmul.f32 %v6136, %v6307
        %v6361 = vmul.f32 %v6137, %v6309
        %v6362 = vmul.f32 %v6138, %v6311
        %v6363 = vmul.f32 %v6139, %v6313
        %v6364 = vmul.f32 %v6140, %v6315
        %v6365 = vmul.f32 %v6141, %v6317
        %v6366 = vmul.f32 %v6142, %v6319
        %v6367 = vmul.f32 %v6143, %v6321
        %v6368 = vmul.f32 %v6144, %v6323
        %v6369 = vmul.f32 %v6145, %v6325
        %v6370 = vmul.f32 %v6146, %v6327
        %v6371 = vmul.f32 %v6147, %v6329
        %v6372 = vmul.f32 %v6148, %v6331
        %v6373 = vmul.f32 %v6149, %v6333
        %v6374 = vmul.f32 %v6150, %v6335
        %v6375 = vmul.f32 %v6151, %v6337
        %v6376 = vmul.f32 %v6152, %v6339
        %v6377 = vmul.f32 %v6153, %v6341
        %v6378 = vmul.f32 %v6154, %v6343
        %v6379 = vmul.f32 %v6155, %v6345
        %v6380 = vmul.f32 %v6156, %v6347
        %v6381 = vmul.f32 %v6157, %v6349
        %v6382 = vpack.c.bf16 %v6351, %v6350
        %v6383 = vpack.c.bf16 %v6353, %v6352
        %v6384 = vpack.c.bf16 %v6355, %v6354
        %v6385 = vpack.c.bf16 %v6357, %v6356
        %v6386 = vpack.c.bf16 %v6359, %v6358
        %v6387 = vpack.c.bf16 %v6361, %v6360
        %v6388 = vpack.c.bf16 %v6363, %v6362
        %v6389 = vpack.c.bf16 %v6365, %v6364
        %v6390 = vpack.c.bf16 %v6367, %v6366
        %v6391 = vpack.c.bf16 %v6369, %v6368
        %v6392 = vpack.c.bf16 %v6371, %v6370
        %v6393 = vpack.c.bf16 %v6373, %v6372
        %v6394 = vpack.c.bf16 %v6375, %v6374
        %v6395 = vpack.c.bf16 %v6377, %v6376
        %v6396 = vpack.c.bf16 %v6379, %v6378
        %v6397 = vpack.c.bf16 %v6381, %v6380
        %v6398 = vld [vmem:[#allocation8] sm:$0xf]
        %v6399 = vld [vmem:[#allocation8 + $0x4] sm:$0xf]
        %v6400 = vld [vmem:[#allocation8 + $0x8] sm:$0xf]
        %v6401 = vld [vmem:[#allocation8 + $0xc] sm:$0xf]
        %v6402 = vld [vmem:[#allocation8 + $0x10] sm:$0xf]
        %v6403 = vld [vmem:[#allocation8 + $0x14] sm:$0xf]
        %v6404 = vld [vmem:[#allocation8 + $0x18] sm:$0xf]
        %v6405 = vld [vmem:[#allocation8 + $0x1c] sm:$0xf]
        %v6406 = vld [vmem:[#allocation8 + $0x20] sm:$0xf]
        %v6407 = vld [vmem:[#allocation8 + $0x24] sm:$0xf]
        %v6408 = vld [vmem:[#allocation8 + $0x28] sm:$0xf]
        %v6409 = vld [vmem:[#allocation8 + $0x2c] sm:$0xf]
        %v6410 = vld [vmem:[#allocation8 + $0x30] sm:$0xf]
        %v6411 = vld [vmem:[#allocation8 + $0x34] sm:$0xf]
        %v6412 = vld [vmem:[#allocation8 + $0x38] sm:$0xf]
        %v6413 = vld [vmem:[#allocation8 + $0x3c] sm:$0xf]
        %v6430 = vunpack.c.l.b16 %v6398
        %v6431 = vunpack.c.l.b16 %v6399
        %v6432 = vunpack.c.l.b16 %v6400
        %v6433 = vunpack.c.l.b16 %v6401
        %v6434 = vunpack.c.l.b16 %v6402
        %v6435 = vunpack.c.l.b16 %v6403
        %v6436 = vunpack.c.l.b16 %v6404
        %v6437 = vunpack.c.l.b16 %v6405
        %v6438 = vunpack.c.l.b16 %v6406
        %v6439 = vunpack.c.l.b16 %v6407
        %v6440 = vunpack.c.l.b16 %v6408
        %v6441 = vunpack.c.l.b16 %v6409
        %v6442 = vunpack.c.l.b16 %v6410
        %v6443 = vunpack.c.l.b16 %v6411
        %v6444 = vunpack.c.l.b16 %v6412
        %v6445 = vunpack.c.l.b16 %v6413
        %v6446 = vpack.c.b16 %v6431, %v6430
        %v6447 = vpack.c.b16 %v6433, %v6432
        %v6448 = vpack.c.b16 %v6435, %v6434
        %v6449 = vpack.c.b16 %v6437, %v6436
        %v6450 = vpack.c.b16 %v6439, %v6438
        %v6451 = vpack.c.b16 %v6441, %v6440
        %v6452 = vpack.c.b16 %v6443, %v6442
        %v6453 = vpack.c.b16 %v6445, %v6444
        %6462 = vmatprep.subr.bf16.mxu0 0
        %6463 = vmatpush1.bf16.msra.mxu0 %v6453
        %6464 = vmatprep.subr.bf16.mxu0 0
        %6465 = vmatpush1.bf16.msra.mxu0 %v6452
        %6466 = vmatprep.subr.bf16.mxu0 0
        %6467 = vmatpush1.bf16.msra.mxu0 %v6451
        %6468 = vmatprep.subr.bf16.mxu0 0
        %6469 = vmatpush1.bf16.msra.mxu0 %v6450
        %6470 = vmatprep.subr.bf16.mxu0 0
        %6471 = vmatpush1.bf16.msra.mxu0 %v6449
        %6472 = vmatprep.subr.bf16.mxu0 0
        %6473 = vmatpush1.bf16.msra.mxu0 %v6448
        %6474 = vmatprep.subr.bf16.mxu0 0
        %6475 = vmatpush1.bf16.msra.mxu0 %v6447
        %6476 = vmatprep.subr.bf16.mxu0 0
        %6477 = vmatpush1.bf16.msra.mxu0 %v6446
        %6478 = vmatprep.subr.bf16.mxu0 0
        %6479 = vmatpush2.bf16.msra.mxu0 0
        %6480 = vmatprep.subr.bf16.mxu0 0
        %6481 = vmatpush2.bf16.msra.mxu0 0
        %6482 = vmatprep.subr.bf16.mxu0 0
        %6483 = vmatpush2.bf16.msra.mxu0 0
        %6484 = vmatprep.subr.bf16.mxu0 0
        %6485 = vmatpush2.bf16.msra.mxu0 0
        %6486 = vmatprep.subr.bf16.mxu0 0
        %6487 = vmatpush2.bf16.msra.mxu0 0
        %6488 = vmatprep.subr.bf16.mxu0 0
        %6489 = vmatpush2.bf16.msra.mxu0 0
        %6490 = vmatprep.subr.bf16.mxu0 0
        %6491 = vmatpush2.bf16.msra.mxu0 0
        %6492 = vmatprep.subr.bf16.mxu0 0
        %6493 = vmatpush2.bf16.msra.mxu0 0
        %6494 = vmatprep.mubr.bf16.mxu0 0
        %6495 = vmatmul.mubr.bf16.gmra.mxu0 %v6382
        %v6496 = vpop.f32.mrf.mxu0
        %v6497 = vadd.f32 0.0, %v6496
        %v6498 = vpop.f32.mrf.mxu0
        %v6499 = vpop.f32.mrf.mxu0
        %v6500 = vadd.f32 0.0, %v6499
        %v6501 = vpop.f32.mrf.mxu0
        %6502 = vmatprep.mubr.bf16.mxu0 0
        %6503 = vmatmul.mubr.bf16.gmra.mxu0 %v6383
        %v6504 = vpop.f32.mrf.mxu0
        %v6505 = vadd.f32 0.0, %v6504
        %v6506 = vpop.f32.mrf.mxu0
        %v6507 = vpop.f32.mrf.mxu0
        %v6508 = vadd.f32 0.0, %v6507
        %v6509 = vpop.f32.mrf.mxu0
        %6510 = vmatprep.mubr.bf16.mxu0 0
        %6511 = vmatmul.mubr.bf16.gmra.mxu0 %v6384
        %v6512 = vpop.f32.mrf.mxu0
        %v6513 = vadd.f32 0.0, %v6512
        %v6514 = vpop.f32.mrf.mxu0
        %v6515 = vpop.f32.mrf.mxu0
        %v6516 = vadd.f32 0.0, %v6515
        %v6517 = vpop.f32.mrf.mxu0
        %6518 = vmatprep.mubr.bf16.mxu0 0
        %6519 = vmatmul.mubr.bf16.gmra.mxu0 %v6385
        %v6520 = vpop.f32.mrf.mxu0
        %v6521 = vadd.f32 0.0, %v6520
        %v6522 = vpop.f32.mrf.mxu0
        %v6523 = vpop.f32.mrf.mxu0
        %v6524 = vadd.f32 0.0, %v6523
        %v6525 = vpop.f32.mrf.mxu0
        %6526 = vmatprep.mubr.bf16.mxu0 0
        %6527 = vmatmul.mubr.bf16.gmra.mxu0 %v6386
        %v6528 = vpop.f32.mrf.mxu0
        %v6529 = vadd.f32 0.0, %v6528
        %v6530 = vpop.f32.mrf.mxu0
        %v6531 = vpop.f32.mrf.mxu0
        %v6532 = vadd.f32 0.0, %v6531
        %v6533 = vpop.f32.mrf.mxu0
        %6534 = vmatprep.mubr.bf16.mxu0 0
        %6535 = vmatmul.mubr.bf16.gmra.mxu0 %v6387
        %v6536 = vpop.f32.mrf.mxu0
        %v6537 = vadd.f32 0.0, %v6536
        %v6538 = vpop.f32.mrf.mxu0
        %v6539 = vpop.f32.mrf.mxu0
        %v6540 = vadd.f32 0.0, %v6539
        %v6541 = vpop.f32.mrf.mxu0
        %6542 = vmatprep.mubr.bf16.mxu0 0
        %6543 = vmatmul.mubr.bf16.gmra.mxu0 %v6388
        %v6544 = vpop.f32.mrf.mxu0
        %v6545 = vadd.f32 0.0, %v6544
        %v6546 = vpop.f32.mrf.mxu0
        %v6547 = vpop.f32.mrf.mxu0
        %v6548 = vadd.f32 0.0, %v6547
        %v6549 = vpop.f32.mrf.mxu0
        %6550 = vmatprep.mubr.bf16.mxu0 0
        %6551 = vmatmul.mubr.bf16.gmra.mxu0 %v6389
        %v6552 = vpop.f32.mrf.mxu0
        %v6553 = vadd.f32 0.0, %v6552
        %v6554 = vpop.f32.mrf.mxu0
        %v6555 = vpop.f32.mrf.mxu0
        %v6556 = vadd.f32 0.0, %v6555
        %v6557 = vpop.f32.mrf.mxu0
        %6558 = vmatprep.mubr.bf16.mxu0 0
        %6559 = vmatmul.mubr.bf16.gmra.mxu0 %v6390
        %v6560 = vpop.f32.mrf.mxu0
        %v6561 = vadd.f32 0.0, %v6560
        %v6562 = vpop.f32.mrf.mxu0
        %v6563 = vpop.f32.mrf.mxu0
        %v6564 = vadd.f32 0.0, %v6563
        %v6565 = vpop.f32.mrf.mxu0
        %6566 = vmatprep.mubr.bf16.mxu0 0
        %6567 = vmatmul.mubr.bf16.gmra.mxu0 %v6391
        %v6568 = vpop.f32.mrf.mxu0
        %v6569 = vadd.f32 0.0, %v6568
        %v6570 = vpop.f32.mrf.mxu0
        %v6571 = vpop.f32.mrf.mxu0
        %v6572 = vadd.f32 0.0, %v6571
        %v6573 = vpop.f32.mrf.mxu0
        %6574 = vmatprep.mubr.bf16.mxu0 0
        %6575 = vmatmul.mubr.bf16.gmra.mxu0 %v6392
        %v6576 = vpop.f32.mrf.mxu0
        %v6577 = vadd.f32 0.0, %v6576
        %v6578 = vpop.f32.mrf.mxu0
        %v6579 = vpop.f32.mrf.mxu0
        %v6580 = vadd.f32 0.0, %v6579
        %v6581 = vpop.f32.mrf.mxu0
        %6582 = vmatprep.mubr.bf16.mxu0 0
        %6583 = vmatmul.mubr.bf16.gmra.mxu0 %v6393
        %v6584 = vpop.f32.mrf.mxu0
        %v6585 = vadd.f32 0.0, %v6584
        %v6586 = vpop.f32.mrf.mxu0
        %v6587 = vpop.f32.mrf.mxu0
        %v6588 = vadd.f32 0.0, %v6587
        %v6589 = vpop.f32.mrf.mxu0
        %6590 = vmatprep.mubr.bf16.mxu0 0
        %6591 = vmatmul.mubr.bf16.gmra.mxu0 %v6394
        %v6592 = vpop.f32.mrf.mxu0
        %v6593 = vadd.f32 0.0, %v6592
        %v6594 = vpop.f32.mrf.mxu0
        %v6595 = vpop.f32.mrf.mxu0
        %v6596 = vadd.f32 0.0, %v6595
        %v6597 = vpop.f32.mrf.mxu0
        %6598 = vmatprep.mubr.bf16.mxu0 0
        %6599 = vmatmul.mubr.bf16.gmra.mxu0 %v6395
        %v6600 = vpop.f32.mrf.mxu0
        %v6601 = vadd.f32 0.0, %v6600
        %v6602 = vpop.f32.mrf.mxu0
        %v6603 = vpop.f32.mrf.mxu0
        %v6604 = vadd.f32 0.0, %v6603
        %v6605 = vpop.f32.mrf.mxu0
        %6606 = vmatprep.mubr.bf16.mxu0 0
        %6607 = vmatmul.mubr.bf16.gmra.mxu0 %v6396
        %v6608 = vpop.f32.mrf.mxu0
        %v6609 = vadd.f32 0.0, %v6608
        %v6610 = vpop.f32.mrf.mxu0
        %v6611 = vpop.f32.mrf.mxu0
        %v6612 = vadd.f32 0.0, %v6611
        %v6613 = vpop.f32.mrf.mxu0
        %6614 = vmatprep.mubr.bf16.mxu0 0
        %6615 = vmatmul.mubr.bf16.gmra.mxu0 %v6397
        %v6616 = vpop.f32.mrf.mxu0
        %v6617 = vadd.f32 0.0, %v6616
        %v6618 = vpop.f32.mrf.mxu0
        %v6619 = vpop.f32.mrf.mxu0
        %v6620 = vadd.f32 0.0, %v6619
        %v6621 = vpop.f32.mrf.mxu0
        %6622 = vdwg.mxu0
        %v6623 = vld [vmem:[%s5] sm:$0x1]
        %v6625 = vlaneseq
        %v6626 = vshrl.u32 %v6625, 7
        %v6627 = vsub.s32 0, %v6626
        %v6628 = vrot.slane %v6623, %v6627
        %v6630 = vmul.f32 %v6497, %v6628
        %v6631 = vmul.f32 %v6500, %v6628
        %v6632 = vmul.f32 %v6505, %v6628
        %v6633 = vmul.f32 %v6508, %v6628
        %v6634 = vmul.f32 %v6513, %v6628
        %v6635 = vmul.f32 %v6516, %v6628
        %v6636 = vmul.f32 %v6521, %v6628
        %v6637 = vmul.f32 %v6524, %v6628
        %v6638 = vmul.f32 %v6529, %v6628
        %v6639 = vmul.f32 %v6532, %v6628
        %v6640 = vmul.f32 %v6537, %v6628
        %v6641 = vmul.f32 %v6540, %v6628
        %v6642 = vmul.f32 %v6545, %v6628
        %v6643 = vmul.f32 %v6548, %v6628
        %v6644 = vmul.f32 %v6553, %v6628
        %v6645 = vmul.f32 %v6556, %v6628
        %v6646 = vmul.f32 %v6561, %v6628
        %v6647 = vmul.f32 %v6564, %v6628
        %v6648 = vmul.f32 %v6569, %v6628
        %v6649 = vmul.f32 %v6572, %v6628
        %v6650 = vmul.f32 %v6577, %v6628
        %v6651 = vmul.f32 %v6580, %v6628
        %v6652 = vmul.f32 %v6585, %v6628
        %v6653 = vmul.f32 %v6588, %v6628
        %v6654 = vmul.f32 %v6593, %v6628
        %v6655 = vmul.f32 %v6596, %v6628
        %v6656 = vmul.f32 %v6601, %v6628
        %v6657 = vmul.f32 %v6604, %v6628
        %v6658 = vmul.f32 %v6609, %v6628
        %v6659 = vmul.f32 %v6612, %v6628
        %v6660 = vmul.f32 %v6617, %v6628
        %v6661 = vmul.f32 %v6620, %v6628
        %v6662 = vld [vmem:[%s6] sm:$0x1]
        %v6664 = vlaneseq
        %v6665 = vshrl.u32 %v6664, 7
        %v6666 = vsub.s32 0, %v6665
        %v6667 = vrot.slane %v6662, %v6666
        %v6669 = vadd.f32 %v6630, %v6667
        %v6670 = vadd.f32 %v6631, %v6667
        %v6671 = vadd.f32 %v6632, %v6667
        %v6672 = vadd.f32 %v6633, %v6667
        %v6673 = vadd.f32 %v6634, %v6667
        %v6674 = vadd.f32 %v6635, %v6667
        %v6675 = vadd.f32 %v6636, %v6667
        %v6676 = vadd.f32 %v6637, %v6667
        %v6677 = vadd.f32 %v6638, %v6667
        %v6678 = vadd.f32 %v6639, %v6667
        %v6679 = vadd.f32 %v6640, %v6667
        %v6680 = vadd.f32 %v6641, %v6667
        %v6681 = vadd.f32 %v6642, %v6667
        %v6682 = vadd.f32 %v6643, %v6667
        %v6683 = vadd.f32 %v6644, %v6667
        %v6684 = vadd.f32 %v6645, %v6667
        %v6685 = vadd.f32 %v6646, %v6667
        %v6686 = vadd.f32 %v6647, %v6667
        %v6687 = vadd.f32 %v6648, %v6667
        %v6688 = vadd.f32 %v6649, %v6667
        %v6689 = vadd.f32 %v6650, %v6667
        %v6690 = vadd.f32 %v6651, %v6667
        %v6691 = vadd.f32 %v6652, %v6667
        %v6692 = vadd.f32 %v6653, %v6667
        %v6693 = vadd.f32 %v6654, %v6667
        %v6694 = vadd.f32 %v6655, %v6667
        %v6695 = vadd.f32 %v6656, %v6667
        %v6696 = vadd.f32 %v6657, %v6667
        %v6697 = vadd.f32 %v6658, %v6667
        %v6698 = vadd.f32 %v6659, %v6667
        %v6699 = vadd.f32 %v6660, %v6667
        %v6700 = vadd.f32 %v6661, %v6667
        %v6701 = vxor.u32 %v6669, 2147483648
        %v6702 = vxor.u32 %v6670, 2147483648
        %v6703 = vxor.u32 %v6671, 2147483648
        %v6704 = vxor.u32 %v6672, 2147483648
        %v6705 = vxor.u32 %v6673, 2147483648
        %v6706 = vxor.u32 %v6674, 2147483648
        %v6707 = vxor.u32 %v6675, 2147483648
        %v6708 = vxor.u32 %v6676, 2147483648
        %v6709 = vxor.u32 %v6677, 2147483648
        %v6710 = vxor.u32 %v6678, 2147483648
        %v6711 = vxor.u32 %v6679, 2147483648
        %v6712 = vxor.u32 %v6680, 2147483648
        %v6713 = vxor.u32 %v6681, 2147483648
        %v6714 = vxor.u32 %v6682, 2147483648
        %v6715 = vxor.u32 %v6683, 2147483648
        %v6716 = vxor.u32 %v6684, 2147483648
        %v6717 = vxor.u32 %v6685, 2147483648
        %v6718 = vxor.u32 %v6686, 2147483648
        %v6719 = vxor.u32 %v6687, 2147483648
        %v6720 = vxor.u32 %v6688, 2147483648
        %v6721 = vxor.u32 %v6689, 2147483648
        %v6722 = vxor.u32 %v6690, 2147483648
        %v6723 = vxor.u32 %v6691, 2147483648
        %v6724 = vxor.u32 %v6692, 2147483648
        %v6725 = vxor.u32 %v6693, 2147483648
        %v6726 = vxor.u32 %v6694, 2147483648
        %v6727 = vxor.u32 %v6695, 2147483648
        %v6728 = vxor.u32 %v6696, 2147483648
        %v6729 = vxor.u32 %v6697, 2147483648
        %v6730 = vxor.u32 %v6698, 2147483648
        %v6731 = vxor.u32 %v6699, 2147483648
        %v6732 = vxor.u32 %v6700, 2147483648
        %v6733 = vmul.f32 %v6701, 1.442695
        %v6734 = vpow.pop %v6733
        %v6735 = vmul.f32 %v6702, 1.442695
        %v6736 = vpow.pop %v6735
        %v6737 = vmul.f32 %v6703, 1.442695
        %v6738 = vpow.pop %v6737
        %v6739 = vmul.f32 %v6704, 1.442695
        %v6740 = vpow.pop %v6739
        %v6741 = vmul.f32 %v6705, 1.442695
        %v6742 = vpow.pop %v6741
        %v6743 = vmul.f32 %v6706, 1.442695
        %v6744 = vpow.pop %v6743
        %v6745 = vmul.f32 %v6707, 1.442695
        %v6746 = vpow.pop %v6745
        %v6747 = vmul.f32 %v6708, 1.442695
        %v6748 = vpow.pop %v6747
        %v6749 = vmul.f32 %v6709, 1.442695
        %v6750 = vpow.pop %v6749
        %v6751 = vmul.f32 %v6710, 1.442695
        %v6752 = vpow.pop %v6751
        %v6753 = vmul.f32 %v6711, 1.442695
        %v6754 = vpow.pop %v6753
        %v6755 = vmul.f32 %v6712, 1.442695
        %v6756 = vpow.pop %v6755
        %v6757 = vmul.f32 %v6713, 1.442695
        %v6758 = vpow.pop %v6757
        %v6759 = vmul.f32 %v6714, 1.442695
        %v6760 = vpow.pop %v6759
        %v6761 = vmul.f32 %v6715, 1.442695
        %v6762 = vpow.pop %v6761
        %v6763 = vmul.f32 %v6716, 1.442695
        %v6764 = vpow.pop %v6763
        %v6765 = vmul.f32 %v6717, 1.442695
        %v6766 = vpow.pop %v6765
        %v6767 = vmul.f32 %v6718, 1.442695
        %v6768 = vpow.pop %v6767
        %v6769 = vmul.f32 %v6719, 1.442695
        %v6770 = vpow.pop %v6769
        %v6771 = vmul.f32 %v6720, 1.442695
        %v6772 = vpow.pop %v6771
        %v6773 = vmul.f32 %v6721, 1.442695
        %v6774 = vpow.pop %v6773
        %v6775 = vmul.f32 %v6722, 1.442695
        %v6776 = vpow.pop %v6775
        %v6777 = vmul.f32 %v6723, 1.442695
        %v6778 = vpow.pop %v6777
        %v6779 = vmul.f32 %v6724, 1.442695
        %v6780 = vpow.pop %v6779
        %v6781 = vmul.f32 %v6725, 1.442695
        %v6782 = vpow.pop %v6781
        %v6783 = vmul.f32 %v6726, 1.442695
        %v6784 = vpow.pop %v6783
        %v6785 = vmul.f32 %v6727, 1.442695
        %v6786 = vpow.pop %v6785
        %v6787 = vmul.f32 %v6728, 1.442695
        %v6788 = vpow.pop %v6787
        %v6789 = vmul.f32 %v6729, 1.442695
        %v6790 = vpow.pop %v6789
        %v6791 = vmul.f32 %v6730, 1.442695
        %v6792 = vpow.pop %v6791
        %v6793 = vmul.f32 %v6731, 1.442695
        %v6794 = vpow.pop %v6793
        %v6795 = vmul.f32 %v6732, 1.442695
        %v6796 = vpow.pop %v6795
        %v6797 = vadd.f32 %v6734, 1.0
        %v6798 = vadd.f32 %v6736, 1.0
        %v6799 = vadd.f32 %v6738, 1.0
        %v6800 = vadd.f32 %v6740, 1.0
        %v6801 = vadd.f32 %v6742, 1.0
        %v6802 = vadd.f32 %v6744, 1.0
        %v6803 = vadd.f32 %v6746, 1.0
        %v6804 = vadd.f32 %v6748, 1.0
        %v6805 = vadd.f32 %v6750, 1.0
        %v6806 = vadd.f32 %v6752, 1.0
        %v6807 = vadd.f32 %v6754, 1.0
        %v6808 = vadd.f32 %v6756, 1.0
        %v6809 = vadd.f32 %v6758, 1.0
        %v6810 = vadd.f32 %v6760, 1.0
        %v6811 = vadd.f32 %v6762, 1.0
        %v6812 = vadd.f32 %v6764, 1.0
        %v6813 = vadd.f32 %v6766, 1.0
        %v6814 = vadd.f32 %v6768, 1.0
        %v6815 = vadd.f32 %v6770, 1.0
        %v6816 = vadd.f32 %v6772, 1.0
        %v6817 = vadd.f32 %v6774, 1.0
        %v6818 = vadd.f32 %v6776, 1.0
        %v6819 = vadd.f32 %v6778, 1.0
        %v6820 = vadd.f32 %v6780, 1.0
        %v6821 = vadd.f32 %v6782, 1.0
        %v6822 = vadd.f32 %v6784, 1.0
        %v6823 = vadd.f32 %v6786, 1.0
        %v6824 = vadd.f32 %v6788, 1.0
        %v6825 = vadd.f32 %v6790, 1.0
        %v6826 = vadd.f32 %v6792, 1.0
        %v6827 = vadd.f32 %v6794, 1.0
        %v6828 = vadd.f32 %v6796, 1.0
        %v6829 = vrcp.pop %v6797
        %v6830 = vmul.f32 1.0, %v6829
        %v6831 = vrcp.pop %v6798
        %v6832 = vmul.f32 1.0, %v6831
        %v6833 = vrcp.pop %v6799
        %v6834 = vmul.f32 1.0, %v6833
        %v6835 = vrcp.pop %v6800
        %v6836 = vmul.f32 1.0, %v6835
        %v6837 = vrcp.pop %v6801
        %v6838 = vmul.f32 1.0, %v6837
        %v6839 = vrcp.pop %v6802
        %v6840 = vmul.f32 1.0, %v6839
        %v6841 = vrcp.pop %v6803
        %v6842 = vmul.f32 1.0, %v6841
        %v6843 = vrcp.pop %v6804
        %v6844 = vmul.f32 1.0, %v6843
        %v6845 = vrcp.pop %v6805
        %v6846 = vmul.f32 1.0, %v6845
        %v6847 = vrcp.pop %v6806
        %v6848 = vmul.f32 1.0, %v6847
        %v6849 = vrcp.pop %v6807
        %v6850 = vmul.f32 1.0, %v6849
        %v6851 = vrcp.pop %v6808
        %v6852 = vmul.f32 1.0, %v6851
        %v6853 = vrcp.pop %v6809
        %v6854 = vmul.f32 1.0, %v6853
        %v6855 = vrcp.pop %v6810
        %v6856 = vmul.f32 1.0, %v6855
        %v6857 = vrcp.pop %v6811
        %v6858 = vmul.f32 1.0, %v6857
        %v6859 = vrcp.pop %v6812
        %v6860 = vmul.f32 1.0, %v6859
        %v6861 = vrcp.pop %v6813
        %v6862 = vmul.f32 1.0, %v6861
        %v6863 = vrcp.pop %v6814
        %v6864 = vmul.f32 1.0, %v6863
        %v6865 = vrcp.pop %v6815
        %v6866 = vmul.f32 1.0, %v6865
        %v6867 = vrcp.pop %v6816
        %v6868 = vmul.f32 1.0, %v6867
        %v6869 = vrcp.pop %v6817
        %v6870 = vmul.f32 1.0, %v6869
        %v6871 = vrcp.pop %v6818
        %v6872 = vmul.f32 1.0, %v6871
        %v6873 = vrcp.pop %v6819
        %v6874 = vmul.f32 1.0, %v6873
        %v6875 = vrcp.pop %v6820
        %v6876 = vmul.f32 1.0, %v6875
        %v6877 = vrcp.pop %v6821
        %v6878 = vmul.f32 1.0, %v6877
        %v6879 = vrcp.pop %v6822
        %v6880 = vmul.f32 1.0, %v6879
        %v6881 = vrcp.pop %v6823
        %v6882 = vmul.f32 1.0, %v6881
        %v6883 = vrcp.pop %v6824
        %v6884 = vmul.f32 1.0, %v6883
        %v6885 = vrcp.pop %v6825
        %v6886 = vmul.f32 1.0, %v6885
        %v6887 = vrcp.pop %v6826
        %v6888 = vmul.f32 1.0, %v6887
        %v6889 = vrcp.pop %v6827
        %v6890 = vmul.f32 1.0, %v6889
        %v6891 = vrcp.pop %v6828
        %v6892 = vmul.f32 1.0, %v6891
        %v6893 = vmul.f32 %v6669, %v6830
        %v6894 = vmul.f32 %v6670, %v6832
        %v6895 = vmul.f32 %v6671, %v6834
        %v6896 = vmul.f32 %v6672, %v6836
        %v6897 = vmul.f32 %v6673, %v6838
        %v6898 = vmul.f32 %v6674, %v6840
        %v6899 = vmul.f32 %v6675, %v6842
        %v6900 = vmul.f32 %v6676, %v6844
        %v6901 = vmul.f32 %v6677, %v6846
        %v6902 = vmul.f32 %v6678, %v6848
        %v6903 = vmul.f32 %v6679, %v6850
        %v6904 = vmul.f32 %v6680, %v6852
        %v6905 = vmul.f32 %v6681, %v6854
        %v6906 = vmul.f32 %v6682, %v6856
        %v6907 = vmul.f32 %v6683, %v6858
        %v6908 = vmul.f32 %v6684, %v6860
        %v6909 = vmul.f32 %v6685, %v6862
        %v6910 = vmul.f32 %v6686, %v6864
        %v6911 = vmul.f32 %v6687, %v6866
        %v6912 = vmul.f32 %v6688, %v6868
        %v6913 = vmul.f32 %v6689, %v6870
        %v6914 = vmul.f32 %v6690, %v6872
        %v6915 = vmul.f32 %v6691, %v6874
        %v6916 = vmul.f32 %v6692, %v6876
        %v6917 = vmul.f32 %v6693, %v6878
        %v6918 = vmul.f32 %v6694, %v6880
        %v6919 = vmul.f32 %v6695, %v6882
        %v6920 = vmul.f32 %v6696, %v6884
        %v6921 = vmul.f32 %v6697, %v6886
        %v6922 = vmul.f32 %v6698, %v6888
        %v6923 = vmul.f32 %v6699, %v6890
        %v6924 = vmul.f32 %v6700, %v6892
        %v6925 = vpack.c.bf16 %v6894, %v6893
        %v6926 = vpack.c.bf16 %v6896, %v6895
        %v6927 = vpack.c.bf16 %v6898, %v6897
        %v6928 = vpack.c.bf16 %v6900, %v6899
        %v6929 = vpack.c.bf16 %v6902, %v6901
        %v6930 = vpack.c.bf16 %v6904, %v6903
        %v6931 = vpack.c.bf16 %v6906, %v6905
        %v6932 = vpack.c.bf16 %v6908, %v6907
        %v6933 = vpack.c.bf16 %v6910, %v6909
        %v6934 = vpack.c.bf16 %v6912, %v6911
        %v6935 = vpack.c.bf16 %v6914, %v6913
        %v6936 = vpack.c.bf16 %v6916, %v6915
        %v6937 = vpack.c.bf16 %v6918, %v6917
        %v6938 = vpack.c.bf16 %v6920, %v6919
        %v6939 = vpack.c.bf16 %v6922, %v6921
        %v6940 = vpack.c.bf16 %v6924, %v6923
        %v6957 = vunpack.c.l.b16 %v6925
        %v6958 = vunpack.c.h.b16 %v6925
        %v6959 = vunpack.c.l.b16 %v6926
        %v6960 = vunpack.c.h.b16 %v6926
        %v6961 = vunpack.c.l.b16 %v6927
        %v6962 = vunpack.c.h.b16 %v6927
        %v6963 = vunpack.c.l.b16 %v6928
        %v6964 = vunpack.c.h.b16 %v6928
        %v6965 = vunpack.c.l.b16 %v6929
        %v6966 = vunpack.c.h.b16 %v6929
        %v6967 = vunpack.c.l.b16 %v6930
        %v6968 = vunpack.c.h.b16 %v6930
        %v6969 = vunpack.c.l.b16 %v6931
        %v6970 = vunpack.c.h.b16 %v6931
        %v6971 = vunpack.c.l.b16 %v6932
        %v6972 = vunpack.c.h.b16 %v6932
        %v6973 = vunpack.c.l.b16 %v6933
        %v6974 = vunpack.c.h.b16 %v6933
        %v6975 = vunpack.c.l.b16 %v6934
        %v6976 = vunpack.c.h.b16 %v6934
        %v6977 = vunpack.c.l.b16 %v6935
        %v6978 = vunpack.c.h.b16 %v6935
        %v6979 = vunpack.c.l.b16 %v6936
        %v6980 = vunpack.c.h.b16 %v6936
        %v6981 = vunpack.c.l.b16 %v6937
        %v6982 = vunpack.c.h.b16 %v6937
        %v6983 = vunpack.c.l.b16 %v6938
        %v6984 = vunpack.c.h.b16 %v6938
        %v6985 = vunpack.c.l.b16 %v6939
        %v6986 = vunpack.c.h.b16 %v6939
        %v6987 = vunpack.c.l.b16 %v6940
        %v6988 = vunpack.c.h.b16 %v6940
        %v6989 = vpack.c.b16 %v6957, %v6957
        %v6990 = vpack.c.b16 %v6958, %v6958
        %v6991 = vpack.c.b16 %v6959, %v6959
        %v6992 = vpack.c.b16 %v6960, %v6960
        %v6993 = vpack.c.b16 %v6961, %v6961
        %v6994 = vpack.c.b16 %v6962, %v6962
        %v6995 = vpack.c.b16 %v6963, %v6963
        %v6996 = vpack.c.b16 %v6964, %v6964
        %v6997 = vpack.c.b16 %v6965, %v6965
        %v6998 = vpack.c.b16 %v6966, %v6966
        %v6999 = vpack.c.b16 %v6967, %v6967
        %v7000 = vpack.c.b16 %v6968, %v6968
        %v7001 = vpack.c.b16 %v6969, %v6969
        %v7002 = vpack.c.b16 %v6970, %v6970
        %v7003 = vpack.c.b16 %v6971, %v6971
        %v7004 = vpack.c.b16 %v6972, %v6972
        %v7005 = vpack.c.b16 %v6973, %v6973
        %v7006 = vpack.c.b16 %v6974, %v6974
        %v7007 = vpack.c.b16 %v6975, %v6975
        %v7008 = vpack.c.b16 %v6976, %v6976
        %v7009 = vpack.c.b16 %v6977, %v6977
        %v7010 = vpack.c.b16 %v6978, %v6978
        %v7011 = vpack.c.b16 %v6979, %v6979
        %v7012 = vpack.c.b16 %v6980, %v6980
        %v7013 = vpack.c.b16 %v6981, %v6981
        %v7014 = vpack.c.b16 %v6982, %v6982
        %v7015 = vpack.c.b16 %v6983, %v6983
        %v7016 = vpack.c.b16 %v6984, %v6984
        %v7017 = vpack.c.b16 %v6985, %v6985
        %v7018 = vpack.c.b16 %v6986, %v6986
        %v7019 = vpack.c.b16 %v6987, %v6987
        %v7020 = vpack.c.b16 %v6988, %v6988
        %7053 = vst [vmem:[%s325] sm:$0xf] %v6989
        %7054 = vst [vmem:[%s325 + $0x4] sm:$0xf] %v6990
        %7055 = vst [vmem:[%s325 + $0x8] sm:$0xf] %v6991
        %7056 = vst [vmem:[%s325 + $0xc] sm:$0xf] %v6992
        %7057 = vst [vmem:[%s325 + $0x10] sm:$0xf] %v6993
        %7058 = vst [vmem:[%s325 + $0x14] sm:$0xf] %v6994
        %7059 = vst [vmem:[%s325 + $0x18] sm:$0xf] %v6995
        %7060 = vst [vmem:[%s325 + $0x1c] sm:$0xf] %v6996
        %7061 = vst [vmem:[%s325 + $0x20] sm:$0xf] %v6997
        %7062 = vst [vmem:[%s325 + $0x24] sm:$0xf] %v6998
        %7063 = vst [vmem:[%s325 + $0x28] sm:$0xf] %v6999
        %7064 = vst [vmem:[%s325 + $0x2c] sm:$0xf] %v7000
        %7065 = vst [vmem:[%s325 + $0x30] sm:$0xf] %v7001
        %7066 = vst [vmem:[%s325 + $0x34] sm:$0xf] %v7002
        %7067 = vst [vmem:[%s325 + $0x38] sm:$0xf] %v7003
        %7068 = vst [vmem:[%s325 + $0x3c] sm:$0xf] %v7004
        %7069 = vst [vmem:[%s325 + $0x40] sm:$0xf] %v7005
        %7070 = vst [vmem:[%s325 + $0x44] sm:$0xf] %v7006
        %7071 = vst [vmem:[%s325 + $0x48] sm:$0xf] %v7007
        %7072 = vst [vmem:[%s325 + $0x4c] sm:$0xf] %v7008
        %7073 = vst [vmem:[%s325 + $0x50] sm:$0xf] %v7009
        %7074 = vst [vmem:[%s325 + $0x54] sm:$0xf] %v7010
        %7075 = vst [vmem:[%s325 + $0x58] sm:$0xf] %v7011
        %7076 = vst [vmem:[%s325 + $0x5c] sm:$0xf] %v7012
        %7077 = vst [vmem:[%s325 + $0x60] sm:$0xf] %v7013
        %7078 = vst [vmem:[%s325 + $0x64] sm:$0xf] %v7014
        %7079 = vst [vmem:[%s325 + $0x68] sm:$0xf] %v7015
        %7080 = vst [vmem:[%s325 + $0x6c] sm:$0xf] %v7016
        %7081 = vst [vmem:[%s325 + $0x70] sm:$0xf] %v7017
        %7082 = vst [vmem:[%s325 + $0x74] sm:$0xf] %v7018
        %7083 = vst [vmem:[%s325 + $0x78] sm:$0xf] %v7019
        %7084 = vst [vmem:[%s325 + $0x7c] sm:$0xf] %v7020
        %s7085 = sand.u32 %s185, 1
        %s7086 = scalar_lea.sflag [#allocation5], %s7085
        %s7087 = sand.u32 %s185, 1
        %s7088 = smul.addr %s7087, 128
        %s7089 = scalar_lea.vmem [#allocation9], %s7088
        // Predicated region
        $region61: #{tpu_custom_call.1} parent=47 // pred_check
          %p7090 = pneg %p195
        $region62: #{tpu_custom_call.1} parent=47 // pred_check_branch
          %7092 = sbr.rel (%p7090) target = $region64
        $region63: #{tpu_custom_call.1} parent=47 // pred_region
          %s7094 = ssub.s32 2048, 2048
          %7095 = vsyncadd %s7086, %s7094
          %s7096 = smul.addr %s25, 32
          %s7097 = smul.addr %s7096, 64
          %s7098 = scalar_lea.hbm %s7, %s7097
          %s7099 = sshll.u32 %s7089, 4
          %s7100 = int_to_ptr.vmem [resolvable:$true] %s7099
          %7105 = dma.vmem_to_hbm [thread:$0]  %s7100, 2048, %s7098, %s7086, 64, 64, 4
        $region64: #{tpu_custom_call.1} parent=47 // pred_fallthru
          _
      $region48: #{tpu_custom_call.1} parent=5 // pred_fallthru
        _
      %p7106 = scmp.le.s32.totalorder 2, %s20
      // Predicated region
      $region65: #{tpu_custom_call.1} parent=5 // pred_check
        %p7107 = pneg %p7106
      $region66: #{tpu_custom_call.1} parent=5 // pred_check_branch
        %7109 = sbr.rel (%p7107) target = $region68
      $region67: #{tpu_custom_call.1} parent=5 // pred_region
        %s7110 = ssub.s32 %s20, 2
        // Predicated region
        $region69: #{tpu_custom_call.1} parent=67 // pred_check
          %p7111 = pneg %p201
        $region70: #{tpu_custom_call.1} parent=67 // pred_check_branch
          %7113 = sbr.rel (%p7111) target = $region72
        $region71: #{tpu_custom_call.1} parent=67 // pred_region
          %s7114 = sand.u32 %s186, 1
          %s7115 = scalar_lea.sflag [#allocation5], %s7114
          %s7116 = sand.u32 %s186, 1
          %s7117 = smul.addr %s7116, 128
          %s7118 = scalar_lea.vmem [#allocation9], %s7117
          %7119 = dma.done %s7115, 2048
        $region72: #{tpu_custom_call.1} parent=67 // pred_fallthru
          _
      $region68: #{tpu_custom_call.1} parent=5 // pred_fallthru
        _
    $region6: #{tpu_custom_call.1} parent=1 // loop_footer
      %s24 = sadd.s32 1, %s20
    $region7: #{tpu_custom_call.1} parent=1 // loop_footer_branch
      %19 = sbr.rel target = $region3
    $region8: #{tpu_custom_call.1} parent=1 // loop_exit
      _
    %7120 = vsyncpa [#allocation4], 1
    %s7121 = scalar_lea.sflag [#allocation4], 1
    %7122 = vsyncpa %s7121, 1
    %7123 = vsyncpa [#allocation7], 1
    %7124 = vsyncpa [#allocation5], 1
    %s7125 = scalar_lea.sflag [#allocation5], 1
    %7126 = vsyncpa %s7125, 1

</llo_original>
